<compile_context>
chip_gen: v5e
topology: v5e:2x2
jax: 0.10.0
libtpu: 0.0.40
codegen_flags: <defaults>
</compile_context>

<pallas_src>
import numpy as np
import jax
import jax.numpy as jnp
from jax.experimental import pallas as pl
from jax.experimental.pallas import tpu as pltpu

EPS = 1e-5
TILE_B_MAX = 256  # MXU-filling batch tile (>=128 v5e / 256 v6e,v7x)

# Static row offsets inside the packed bf16 weight slabs (multiples of 16 so
# every carved view starts on a bf16 (16,128) vreg boundary).
# slab576 (1232, 576): t2 | r2a_t | r2b_t
_T2_OFF, _R2A_OFF, _R2B_OFF = 0, 80, 656
_SLAB576_ROWS = 1232
# slabm (864, 128): t1 | r1a_t | r1b_t | tp | hw1 | hw2
_T1_OFF, _R1A_OFF, _R1B_OFF, _TP_OFF, _HW1_OFF, _HW2_OFF = 0, 48, 128, 208, 784, 848
_SLABM_ROWS = 864
# small f32 param pack: (24, 576)
_SP_ROWS = 24


def model_kernel(cnt_ref, x_ref, w576_ref, wm_ref, sp_ref, out_ref):
    f32 = jnp.float32
    bf16 = jnp.bfloat16
    tile_b = x_ref.shape[0]

    # Number of valid (non-padded) rows in this batch tile.
    valid = cnt_ref[pl.program_id(0)]
    nvalid = valid.astype(f32)
    row = jax.lax.broadcasted_iota(jnp.int32, (tile_b, 1), 0)
    mask = (row < valid).astype(f32)            # zero out pad rows in BN stats

    def mm(a, w):
        # MXU matmul: bf16 x bf16 operands, f32 accumulate.
        return jnp.dot(a.astype(bf16), w, preferred_element_type=f32)

    relu = lambda v: jnp.maximum(v, 0.0)

    def pool9(v, c):
        # (1, 9c) position-outer / channel-inner -> per-channel sum over the 9
        # board positions.  Static lane slices + VPU adds (no E matrix, no MXU).
        acc = v[:, 0:c]
        for p in range(1, 9):
            acc = acc + v[:, p * c:(p + 1) * c]
        return acc

    def bn2d(h, c, gamma, beta):
        # Training-mode BatchNorm2d over the current batch tile.
        hm = h * mask
        s1 = pool9(jnp.sum(hm, axis=0, keepdims=True), c)       # (1, c)
        s2 = pool9(jnp.sum(hm * h, axis=0, keepdims=True), c)   # (1, c)
        n = 9.0 * nvalid
        mean = s1 / n
        # TODO(synk): E[x^2]-mean^2 can cancel catastrophically; use Welford if
        # this ever feeds training.
        var = jnp.maximum(s2 / n - mean * mean, 0.0)
        scale = gamma * jax.lax.rsqrt(var + EPS)                 # (1, c)
        shift = beta - mean * scale
        return h * jnp.tile(scale, (1, 9)) + jnp.tile(shift, (1, 9))

    # -------- carve packed weights (static views / loads, no extra DMAs) ------
    t1 = wm_ref[_T1_OFF:_T1_OFF + 36, 0:72]           # conv(4,8)   unrolled
    r1a = wm_ref[_R1A_OFF:_R1A_OFF + 72, 0:72]        # ResBlock(8).conv1
    r1b = wm_ref[_R1B_OFF:_R1B_OFF + 72, 0:72]        # ResBlock(8).conv2
    tp = wm_ref[_TP_OFF:_TP_OFF + 576, 0:64]          # convPool(64,64)
    hw1 = wm_ref[_HW1_OFF:_HW1_OFF + 64, 0:16]        # fused head linear1
    hw2 = wm_ref[_HW2_OFF:_HW2_OFF + 16, 0:128]       # fused head linear2 (block-diag)
    t2 = w576_ref[_T2_OFF:_T2_OFF + 72, :]            # conv(8,64)  unrolled
    r2a = w576_ref[_R2A_OFF:_R2A_OFF + 576, :]        # ResBlock(64).conv1
    r2b = w576_ref[_R2B_OFF:_R2B_OFF + 576, :]        # ResBlock(64).conv2

    # -------- packed small parameters (f32) --------
    bn3g, bn3b = sp_ref[0:1, 0:64], sp_ref[1:2, 0:64]
    bn4g, bn4b = sp_ref[2:3, 0:64], sp_ref[3:4, 0:64]
    r2a_b = sp_ref[4:5, 0:576]
    bn1g, bn1b = sp_ref[8:9, 0:8], sp_ref[9:10, 0:8]
    bn2g, bn2b = sp_ref[10:11, 0:8], sp_ref[11:12, 0:8]
    r1a_b = sp_ref[12:13, 0:72]
    tpb = sp_ref[16:17, 0:64]
    hb1 = sp_ref[17:18, 0:16]
    hg = sp_ref[18:19, 0:16]
    hbe = sp_ref[19:20, 0:16]
    hb2 = sp_ref[20:21, 0:128]

    # -------- hidden_model --------
    x = x_ref[...]                                     # (tile_b, 36)
    # conv(4,8): bias exactly cancelled by training-mode BN -> dropped
    h = mm(x, t1)                                      # (tile_b, 72)
    h = relu(bn2d(h, 8, bn1g, bn1b))
    # ResBlock(8): conv2 bias cancelled by the following BN -> dropped
    h = h + mm(mm(h, r1a) + r1a_b, r1b)
    h = relu(bn2d(h, 8, bn2g, bn2b))
    # conv(8,64): bias cancelled by BN -> dropped
    h = mm(h, t2)                                      # (tile_b, 576)
    h = relu(bn2d(h, 64, bn3g, bn3b))
    # ResBlock(64): conv2 bias cancelled by the following BN -> dropped
    h = h + mm(mm(h, r2a) + r2a_b, r2b)
    h = relu(bn2d(h, 64, bn4g, bn4b))
    hid = mm(h, tp) + tpb                              # convPool + Flatten -> (tile_b, 64)

    # -------- fused policy + value heads --------
    ph = relu(mm(hid, hw1) + hb1)                      # (tile_b, 16): [policy 0:8 | value 8:16]
    phm = ph * mask
    mean = jnp.sum(phm, axis=0, keepdims=True) / nvalid
    d = ph - mean
    var = jnp.sum(d * d * mask, axis=0, keepdims=True) / nvalid
    ph = d * jax.lax.rsqrt(var + EPS) * hg + hbe       # BN1d (train mode)
    z = mm(ph, hw2) + hb2                              # (tile_b, 128): cols 0-8 policy, col 9 value
    col = jax.lax.broadcasted_iota(jnp.int32, z.shape, 1)
    is_val = col == 9
    t = jnp.tanh(jnp.where(is_val, 0.5 * z, z))        # single tanh; sigmoid = 0.5*tanh(z/2)+0.5
    out_ref[...] = jnp.where(is_val, 0.5 * t + 0.5, t)


def _round_up(n, m):
    return (n + m - 1) // m * m


def forward(obs_nchw, params, *, tile_b=None):
    """obs_nchw: (B, 4, 3, 3) float32, NCHW like the PyTorch module."""
    w576, wm, sp = params
    B = obs_nchw.shape[0]
    # NCHW -> (B, P*C), P = h*3 + w outer, C inner (NHWC-flattened).
    x = jnp.transpose(obs_nchw, (0, 2, 3, 1)).reshape(B, 36).astype(jnp.float32)

    if tile_b is None:
        tile_b = min(_round_up(B, 8), TILE_B_MAX)
    b_pad = _round_up(B, tile_b)
    if b_pad != B:
        x = jnp.pad(x, ((0, b_pad - B), (0, 0)))
    nt = b_pad // tile_b
    # valid rows per tile (scalar-prefetched to SMEM, used to mask BN stats).
    counts = jnp.asarray(
        np.minimum(np.maximum(B - np.arange(nt) * tile_b, 0), tile_b), jnp.int32)

    grid_spec = pltpu.PrefetchScalarGridSpec(
        num_scalar_prefetch=1,
        grid=(nt,),
        in_specs=[
            pl.BlockSpec((tile_b, 36), lambda i, c: (i, 0)),                 # activations: tiled
            pl.BlockSpec((_SLAB576_ROWS, 576), lambda i, c: (0, 0)),         # weights: VMEM-resident
            pl.BlockSpec((_SLABM_ROWS, 128), lambda i, c: (0, 0)),
            pl.BlockSpec((_SP_ROWS, 576), lambda i, c: (0, 0)),
        ],
        out_specs=pl.BlockSpec((tile_b, 128), lambda i, c: (i, 0)),
    )
    out = pl.pallas_call(
        model_kernel,
        out_shape=jax.ShapeDtypeStruct((b_pad, 128), jnp.float32),
        grid_spec=grid_spec,
        compiler_params=pltpu.CompilerParams(
            dimension_semantics=("parallel",),        # v7x: shard tiles over both TCs
            vmem_limit_bytes=32 * 1024 * 1024,
        ),
    )(counts, x, w576, wm, sp)
    out = out[:B]
    return out[:, :9], out[:, 9:10]


# ------------------------ parameter construction (glue) ------------------------

def _pad1_conv_matrix(w):
    """(Cout, Cin, 3, 3) conv weight (stride 1, pad 1, 3x3 board) -> (9*Cin, 9*Cout)."""
    cout, cin = w.shape[0], w.shape[1]
    t = np.zeros((9 * cin, 9 * cout), np.float32)
    for oh in range(3):
        for ow in range(3):
            p = oh * 3 + ow
            for kh in range(3):
                for kw in range(3):
                    ih, iw = oh + kh - 1, ow + kw - 1
                    if 0 <= ih < 3 and 0 <= iw < 3:
                        q = ih * 3 + iw
                        t[q * cin:(q + 1) * cin, p * cout:(p + 1) * cout] = w[:, :, kh, kw].T
    return t


def _full_conv_matrix(w):
    """(Cout, Cin, 3, 3) conv weight, no padding on 3x3 board (-> 1x1) -> (9*Cin, Cout)."""
    cout, cin = w.shape[0], w.shape[1]
    m = np.zeros((9 * cin, cout), np.float32)
    for kh in range(3):
        for kw in range(3):
            q = kh * 3 + kw
            m[q * cin:(q + 1) * cin, :] = w[:, :, kh, kw].T
    return m


def make_params(key):
    keys = iter(jax.random.split(key, 64))

    def conv_w(cin, cout):
        bound = 1.0 / np.sqrt(cin * 9)
        w = np.asarray(jax.random.uniform(next(keys), (cout, cin, 3, 3), jnp.float32, -bound, bound))
        b = np.asarray(jax.random.uniform(next(keys), (cout,), jnp.float32, -bound, bound))
        return w, b

    def lin_w(fin, fout):
        bound = 1.0 / np.sqrt(fin)
        w = np.asarray(jax.random.uniform(next(keys), (fin, fout), jnp.float32, -bound, bound))
        b = np.asarray(jax.random.uniform(next(keys), (fout,), jnp.float32, -bound, bound))
        return w, b

    # hidden model convs (biases feeding directly into train-mode BN are exact no-ops -> dropped)
    w1, _ = conv_w(4, 8)
    wr1a, br1a = conv_w(8, 8)
    wr1b, _ = conv_w(8, 8)
    w2, _ = conv_w(8, 64)
    wr2a, br2a = conv_w(64, 64)
    wr2b, _ = conv_w(64, 64)
    wp, bp = conv_w(64, 64)

    # heads
    pw1, pb1 = lin_w(64, 8)
    pw2, pb2 = lin_w(8, 9)
    vw1, vb1 = lin_w(64, 8)
    vw2, vb2 = lin_w(8, 1)

    # fused head weights
    hw1 = np.concatenate([pw1, vw1], axis=1)                  # (64, 16)
    hb1 = np.concatenate([pb1, vb1])                           # (16,)
    hw2 = np.zeros((16, 128), np.float32)                      # block-diag, lane-padded
    hw2[0:8, 0:9] = pw2
    hw2[8:16, 9:10] = vw2
    hb2 = np.zeros(128, np.float32)
    hb2[0:9] = pb2
    hb2[9] = vb2[0]

    # ---- bf16 weight slabs ----
    w576 = np.zeros((_SLAB576_ROWS, 576), np.float32)
    w576[_T2_OFF:_T2_OFF + 72, :] = _pad1_conv_matrix(w2)
    w576[_R2A_OFF:_R2A_OFF + 576, :] = _pad1_conv_matrix(wr2a)
    w576[_R2B_OFF:_R2B_OFF + 576, :] = _pad1_conv_matrix(wr2b)

    wm = np.zeros((_SLABM_ROWS, 128), np.float32)
    wm[_T1_OFF:_T1_OFF + 36, 0:72] = _pad1_conv_matrix(w1)
    wm[_R1A_OFF:_R1A_OFF + 72, 0:72] = _pad1_conv_matrix(wr1a)
    wm[_R1B_OFF:_R1B_OFF + 72, 0:72] = _pad1_conv_matrix(wr1b)
    wm[_TP_OFF:_TP_OFF + 576, 0:64] = _full_conv_matrix(wp)
    wm[_HW1_OFF:_HW1_OFF + 64, 0:16] = hw1
    wm[_HW2_OFF:_HW2_OFF + 16, 0:128] = hw2

    # ---- packed small f32 parameters ----
    sp = np.zeros((_SP_ROWS, 576), np.float32)
    sp[0, 0:64] = 1.0                       # bn3 gamma (beta row 1 stays 0)
    sp[2, 0:64] = 1.0                       # bn4 gamma (beta row 3 stays 0)
    sp[4, 0:576] = np.tile(br2a, 9)         # ResBlock(64).conv1 bias, tiled per position
    sp[8, 0:8] = 1.0                        # bn1 gamma
    sp[10, 0:8] = 1.0                       # bn2 gamma
    sp[12, 0:72] = np.tile(br1a, 9)         # ResBlock(8).conv1 bias, tiled per position
    sp[16, 0:64] = bp                       # convPool bias
    sp[17, 0:16] = hb1                      # fused head linear1 bias
    sp[18, 0:16] = 1.0                      # head BN1d gamma
    sp[20, 0:128] = hb2                     # fused head linear2 bias

    return (jnp.asarray(w576, jnp.bfloat16),
            jnp.asarray(wm, jnp.bfloat16),
            jnp.asarray(sp, jnp.float32))


if __name__ == "__main__":
    key = jax.random.PRNGKey(0)
    pkey, xkey, xkey2 = jax.random.split(key, 3)
    params = make_params(pkey)

    # tic-tac-toe style input: batch=8, 4 planes, 3x3 board (NCHW like PyTorch)
    obs = jax.random.normal(xkey, (8, 4, 3, 3), jnp.float32)
    policy, value = forward(obs, params)
    jax.block_until_ready((policy, value))
    assert policy.shape == (8, 9) and value.shape == (8, 1)
    assert bool(jnp.all(jnp.isfinite(policy))) and bool(jnp.all(jnp.isfinite(value)))
    assert bool(jnp.all(value >= 0.0)) and bool(jnp.all(value <= 1.0))

    # exercise the multi-tile batch grid + partial-tile masking path
    obs2 = jax.random.normal(xkey2, (20, 4, 3, 3), jnp.float32)
    p2, v2 = forward(obs2, params, tile_b=8)
    jax.block_until_ready((p2, v2))
    assert p2.shape == (20, 9) and v2.shape == (20, 1)
    assert bool(jnp.all(jnp.isfinite(p2))) and bool(jnp.all(jnp.isfinite(v2)))
    assert bool(jnp.all(v2 >= 0.0)) and bool(jnp.all(v2 <= 1.0))

    print("KERNEL_OK")
</pallas_src>

<mosaic_0001>
module attributes {stable_mosaic.version = 11 : i64} {
  func.func @model_kernel(%arg0: i32, %arg1: memref<1xi32, #tpu.memory_space<smem>>, %arg2: memref<8x36xf32, #tpu.memory_space<vmem>>, %arg3: memref<1232x576xbf16, #tpu.memory_space<vmem>>, %arg4: memref<864x128xbf16, #tpu.memory_space<vmem>>, %arg5: memref<24x576xf32, #tpu.memory_space<vmem>>, %arg6: memref<8x128xf32, #tpu.memory_space<vmem>>) attributes {dimension_semantics = [#tpu.dimension_semantics<parallel>], iteration_bounds = array<i64: 1>, scalar_prefetch = 1 : i64, scratch_operands = 0 : i64, tpu.core_type = #tpu.core_type<tc>, window_params = [{transform_indices = @transform_0, window_bounds = array<i64: 8, 36>}, {pipeline_mode = #tpu.pipeline_mode<synchronous>, transform_indices = @transform_1, window_bounds = array<i64: 1232, 576>}, {pipeline_mode = #tpu.pipeline_mode<synchronous>, transform_indices = @transform_2, window_bounds = array<i64: 864, 128>}, {pipeline_mode = #tpu.pipeline_mode<synchronous>, transform_indices = @transform_3, window_bounds = array<i64: 24, 576>}, {transform_indices = @transform_4, window_bounds = array<i64: 8, 128>}]} {
    %0 = arith.index_cast %arg0 : i32 to index
    %1 = memref.load %arg1[%0] : memref<1xi32, #tpu.memory_space<smem>>
    %2 = arith.sitofp %1 : i32 to f32
    %3 = tpu.iota {dimensions = array<i32: 0>} : vector<8x1xi32>
    %4 = vector.broadcast %1 : i32 to vector<8x1xi32>
    %5 = arith.cmpi slt, %3, %4 : vector<8x1xi32>
    %6 = arith.extui %5 : vector<8x1xi1> to vector<8x1xi32>
    %7 = arith.sitofp %6 : vector<8x1xi32> to vector<8x1xf32>
    %c0 = arith.constant 0 : index
    %c0_0 = arith.constant 0 : index
    %8 = vector.load %arg4[%c0, %c0_0] : memref<864x128xbf16, #tpu.memory_space<vmem>>, vector<36x72xbf16>
    %c48 = arith.constant 48 : index
    %c0_1 = arith.constant 0 : index
    %9 = vector.load %arg4[%c48, %c0_1] : memref<864x128xbf16, #tpu.memory_space<vmem>>, vector<72x72xbf16>
    %c128 = arith.constant 128 : index
    %c0_2 = arith.constant 0 : index
    %10 = vector.load %arg4[%c128, %c0_2] : memref<864x128xbf16, #tpu.memory_space<vmem>>, vector<72x72xbf16>
    %c208 = arith.constant 208 : index
    %c0_3 = arith.constant 0 : index
    %11 = vector.load %arg4[%c208, %c0_3] : memref<864x128xbf16, #tpu.memory_space<vmem>>, vector<576x64xbf16>
    %c784 = arith.constant 784 : index
    %c0_4 = arith.constant 0 : index
    %12 = vector.load %arg4[%c784, %c0_4] : memref<864x128xbf16, #tpu.memory_space<vmem>>, vector<64x16xbf16>
    %c848 = arith.constant 848 : index
    %c0_5 = arith.constant 0 : index
    %13 = vector.load %arg4[%c848, %c0_5] : memref<864x128xbf16, #tpu.memory_space<vmem>>, vector<16x128xbf16>
    %c0_6 = arith.constant 0 : index
    %c0_7 = arith.constant 0 : index
    %14 = vector.load %arg3[%c0_6, %c0_7] : memref<1232x576xbf16, #tpu.memory_space<vmem>>, vector<72x576xbf16>
    %c80 = arith.constant 80 : index
    %c0_8 = arith.constant 0 : index
    %15 = vector.load %arg3[%c80, %c0_8] : memref<1232x576xbf16, #tpu.memory_space<vmem>>, vector<576x576xbf16>
    %c656 = arith.constant 656 : index
    %c0_9 = arith.constant 0 : index
    %16 = vector.load %arg3[%c656, %c0_9] : memref<1232x576xbf16, #tpu.memory_space<vmem>>, vector<576x576xbf16>
    %c0_10 = arith.constant 0 : index
    %c0_11 = arith.constant 0 : index
    %17 = vector.load %arg5[%c0_10, %c0_11] : memref<24x576xf32, #tpu.memory_space<vmem>>, vector<1x64xf32>
    %c1 = arith.constant 1 : index
    %c0_12 = arith.constant 0 : index
    %18 = vector.load %arg5[%c1, %c0_12] : memref<24x576xf32, #tpu.memory_space<vmem>>, vector<1x64xf32>
    %c2 = arith.constant 2 : index
    %c0_13 = arith.constant 0 : index
    %19 = vector.load %arg5[%c2, %c0_13] : memref<24x576xf32, #tpu.memory_space<vmem>>, vector<1x64xf32>
    %c3 = arith.constant 3 : index
    %c0_14 = arith.constant 0 : index
    %20 = vector.load %arg5[%c3, %c0_14] : memref<24x576xf32, #tpu.memory_space<vmem>>, vector<1x64xf32>
    %c4 = arith.constant 4 : index
    %c0_15 = arith.constant 0 : index
    %21 = vector.load %arg5[%c4, %c0_15] : memref<24x576xf32, #tpu.memory_space<vmem>>, vector<1x576xf32>
    %c8 = arith.constant 8 : index
    %c0_16 = arith.constant 0 : index
    %22 = vector.load %arg5[%c8, %c0_16] : memref<24x576xf32, #tpu.memory_space<vmem>>, vector<1x8xf32>
    %c9 = arith.constant 9 : index
    %c0_17 = arith.constant 0 : index
    %23 = vector.load %arg5[%c9, %c0_17] : memref<24x576xf32, #tpu.memory_space<vmem>>, vector<1x8xf32>
    %c10 = arith.constant 10 : index
    %c0_18 = arith.constant 0 : index
    %24 = vector.load %arg5[%c10, %c0_18] : memref<24x576xf32, #tpu.memory_space<vmem>>, vector<1x8xf32>
    %c11 = arith.constant 11 : index
    %c0_19 = arith.constant 0 : index
    %25 = vector.load %arg5[%c11, %c0_19] : memref<24x576xf32, #tpu.memory_space<vmem>>, vector<1x8xf32>
    %c12 = arith.constant 12 : index
    %c0_20 = arith.constant 0 : index
    %26 = vector.load %arg5[%c12, %c0_20] : memref<24x576xf32, #tpu.memory_space<vmem>>, vector<1x72xf32>
    %c16 = arith.constant 16 : index
    %c0_21 = arith.constant 0 : index
    %27 = vector.load %arg5[%c16, %c0_21] : memref<24x576xf32, #tpu.memory_space<vmem>>, vector<1x64xf32>
    %c17 = arith.constant 17 : index
    %c0_22 = arith.constant 0 : index
    %28 = vector.load %arg5[%c17, %c0_22] : memref<24x576xf32, #tpu.memory_space<vmem>>, vector<1x16xf32>
    %c18 = arith.constant 18 : index
    %c0_23 = arith.constant 0 : index
    %29 = vector.load %arg5[%c18, %c0_23] : memref<24x576xf32, #tpu.memory_space<vmem>>, vector<1x16xf32>
    %c19 = arith.constant 19 : index
    %c0_24 = arith.constant 0 : index
    %30 = vector.load %arg5[%c19, %c0_24] : memref<24x576xf32, #tpu.memory_space<vmem>>, vector<1x16xf32>
    %c20 = arith.constant 20 : index
    %c0_25 = arith.constant 0 : index
    %31 = vector.load %arg5[%c20, %c0_25] : memref<24x576xf32, #tpu.memory_space<vmem>>, vector<1x128xf32>
    %c0_26 = arith.constant 0 : index
    %c0_27 = arith.constant 0 : index
    %32 = vector.load %arg2[%c0_26, %c0_27] : memref<8x36xf32, #tpu.memory_space<vmem>>, vector<8x36xf32>
    %33 = arith.truncf %32 : vector<8x36xf32> to vector<8x36xbf16>
    %cst = arith.constant dense<0.000000e+00> : vector<8x72xf32>
    %34 = tpu.matmul %33, %8, %cst {dimension_numbers = #tpu.dot_dimension_numbers<[1], [0], [0], [1], [0, 0, 1, 1], [], []>} : vector<8x36xbf16>, vector<36x72xbf16>, vector<8x72xf32> -> vector<8x72xf32>
    %35 = vector.broadcast %7 : vector<8x1xf32> to vector<8x72xf32>
    %36 = arith.mulf %34, %35 : vector<8x72xf32>
    %cst_28 = arith.constant dense<0.000000e+00> : vector<72xf32>
    %37 = vector.multi_reduction <add>, %36, %cst_28 [0] : vector<8x72xf32> to vector<72xf32>
    %38 = vector.shape_cast %37 : vector<72xf32> to vector<1x72xf32>
    %39 = vector.extract_strided_slice %38 {offsets = [0, 0], sizes = [1, 8], strides = [1, 1]} : vector<1x72xf32> to vector<1x8xf32>
    %40 = vector.extract_strided_slice %38 {offsets = [0, 8], sizes = [1, 8], strides = [1, 1]} : vector<1x72xf32> to vector<1x8xf32>
    %41 = arith.addf %39, %40 : vector<1x8xf32>
    %42 = vector.extract_strided_slice %38 {offsets = [0, 16], sizes = [1, 8], strides = [1, 1]} : vector<1x72xf32> to vector<1x8xf32>
    %43 = arith.addf %41, %42 : vector<1x8xf32>
    %44 = vector.extract_strided_slice %38 {offsets = [0, 24], sizes = [1, 8], strides = [1, 1]} : vector<1x72xf32> to vector<1x8xf32>
    %45 = arith.addf %43, %44 : vector<1x8xf32>
    %46 = vector.extract_strided_slice %38 {offsets = [0, 32], sizes = [1, 8], strides = [1, 1]} : vector<1x72xf32> to vector<1x8xf32>
    %47 = arith.addf %45, %46 : vector<1x8xf32>
    %48 = vector.extract_strided_slice %38 {offsets = [0, 40], sizes = [1, 8], strides = [1, 1]} : vector<1x72xf32> to vector<1x8xf32>
    %49 = arith.addf %47, %48 : vector<1x8xf32>
    %50 = vector.extract_strided_slice %38 {offsets = [0, 48], sizes = [1, 8], strides = [1, 1]} : vector<1x72xf32> to vector<1x8xf32>
    %51 = arith.addf %49, %50 : vector<1x8xf32>
    %52 = vector.extract_strided_slice %38 {offsets = [0, 56], sizes = [1, 8], strides = [1, 1]} : vector<1x72xf32> to vector<1x8xf32>
    %53 = arith.addf %51, %52 : vector<1x8xf32>
    %54 = vector.extract_strided_slice %38 {offsets = [0, 64], sizes = [1, 8], strides = [1, 1]} : vector<1x72xf32> to vector<1x8xf32>
    %55 = arith.addf %53, %54 : vector<1x8xf32>
    %56 = arith.mulf %36, %34 : vector<8x72xf32>
    %cst_29 = arith.constant dense<0.000000e+00> : vector<72xf32>
    %57 = vector.multi_reduction <add>, %56, %cst_29 [0] : vector<8x72xf32> to vector<72xf32>
    %58 = vector.shape_cast %57 : vector<72xf32> to vector<1x72xf32>
    %59 = vector.extract_strided_slice %58 {offsets = [0, 0], sizes = [1, 8], strides = [1, 1]} : vector<1x72xf32> to vector<1x8xf32>
    %60 = vector.extract_strided_slice %58 {offsets = [0, 8], sizes = [1, 8], strides = [1, 1]} : vector<1x72xf32> to vector<1x8xf32>
    %61 = arith.addf %59, %60 : vector<1x8xf32>
    %62 = vector.extract_strided_slice %58 {offsets = [0, 16], sizes = [1, 8], strides = [1, 1]} : vector<1x72xf32> to vector<1x8xf32>
    %63 = arith.addf %61, %62 : vector<1x8xf32>
    %64 = vector.extract_strided_slice %58 {offsets = [0, 24], sizes = [1, 8], strides = [1, 1]} : vector<1x72xf32> to vector<1x8xf32>
    %65 = arith.addf %63, %64 : vector<1x8xf32>
    %66 = vector.extract_strided_slice %58 {offsets = [0, 32], sizes = [1, 8], strides = [1, 1]} : vector<1x72xf32> to vector<1x8xf32>
    %67 = arith.addf %65, %66 : vector<1x8xf32>
    %68 = vector.extract_strided_slice %58 {offsets = [0, 40], sizes = [1, 8], strides = [1, 1]} : vector<1x72xf32> to vector<1x8xf32>
    %69 = arith.addf %67, %68 : vector<1x8xf32>
    %70 = vector.extract_strided_slice %58 {offsets = [0, 48], sizes = [1, 8], strides = [1, 1]} : vector<1x72xf32> to vector<1x8xf32>
    %71 = arith.addf %69, %70 : vector<1x8xf32>
    %72 = vector.extract_strided_slice %58 {offsets = [0, 56], sizes = [1, 8], strides = [1, 1]} : vector<1x72xf32> to vector<1x8xf32>
    %73 = arith.addf %71, %72 : vector<1x8xf32>
    %74 = vector.extract_strided_slice %58 {offsets = [0, 64], sizes = [1, 8], strides = [1, 1]} : vector<1x72xf32> to vector<1x8xf32>
    %75 = arith.addf %73, %74 : vector<1x8xf32>
    %cst_30 = arith.constant 9.000000e+00 : f32
    %76 = arith.mulf %cst_30, %2 : f32
    %77 = vector.broadcast %76 : f32 to vector<1x8xf32>
    %78 = arith.divf %55, %77 : vector<1x8xf32>
    %79 = vector.broadcast %76 : f32 to vector<1x8xf32>
    %80 = arith.divf %75, %79 : vector<1x8xf32>
    %81 = arith.mulf %78, %78 : vector<1x8xf32>
    %82 = arith.subf %80, %81 : vector<1x8xf32>
    %cst_31 = arith.constant 0.000000e+00 : f32
    %83 = vector.broadcast %cst_31 : f32 to vector<1x8xf32>
    %84 = arith.maximumf %82, %83 : vector<1x8xf32>
    %cst_32 = arith.constant 9.99999974E-6 : f32
    %85 = vector.broadcast %cst_32 : f32 to vector<1x8xf32>
    %86 = arith.addf %84, %85 : vector<1x8xf32>
    %87 = math.rsqrt %86 : vector<1x8xf32>
    %88 = arith.mulf %22, %87 : vector<1x8xf32>
    %89 = arith.mulf %78, %88 : vector<1x8xf32>
    %90 = arith.subf %23, %89 : vector<1x8xf32>
    %91 = tpu.concatenate %88, %88, %88, %88, %88, %88, %88, %88, %88 in 1 : vector<1x8xf32>, vector<1x8xf32>, vector<1x8xf32>, vector<1x8xf32>, vector<1x8xf32>, vector<1x8xf32>, vector<1x8xf32>, vector<1x8xf32>, vector<1x8xf32> -> vector<1x72xf32>
    %92 = vector.broadcast %91 : vector<1x72xf32> to vector<8x72xf32>
    %93 = arith.mulf %34, %92 : vector<8x72xf32>
    %94 = tpu.concatenate %90, %90, %90, %90, %90, %90, %90, %90, %90 in 1 : vector<1x8xf32>, vector<1x8xf32>, vector<1x8xf32>, vector<1x8xf32>, vector<1x8xf32>, vector<1x8xf32>, vector<1x8xf32>, vector<1x8xf32>, vector<1x8xf32> -> vector<1x72xf32>
    %95 = vector.broadcast %94 : vector<1x72xf32> to vector<8x72xf32>
    %96 = arith.addf %93, %95 : vector<8x72xf32>
    %cst_33 = arith.constant 0.000000e+00 : f32
    %97 = vector.broadcast %cst_33 : f32 to vector<8x72xf32>
    %98 = arith.maximumf %96, %97 : vector<8x72xf32>
    %99 = arith.truncf %98 : vector<8x72xf32> to vector<8x72xbf16>
    %cst_34 = arith.constant dense<0.000000e+00> : vector<8x72xf32>
    %100 = tpu.matmul %99, %9, %cst_34 {dimension_numbers = #tpu.dot_dimension_numbers<[1], [0], [0], [1], [0, 0, 1, 1], [], []>} : vector<8x72xbf16>, vector<72x72xbf16>, vector<8x72xf32> -> vector<8x72xf32>
    %101 = vector.broadcast %26 : vector<1x72xf32> to vector<8x72xf32>
    %102 = arith.addf %100, %101 : vector<8x72xf32>
    %103 = arith.truncf %102 : vector<8x72xf32> to vector<8x72xbf16>
    %cst_35 = arith.constant dense<0.000000e+00> : vector<8x72xf32>
    %104 = tpu.matmul %103, %10, %cst_35 {dimension_numbers = #tpu.dot_dimension_numbers<[1], [0], [0], [1], [0, 0, 1, 1], [], []>} : vector<8x72xbf16>, vector<72x72xbf16>, vector<8x72xf32> -> vector<8x72xf32>
    %105 = arith.addf %98, %104 : vector<8x72xf32>
    %106 = vector.broadcast %7 : vector<8x1xf32> to vector<8x72xf32>
    %107 = arith.mulf %105, %106 : vector<8x72xf32>
    %cst_36 = arith.constant dense<0.000000e+00> : vector<72xf32>
    %108 = vector.multi_reduction <add>, %107, %cst_36 [0] : vector<8x72xf32> to vector<72xf32>
    %109 = vector.shape_cast %108 : vector<72xf32> to vector<1x72xf32>
    %110 = vector.extract_strided_slice %109 {offsets = [0, 0], sizes = [1, 8], strides = [1, 1]} : vector<1x72xf32> to vector<1x8xf32>
    %111 = vector.extract_strided_slice %109 {offsets = [0, 8], sizes = [1, 8], strides = [1, 1]} : vector<1x72xf32> to vector<1x8xf32>
    %112 = arith.addf %110, %111 : vector<1x8xf32>
    %113 = vector.extract_strided_slice %109 {offsets = [0, 16], sizes = [1, 8], strides = [1, 1]} : vector<1x72xf32> to vector<1x8xf32>
    %114 = arith.addf %112, %113 : vector<1x8xf32>
    %115 = vector.extract_strided_slice %109 {offsets = [0, 24], sizes = [1, 8], strides = [1, 1]} : vector<1x72xf32> to vector<1x8xf32>
    %116 = arith.addf %114, %115 : vector<1x8xf32>
    %117 = vector.extract_strided_slice %109 {offsets = [0, 32], sizes = [1, 8], strides = [1, 1]} : vector<1x72xf32> to vector<1x8xf32>
    %118 = arith.addf %116, %117 : vector<1x8xf32>
    %119 = vector.extract_strided_slice %109 {offsets = [0, 40], sizes = [1, 8], strides = [1, 1]} : vector<1x72xf32> to vector<1x8xf32>
    %120 = arith.addf %118, %119 : vector<1x8xf32>
    %121 = vector.extract_strided_slice %109 {offsets = [0, 48], sizes = [1, 8], strides = [1, 1]} : vector<1x72xf32> to vector<1x8xf32>
    %122 = arith.addf %120, %121 : vector<1x8xf32>
    %123 = vector.extract_strided_slice %109 {offsets = [0, 56], sizes = [1, 8], strides = [1, 1]} : vector<1x72xf32> to vector<1x8xf32>
    %124 = arith.addf %122, %123 : vector<1x8xf32>
    %125 = vector.extract_strided_slice %109 {offsets = [0, 64], sizes = [1, 8], strides = [1, 1]} : vector<1x72xf32> to vector<1x8xf32>
    %126 = arith.addf %124, %125 : vector<1x8xf32>
    %127 = arith.mulf %107, %105 : vector<8x72xf32>
    %cst_37 = arith.constant dense<0.000000e+00> : vector<72xf32>
    %128 = vector.multi_reduction <add>, %127, %cst_37 [0] : vector<8x72xf32> to vector<72xf32>
    %129 = vector.shape_cast %128 : vector<72xf32> to vector<1x72xf32>
    %130 = vector.extract_strided_slice %129 {offsets = [0, 0], sizes = [1, 8], strides = [1, 1]} : vector<1x72xf32> to vector<1x8xf32>
    %131 = vector.extract_strided_slice %129 {offsets = [0, 8], sizes = [1, 8], strides = [1, 1]} : vector<1x72xf32> to vector<1x8xf32>
    %132 = arith.addf %130, %131 : vector<1x8xf32>
    %133 = vector.extract_strided_slice %129 {offsets = [0, 16], sizes = [1, 8], strides = [1, 1]} : vector<1x72xf32> to vector<1x8xf32>
    %134 = arith.addf %132, %133 : vector<1x8xf32>
    %135 = vector.extract_strided_slice %129 {offsets = [0, 24], sizes = [1, 8], strides = [1, 1]} : vector<1x72xf32> to vector<1x8xf32>
    %136 = arith.addf %134, %135 : vector<1x8xf32>
    %137 = vector.extract_strided_slice %129 {offsets = [0, 32], sizes = [1, 8], strides = [1, 1]} : vector<1x72xf32> to vector<1x8xf32>
    %138 = arith.addf %136, %137 : vector<1x8xf32>
    %139 = vector.extract_strided_slice %129 {offsets = [0, 40], sizes = [1, 8], strides = [1, 1]} : vector<1x72xf32> to vector<1x8xf32>
    %140 = arith.addf %138, %139 : vector<1x8xf32>
    %141 = vector.extract_strided_slice %129 {offsets = [0, 48], sizes = [1, 8], strides = [1, 1]} : vector<1x72xf32> to vector<1x8xf32>
    %142 = arith.addf %140, %141 : vector<1x8xf32>
    %143 = vector.extract_strided_slice %129 {offsets = [0, 56], sizes = [1, 8], strides = [1, 1]} : vector<1x72xf32> to vector<1x8xf32>
    %144 = arith.addf %142, %143 : vector<1x8xf32>
    %145 = vector.extract_strided_slice %129 {offsets = [0, 64], sizes = [1, 8], strides = [1, 1]} : vector<1x72xf32> to vector<1x8xf32>
    %146 = arith.addf %144, %145 : vector<1x8xf32>
    %cst_38 = arith.constant 9.000000e+00 : f32
    %147 = arith.mulf %cst_38, %2 : f32
    %148 = vector.broadcast %147 : f32 to vector<1x8xf32>
    %149 = arith.divf %126, %148 : vector<1x8xf32>
    %150 = vector.broadcast %147 : f32 to vector<1x8xf32>
    %151 = arith.divf %146, %150 : vector<1x8xf32>
    %152 = arith.mulf %149, %149 : vector<1x8xf32>
    %153 = arith.subf %151, %152 : vector<1x8xf32>
    %cst_39 = arith.constant 0.000000e+00 : f32
    %154 = vector.broadcast %cst_39 : f32 to vector<1x8xf32>
    %155 = arith.maximumf %153, %154 : vector<1x8xf32>
    %cst_40 = arith.constant 9.99999974E-6 : f32
    %156 = vector.broadcast %cst_40 : f32 to vector<1x8xf32>
    %157 = arith.addf %155, %156 : vector<1x8xf32>
    %158 = math.rsqrt %157 : vector<1x8xf32>
    %159 = arith.mulf %24, %158 : vector<1x8xf32>
    %160 = arith.mulf %149, %159 : vector<1x8xf32>
    %161 = arith.subf %25, %160 : vector<1x8xf32>
    %162 = tpu.concatenate %159, %159, %159, %159, %159, %159, %159, %159, %159 in 1 : vector<1x8xf32>, vector<1x8xf32>, vector<1x8xf32>, vector<1x8xf32>, vector<1x8xf32>, vector<1x8xf32>, vector<1x8xf32>, vector<1x8xf32>, vector<1x8xf32> -> vector<1x72xf32>
    %163 = vector.broadcast %162 : vector<1x72xf32> to vector<8x72xf32>
    %164 = arith.mulf %105, %163 : vector<8x72xf32>
    %165 = tpu.concatenate %161, %161, %161, %161, %161, %161, %161, %161, %161 in 1 : vector<1x8xf32>, vector<1x8xf32>, vector<1x8xf32>, vector<1x8xf32>, vector<1x8xf32>, vector<1x8xf32>, vector<1x8xf32>, vector<1x8xf32>, vector<1x8xf32> -> vector<1x72xf32>
    %166 = vector.broadcast %165 : vector<1x72xf32> to vector<8x72xf32>
    %167 = arith.addf %164, %166 : vector<8x72xf32>
    %cst_41 = arith.constant 0.000000e+00 : f32
    %168 = vector.broadcast %cst_41 : f32 to vector<8x72xf32>
    %169 = arith.maximumf %167, %168 : vector<8x72xf32>
    %170 = arith.truncf %169 : vector<8x72xf32> to vector<8x72xbf16>
    %cst_42 = arith.constant dense<0.000000e+00> : vector<8x576xf32>
    %171 = tpu.matmul %170, %14, %cst_42 {dimension_numbers = #tpu.dot_dimension_numbers<[1], [0], [0], [1], [0, 0, 1, 1], [], []>} : vector<8x72xbf16>, vector<72x576xbf16>, vector<8x576xf32> -> vector<8x576xf32>
    %172 = vector.broadcast %7 : vector<8x1xf32> to vector<8x576xf32>
    %173 = arith.mulf %171, %172 : vector<8x576xf32>
    %cst_43 = arith.constant dense<0.000000e+00> : vector<576xf32>
    %174 = vector.multi_reduction <add>, %173, %cst_43 [0] : vector<8x576xf32> to vector<576xf32>
    %175 = vector.shape_cast %174 : vector<576xf32> to vector<1x576xf32>
    %176 = vector.extract_strided_slice %175 {offsets = [0, 0], sizes = [1, 64], strides = [1, 1]} : vector<1x576xf32> to vector<1x64xf32>
    %177 = vector.extract_strided_slice %175 {offsets = [0, 64], sizes = [1, 64], strides = [1, 1]} : vector<1x576xf32> to vector<1x64xf32>
    %178 = arith.addf %176, %177 : vector<1x64xf32>
    %179 = vector.extract_strided_slice %175 {offsets = [0, 128], sizes = [1, 64], strides = [1, 1]} : vector<1x576xf32> to vector<1x64xf32>
    %180 = arith.addf %178, %179 : vector<1x64xf32>
    %181 = vector.extract_strided_slice %175 {offsets = [0, 192], sizes = [1, 64], strides = [1, 1]} : vector<1x576xf32> to vector<1x64xf32>
    %182 = arith.addf %180, %181 : vector<1x64xf32>
    %183 = vector.extract_strided_slice %175 {offsets = [0, 256], sizes = [1, 64], strides = [1, 1]} : vector<1x576xf32> to vector<1x64xf32>
    %184 = arith.addf %182, %183 : vector<1x64xf32>
    %185 = vector.extract_strided_slice %175 {offsets = [0, 320], sizes = [1, 64], strides = [1, 1]} : vector<1x576xf32> to vector<1x64xf32>
    %186 = arith.addf %184, %185 : vector<1x64xf32>
    %187 = vector.extract_strided_slice %175 {offsets = [0, 384], sizes = [1, 64], strides = [1, 1]} : vector<1x576xf32> to vector<1x64xf32>
    %188 = arith.addf %186, %187 : vector<1x64xf32>
    %189 = vector.extract_strided_slice %175 {offsets = [0, 448], sizes = [1, 64], strides = [1, 1]} : vector<1x576xf32> to vector<1x64xf32>
    %190 = arith.addf %188, %189 : vector<1x64xf32>
    %191 = vector.extract_strided_slice %175 {offsets = [0, 512], sizes = [1, 64], strides = [1, 1]} : vector<1x576xf32> to vector<1x64xf32>
    %192 = arith.addf %190, %191 : vector<1x64xf32>
    %193 = arith.mulf %173, %171 : vector<8x576xf32>
    %cst_44 = arith.constant dense<0.000000e+00> : vector<576xf32>
    %194 = vector.multi_reduction <add>, %193, %cst_44 [0] : vector<8x576xf32> to vector<576xf32>
    %195 = vector.shape_cast %194 : vector<576xf32> to vector<1x576xf32>
    %196 = vector.extract_strided_slice %195 {offsets = [0, 0], sizes = [1, 64], strides = [1, 1]} : vector<1x576xf32> to vector<1x64xf32>
    %197 = vector.extract_strided_slice %195 {offsets = [0, 64], sizes = [1, 64], strides = [1, 1]} : vector<1x576xf32> to vector<1x64xf32>
    %198 = arith.addf %196, %197 : vector<1x64xf32>
    %199 = vector.extract_strided_slice %195 {offsets = [0, 128], sizes = [1, 64], strides = [1, 1]} : vector<1x576xf32> to vector<1x64xf32>
    %200 = arith.addf %198, %199 : vector<1x64xf32>
    %201 = vector.extract_strided_slice %195 {offsets = [0, 192], sizes = [1, 64], strides = [1, 1]} : vector<1x576xf32> to vector<1x64xf32>
    %202 = arith.addf %200, %201 : vector<1x64xf32>
    %203 = vector.extract_strided_slice %195 {offsets = [0, 256], sizes = [1, 64], strides = [1, 1]} : vector<1x576xf32> to vector<1x64xf32>
    %204 = arith.addf %202, %203 : vector<1x64xf32>
    %205 = vector.extract_strided_slice %195 {offsets = [0, 320], sizes = [1, 64], strides = [1, 1]} : vector<1x576xf32> to vector<1x64xf32>
    %206 = arith.addf %204, %205 : vector<1x64xf32>
    %207 = vector.extract_strided_slice %195 {offsets = [0, 384], sizes = [1, 64], strides = [1, 1]} : vector<1x576xf32> to vector<1x64xf32>
    %208 = arith.addf %206, %207 : vector<1x64xf32>
    %209 = vector.extract_strided_slice %195 {offsets = [0, 448], sizes = [1, 64], strides = [1, 1]} : vector<1x576xf32> to vector<1x64xf32>
    %210 = arith.addf %208, %209 : vector<1x64xf32>
    %211 = vector.extract_strided_slice %195 {offsets = [0, 512], sizes = [1, 64], strides = [1, 1]} : vector<1x576xf32> to vector<1x64xf32>
    %212 = arith.addf %210, %211 : vector<1x64xf32>
    %cst_45 = arith.constant 9.000000e+00 : f32
    %213 = arith.mulf %cst_45, %2 : f32
    %214 = vector.broadcast %213 : f32 to vector<1x64xf32>
    %215 = arith.divf %192, %214 : vector<1x64xf32>
    %216 = vector.broadcast %213 : f32 to vector<1x64xf32>
    %217 = arith.divf %212, %216 : vector<1x64xf32>
    %218 = arith.mulf %215, %215 : vector<1x64xf32>
    %219 = arith.subf %217, %218 : vector<1x64xf32>
    %cst_46 = arith.constant 0.000000e+00 : f32
    %220 = vector.broadcast %cst_46 : f32 to vector<1x64xf32>
    %221 = arith.maximumf %219, %220 : vector<1x64xf32>
    %cst_47 = arith.constant 9.99999974E-6 : f32
    %222 = vector.broadcast %cst_47 : f32 to vector<1x64xf32>
    %223 = arith.addf %221, %222 : vector<1x64xf32>
    %224 = math.rsqrt %223 : vector<1x64xf32>
    %225 = arith.mulf %17, %224 : vector<1x64xf32>
    %226 = arith.mulf %215, %225 : vector<1x64xf32>
    %227 = arith.subf %18, %226 : vector<1x64xf32>
    %228 = tpu.concatenate %225, %225, %225, %225, %225, %225, %225, %225, %225 in 1 : vector<1x64xf32>, vector<1x64xf32>, vector<1x64xf32>, vector<1x64xf32>, vector<1x64xf32>, vector<1x64xf32>, vector<1x64xf32>, vector<1x64xf32>, vector<1x64xf32> -> vector<1x576xf32>
    %229 = vector.broadcast %228 : vector<1x576xf32> to vector<8x576xf32>
    %230 = arith.mulf %171, %229 : vector<8x576xf32>
    %231 = tpu.concatenate %227, %227, %227, %227, %227, %227, %227, %227, %227 in 1 : vector<1x64xf32>, vector<1x64xf32>, vector<1x64xf32>, vector<1x64xf32>, vector<1x64xf32>, vector<1x64xf32>, vector<1x64xf32>, vector<1x64xf32>, vector<1x64xf32> -> vector<1x576xf32>
    %232 = vector.broadcast %231 : vector<1x576xf32> to vector<8x576xf32>
    %233 = arith.addf %230, %232 : vector<8x576xf32>
    %cst_48 = arith.constant 0.000000e+00 : f32
    %234 = vector.broadcast %cst_48 : f32 to vector<8x576xf32>
    %235 = arith.maximumf %233, %234 : vector<8x576xf32>
    %236 = arith.truncf %235 : vector<8x576xf32> to vector<8x576xbf16>
    %cst_49 = arith.constant dense<0.000000e+00> : vector<8x576xf32>
    %237 = tpu.matmul %236, %15, %cst_49 {dimension_numbers = #tpu.dot_dimension_numbers<[1], [0], [0], [1], [0, 0, 1, 1], [], []>} : vector<8x576xbf16>, vector<576x576xbf16>, vector<8x576xf32> -> vector<8x576xf32>
    %238 = vector.broadcast %21 : vector<1x576xf32> to vector<8x576xf32>
    %239 = arith.addf %237, %238 : vector<8x576xf32>
    %240 = arith.truncf %239 : vector<8x576xf32> to vector<8x576xbf16>
    %cst_50 = arith.constant dense<0.000000e+00> : vector<8x576xf32>
    %241 = tpu.matmul %240, %16, %cst_50 {dimension_numbers = #tpu.dot_dimension_numbers<[1], [0], [0], [1], [0, 0, 1, 1], [], []>} : vector<8x576xbf16>, vector<576x576xbf16>, vector<8x576xf32> -> vector<8x576xf32>
    %242 = arith.addf %235, %241 : vector<8x576xf32>
    %243 = vector.broadcast %7 : vector<8x1xf32> to vector<8x576xf32>
    %244 = arith.mulf %242, %243 : vector<8x576xf32>
    %cst_51 = arith.constant dense<0.000000e+00> : vector<576xf32>
    %245 = vector.multi_reduction <add>, %244, %cst_51 [0] : vector<8x576xf32> to vector<576xf32>
    %246 = vector.shape_cast %245 : vector<576xf32> to vector<1x576xf32>
    %247 = vector.extract_strided_slice %246 {offsets = [0, 0], sizes = [1, 64], strides = [1, 1]} : vector<1x576xf32> to vector<1x64xf32>
    %248 = vector.extract_strided_slice %246 {offsets = [0, 64], sizes = [1, 64], strides = [1, 1]} : vector<1x576xf32> to vector<1x64xf32>
    %249 = arith.addf %247, %248 : vector<1x64xf32>
    %250 = vector.extract_strided_slice %246 {offsets = [0, 128], sizes = [1, 64], strides = [1, 1]} : vector<1x576xf32> to vector<1x64xf32>
    %251 = arith.addf %249, %250 : vector<1x64xf32>
    %252 = vector.extract_strided_slice %246 {offsets = [0, 192], sizes = [1, 64], strides = [1, 1]} : vector<1x576xf32> to vector<1x64xf32>
    %253 = arith.addf %251, %252 : vector<1x64xf32>
    %254 = vector.extract_strided_slice %246 {offsets = [0, 256], sizes = [1, 64], strides = [1, 1]} : vector<1x576xf32> to vector<1x64xf32>
    %255 = arith.addf %253, %254 : vector<1x64xf32>
    %256 = vector.extract_strided_slice %246 {offsets = [0, 320], sizes = [1, 64], strides = [1, 1]} : vector<1x576xf32> to vector<1x64xf32>
    %257 = arith.addf %255, %256 : vector<1x64xf32>
    %258 = vector.extract_strided_slice %246 {offsets = [0, 384], sizes = [1, 64], strides = [1, 1]} : vector<1x576xf32> to vector<1x64xf32>
    %259 = arith.addf %257, %258 : vector<1x64xf32>
    %260 = vector.extract_strided_slice %246 {offsets = [0, 448], sizes = [1, 64], strides = [1, 1]} : vector<1x576xf32> to vector<1x64xf32>
    %261 = arith.addf %259, %260 : vector<1x64xf32>
    %262 = vector.extract_strided_slice %246 {offsets = [0, 512], sizes = [1, 64], strides = [1, 1]} : vector<1x576xf32> to vector<1x64xf32>
    %263 = arith.addf %261, %262 : vector<1x64xf32>
    %264 = arith.mulf %244, %242 : vector<8x576xf32>
    %cst_52 = arith.constant dense<0.000000e+00> : vector<576xf32>
    %265 = vector.multi_reduction <add>, %264, %cst_52 [0] : vector<8x576xf32> to vector<576xf32>
    %266 = vector.shape_cast %265 : vector<576xf32> to vector<1x576xf32>
    %267 = vector.extract_strided_slice %266 {offsets = [0, 0], sizes = [1, 64], strides = [1, 1]} : vector<1x576xf32> to vector<1x64xf32>
    %268 = vector.extract_strided_slice %266 {offsets = [0, 64], sizes = [1, 64], strides = [1, 1]} : vector<1x576xf32> to vector<1x64xf32>
    %269 = arith.addf %267, %268 : vector<1x64xf32>
    %270 = vector.extract_strided_slice %266 {offsets = [0, 128], sizes = [1, 64], strides = [1, 1]} : vector<1x576xf32> to vector<1x64xf32>
    %271 = arith.addf %269, %270 : vector<1x64xf32>
    %272 = vector.extract_strided_slice %266 {offsets = [0, 192], sizes = [1, 64], strides = [1, 1]} : vector<1x576xf32> to vector<1x64xf32>
    %273 = arith.addf %271, %272 : vector<1x64xf32>
    %274 = vector.extract_strided_slice %266 {offsets = [0, 256], sizes = [1, 64], strides = [1, 1]} : vector<1x576xf32> to vector<1x64xf32>
    %275 = arith.addf %273, %274 : vector<1x64xf32>
    %276 = vector.extract_strided_slice %266 {offsets = [0, 320], sizes = [1, 64], strides = [1, 1]} : vector<1x576xf32> to vector<1x64xf32>
    %277 = arith.addf %275, %276 : vector<1x64xf32>
    %278 = vector.extract_strided_slice %266 {offsets = [0, 384], sizes = [1, 64], strides = [1, 1]} : vector<1x576xf32> to vector<1x64xf32>
    %279 = arith.addf %277, %278 : vector<1x64xf32>
    %280 = vector.extract_strided_slice %266 {offsets = [0, 448], sizes = [1, 64], strides = [1, 1]} : vector<1x576xf32> to vector<1x64xf32>
    %281 = arith.addf %279, %280 : vector<1x64xf32>
    %282 = vector.extract_strided_slice %266 {offsets = [0, 512], sizes = [1, 64], strides = [1, 1]} : vector<1x576xf32> to vector<1x64xf32>
    %283 = arith.addf %281, %282 : vector<1x64xf32>
    %cst_53 = arith.constant 9.000000e+00 : f32
    %284 = arith.mulf %cst_53, %2 : f32
    %285 = vector.broadcast %284 : f32 to vector<1x64xf32>
    %286 = arith.divf %263, %285 : vector<1x64xf32>
    %287 = vector.broadcast %284 : f32 to vector<1x64xf32>
    %288 = arith.divf %283, %287 : vector<1x64xf32>
    %289 = arith.mulf %286, %286 : vector<1x64xf32>
    %290 = arith.subf %288, %289 : vector<1x64xf32>
    %cst_54 = arith.constant 0.000000e+00 : f32
    %291 = vector.broadcast %cst_54 : f32 to vector<1x64xf32>
    %292 = arith.maximumf %290, %291 : vector<1x64xf32>
    %cst_55 = arith.constant 9.99999974E-6 : f32
    %293 = vector.broadcast %cst_55 : f32 to vector<1x64xf32>
    %294 = arith.addf %292, %293 : vector<1x64xf32>
    %295 = math.rsqrt %294 : vector<1x64xf32>
    %296 = arith.mulf %19, %295 : vector<1x64xf32>
    %297 = arith.mulf %286, %296 : vector<1x64xf32>
    %298 = arith.subf %20, %297 : vector<1x64xf32>
    %299 = tpu.concatenate %296, %296, %296, %296, %296, %296, %296, %296, %296 in 1 : vector<1x64xf32>, vector<1x64xf32>, vector<1x64xf32>, vector<1x64xf32>, vector<1x64xf32>, vector<1x64xf32>, vector<1x64xf32>, vector<1x64xf32>, vector<1x64xf32> -> vector<1x576xf32>
    %300 = vector.broadcast %299 : vector<1x576xf32> to vector<8x576xf32>
    %301 = arith.mulf %242, %300 : vector<8x576xf32>
    %302 = tpu.concatenate %298, %298, %298, %298, %298, %298, %298, %298, %298 in 1 : vector<1x64xf32>, vector<1x64xf32>, vector<1x64xf32>, vector<1x64xf32>, vector<1x64xf32>, vector<1x64xf32>, vector<1x64xf32>, vector<1x64xf32>, vector<1x64xf32> -> vector<1x576xf32>
    %303 = vector.broadcast %302 : vector<1x576xf32> to vector<8x576xf32>
    %304 = arith.addf %301, %303 : vector<8x576xf32>
    %cst_56 = arith.constant 0.000000e+00 : f32
    %305 = vector.broadcast %cst_56 : f32 to vector<8x576xf32>
    %306 = arith.maximumf %304, %305 : vector<8x576xf32>
    %307 = arith.truncf %306 : vector<8x576xf32> to vector<8x576xbf16>
    %cst_57 = arith.constant dense<0.000000e+00> : vector<8x64xf32>
    %308 = tpu.matmul %307, %11, %cst_57 {dimension_numbers = #tpu.dot_dimension_numbers<[1], [0], [0], [1], [0, 0, 1, 1], [], []>} : vector<8x576xbf16>, vector<576x64xbf16>, vector<8x64xf32> -> vector<8x64xf32>
    %309 = vector.broadcast %27 : vector<1x64xf32> to vector<8x64xf32>
    %310 = arith.addf %308, %309 : vector<8x64xf32>
    %311 = arith.truncf %310 : vector<8x64xf32> to vector<8x64xbf16>
    %cst_58 = arith.constant dense<0.000000e+00> : vector<8x16xf32>
    %312 = tpu.matmul %311, %12, %cst_58 {dimension_numbers = #tpu.dot_dimension_numbers<[1], [0], [0], [1], [0, 0, 1, 1], [], []>} : vector<8x64xbf16>, vector<64x16xbf16>, vector<8x16xf32> -> vector<8x16xf32>
    %313 = vector.broadcast %28 : vector<1x16xf32> to vector<8x16xf32>
    %314 = arith.addf %312, %313 : vector<8x16xf32>
    %cst_59 = arith.constant 0.000000e+00 : f32
    %315 = vector.broadcast %cst_59 : f32 to vector<8x16xf32>
    %316 = arith.maximumf %314, %315 : vector<8x16xf32>
    %317 = vector.broadcast %7 : vector<8x1xf32> to vector<8x16xf32>
    %318 = arith.mulf %316, %317 : vector<8x16xf32>
    %cst_60 = arith.constant dense<0.000000e+00> : vector<16xf32>
    %319 = vector.multi_reduction <add>, %318, %cst_60 [0] : vector<8x16xf32> to vector<16xf32>
    %320 = vector.shape_cast %319 : vector<16xf32> to vector<1x16xf32>
    %321 = vector.broadcast %2 : f32 to vector<1x16xf32>
    %322 = arith.divf %320, %321 : vector<1x16xf32>
    %323 = vector.broadcast %322 : vector<1x16xf32> to vector<8x16xf32>
    %324 = arith.subf %316, %323 : vector<8x16xf32>
    %325 = arith.mulf %324, %324 : vector<8x16xf32>
    %326 = vector.broadcast %7 : vector<8x1xf32> to vector<8x16xf32>
    %327 = arith.mulf %325, %326 : vector<8x16xf32>
    %cst_61 = arith.constant dense<0.000000e+00> : vector<16xf32>
    %328 = vector.multi_reduction <add>, %327, %cst_61 [0] : vector<8x16xf32> to vector<16xf32>
    %329 = vector.shape_cast %328 : vector<16xf32> to vector<1x16xf32>
    %330 = vector.broadcast %2 : f32 to vector<1x16xf32>
    %331 = arith.divf %329, %330 : vector<1x16xf32>
    %cst_62 = arith.constant 9.99999974E-6 : f32
    %332 = vector.broadcast %cst_62 : f32 to vector<1x16xf32>
    %333 = arith.addf %331, %332 : vector<1x16xf32>
    %334 = math.rsqrt %333 : vector<1x16xf32>
    %335 = vector.broadcast %334 : vector<1x16xf32> to vector<8x16xf32>
    %336 = arith.mulf %324, %335 : vector<8x16xf32>
    %337 = vector.broadcast %29 : vector<1x16xf32> to vector<8x16xf32>
    %338 = arith.mulf %336, %337 : vector<8x16xf32>
    %339 = vector.broadcast %30 : vector<1x16xf32> to vector<8x16xf32>
    %340 = arith.addf %338, %339 : vector<8x16xf32>
    %341 = arith.truncf %340 : vector<8x16xf32> to vector<8x16xbf16>
    %cst_63 = arith.constant dense<0.000000e+00> : vector<8x128xf32>
    %342 = tpu.matmul %341, %13, %cst_63 {dimension_numbers = #tpu.dot_dimension_numbers<[1], [0], [0], [1], [0, 0, 1, 1], [], []>} : vector<8x16xbf16>, vector<16x128xbf16>, vector<8x128xf32> -> vector<8x128xf32>
    %343 = vector.broadcast %31 : vector<1x128xf32> to vector<8x128xf32>
    %344 = arith.addf %342, %343 : vector<8x128xf32>
    %345 = tpu.iota {dimensions = array<i32: 1>} : vector<8x128xi32>
    %c9_i32 = arith.constant 9 : i32
    %346 = vector.broadcast %c9_i32 : i32 to vector<8x128xi32>
    %347 = arith.cmpi eq, %345, %346 : vector<8x128xi32>
    %cst_64 = arith.constant 5.000000e-01 : f32
    %348 = vector.broadcast %cst_64 : f32 to vector<8x128xf32>
    %349 = arith.mulf %348, %344 : vector<8x128xf32>
    %350 = arith.select %347, %349, %344 : vector<8x128xi1>, vector<8x128xf32>
    %351 = math.tanh %350 : vector<8x128xf32>
    %cst_65 = arith.constant 5.000000e-01 : f32
    %352 = vector.broadcast %cst_65 : f32 to vector<8x128xf32>
    %353 = arith.mulf %352, %351 : vector<8x128xf32>
    %cst_66 = arith.constant 5.000000e-01 : f32
    %354 = vector.broadcast %cst_66 : f32 to vector<8x128xf32>
    %355 = arith.addf %353, %354 : vector<8x128xf32>
    %356 = arith.select %347, %355, %351 : vector<8x128xi1>, vector<8x128xf32>
    %c0_67 = arith.constant 0 : index
    %c0_68 = arith.constant 0 : index
    %357 = vector.load %arg6[%c0_67, %c0_68] : memref<8x128xf32, #tpu.memory_space<vmem>>, vector<8x128xf32>
    tpu.vector_store %arg6[%c0_67, %c0_68], %356 {strides = array<i32>} : memref<8x128xf32, #tpu.memory_space<vmem>>, vector<8x128xf32>,
    return
  }
  func.func @transform_0(%arg0: i32, %arg1: memref<1xi32, #tpu.memory_space<smem>>) -> (i32, i32) {
    %c0_i32 = arith.constant 0 : i32
    %c0_i32_0 = arith.constant 0 : i32
    return %arg0, %c0_i32 : i32, i32
  }
  func.func @transform_1(%arg0: i32, %arg1: memref<1xi32, #tpu.memory_space<smem>>) -> (i32, i32) {
    %c0_i32 = arith.constant 0 : i32
    %c0_i32_0 = arith.constant 0 : i32
    %c0_i32_1 = arith.constant 0 : i32
    return %c0_i32, %c0_i32_0 : i32, i32
  }
  func.func @transform_2(%arg0: i32, %arg1: memref<1xi32, #tpu.memory_space<smem>>) -> (i32, i32) {
    %c0_i32 = arith.constant 0 : i32
    %c0_i32_0 = arith.constant 0 : i32
    %c0_i32_1 = arith.constant 0 : i32
    return %c0_i32, %c0_i32_0 : i32, i32
  }
  func.func @transform_3(%arg0: i32, %arg1: memref<1xi32, #tpu.memory_space<smem>>) -> (i32, i32) {
    %c0_i32 = arith.constant 0 : i32
    %c0_i32_0 = arith.constant 0 : i32
    %c0_i32_1 = arith.constant 0 : i32
    return %c0_i32, %c0_i32_0 : i32, i32
  }
  func.func @transform_4(%arg0: i32, %arg1: memref<1xi32, #tpu.memory_space<smem>>) -> (i32, i32) {
    %c0_i32 = arith.constant 0 : i32
    %c0_i32_0 = arith.constant 0 : i32
    return %arg0, %c0_i32 : i32, i32
  }
}

</mosaic_0001>

<llo_original>
// kernel: tpu_custom_call.1
$region0: #{tpu_custom_call.1}
  #allocation0 [shape = 'u32[]', space=smem, size = 0x4, offset = 0x4, fixed_abs, tag = 'smem constant byte address 0x4 - core index']
  #allocation1 [shape = 'u32[72,128]{1,0:T(1,128)}', space=vmem, size = 0x9000, scoped, tag = 'internal scratch']
  #allocation2 [shape = 's32[1]{0}', space=sflag, size = 0x4, scoped, tag = 'scoped memory for tpu_custom_call.1']
  #allocation3 [shape = 's32[1]{0:T(128)S(6)}', space=smem, size = 0x200, scoped, tag = 'prefetched SMEM operand 0']
  %s0 = inlined_call_operand.<no memory space> [shape: s32[1], index: 0, kind: input, shape index: {}]
  %s1 = inlined_call_operand.vmem [shape: f32[8,36], index: 1, kind: input, shape index: {}]
  %s2 = inlined_call_operand.vmem [shape: bf16[1232,576], index: 2, kind: input, shape index: {}]
  %s3 = inlined_call_operand.vmem [shape: bf16[864,128], index: 3, kind: input, shape index: {}]
  %s4 = inlined_call_operand.vmem [shape: f32[24,576], index: 4, kind: input, shape index: {}]
  %s5 = inlined_call_operand.hbm [shape: f32[8,128], index: 5, kind: output, shape index: {}]
  %s6 = sld [smem:[#allocation0]]
  $region26: #{tpu_custom_call.1} parent=0
    _
  %s8 = ssub.s32 1, %s6
  %s9 = scalar_select 0, %s8, %s6
  %10 = sst [smem:[#allocation3]] %s0
  $region1: #{tpu_custom_call.1} parent=0
    #allocation4 [shape = 'u8[4096]{0}', space=vmem, size = 0x1000, scoped, tag = 'output window, operand 0, single buffered']
    #allocation5 [shape = 's32[1]{0}', space=sflag, size = 0x4, scoped, tag = 'scoped memory for tpu_custom_call.1']
    %11 = vsyncpa [#allocation5], 0
    // Predicated region
    $region2: #{tpu_custom_call.1} parent=1 // pred_check
      _
    $region3: #{tpu_custom_call.1} parent=1 // pred_check_branch
      %13 = sbr.rel (0) target = $region5
    $region4: #{tpu_custom_call.1} parent=1 // pred_region
      _
    $region5: #{tpu_custom_call.1} parent=1 // pred_fallthru
      _
    // Predicated region
    $region6: #{tpu_custom_call.1} parent=1 // pred_check
      _
    $region7: #{tpu_custom_call.1} parent=1 // pred_check_branch
      %15 = sbr.rel (0) target = $region9
    $region8: #{tpu_custom_call.1} parent=1 // pred_region
      _
    $region9: #{tpu_custom_call.1} parent=1 // pred_fallthru
      _
    // Predicated region
    $region10: #{tpu_custom_call.1} parent=1 // pred_check
      _
    $region11: #{tpu_custom_call.1} parent=1 // pred_check_branch
      %17 = sbr.rel (0) target = $region13
    $region12: #{tpu_custom_call.1} parent=1 // pred_region
      _
    $region13: #{tpu_custom_call.1} parent=1 // pred_fallthru
      _
    // Predicated region
    $region14: #{tpu_custom_call.1} parent=1 // pred_check
      _
    $region15: #{tpu_custom_call.1} parent=1 // pred_check_branch
      %19 = sbr.rel (0) target = $region17
    $region16: #{tpu_custom_call.1} parent=1 // pred_region
      _
    $region17: #{tpu_custom_call.1} parent=1 // pred_fallthru
      _
    %s21 = sld [smem:[#allocation3]]
    %s22 = scvt.s32.f32 %s21
    %v23 = vlaneseq
    %v24 = vshrl.u32 %v23, 7
    %v25 = vstv %s21
    %vm26 = vcmp.lt.s32.totalorder %v24, %v25
    %v27 = vsel %vm26, 1, 0
    %v28 = vcvt.s32.f32 %v27
    %v29 = vld [vmem:[%s3] sm:$0xf]
    %v30 = vld [vmem:[%s3 + $0x4] sm:$0xf]
    %v31 = vld [vmem:[%s3 + $0x8] sm:$0xf]
    %v32 = vld [vmem:[%s3 + $0xc] sm:$0xf]
    %v33 = vld [vmem:[%s3 + $0x10] sm:$0x3]
    %v34 = vld [vmem:[%s3 + $0x18] sm:$0xf]
    %v35 = vld [vmem:[%s3 + $0x1c] sm:$0xf]
    %v36 = vld [vmem:[%s3 + $0x20] sm:$0xf]
    %v37 = vld [vmem:[%s3 + $0x24] sm:$0xf]
    %v38 = vld [vmem:[%s3 + $0x28] sm:$0xf]
    %v39 = vld [vmem:[%s3 + $0x2c] sm:$0xf]
    %v40 = vld [vmem:[%s3 + $0x30] sm:$0xf]
    %v41 = vld [vmem:[%s3 + $0x34] sm:$0xf]
    %v42 = vld [vmem:[%s3 + $0x38] sm:$0xf]
    %v43 = vld [vmem:[%s3 + $0x40] sm:$0xf]
    %v44 = vld [vmem:[%s3 + $0x44] sm:$0xf]
    %v45 = vld [vmem:[%s3 + $0x48] sm:$0xf]
    %v46 = vld [vmem:[%s3 + $0x4c] sm:$0xf]
    %v47 = vld [vmem:[%s3 + $0x50] sm:$0xf]
    %v48 = vld [vmem:[%s3 + $0x54] sm:$0xf]
    %v49 = vld [vmem:[%s3 + $0x58] sm:$0xf]
    %v50 = vld [vmem:[%s3 + $0x5c] sm:$0xf]
    %v51 = vld [vmem:[%s3 + $0x60] sm:$0xf]
    %v52 = vld [vmem:[%s3 + $0x68] sm:$0xf]
    %v53 = vld [vmem:[%s3 + $0x6c] sm:$0xf]
    %v54 = vld [vmem:[%s3 + $0x70] sm:$0xf]
    %v55 = vld [vmem:[%s3 + $0x74] sm:$0xf]
    %v56 = vld [vmem:[%s3 + $0x78] sm:$0xf]
    %v57 = vld [vmem:[%s3 + $0x7c] sm:$0xf]
    %v58 = vld [vmem:[%s3 + $0x80] sm:$0xf]
    %v59 = vld [vmem:[%s3 + $0x84] sm:$0xf]
    %v60 = vld [vmem:[%s3 + $0x88] sm:$0xf]
    %v61 = vld [vmem:[%s3 + $0x8c] sm:$0xf]
    %v62 = vld [vmem:[%s3 + $0x90] sm:$0xf]
    %v63 = vld [vmem:[%s3 + $0x94] sm:$0xf]
    %v64 = vld [vmem:[%s3 + $0x98] sm:$0xf]
    %v65 = vld [vmem:[%s3 + $0x9c] sm:$0xf]
    %v66 = vld [vmem:[%s3 + $0xa0] sm:$0xf]
    %v67 = vld [vmem:[%s3 + $0xa4] sm:$0xf]
    %v68 = vld [vmem:[%s3 + $0xa8] sm:$0xf]
    %v69 = vld [vmem:[%s3 + $0xac] sm:$0xf]
    %v70 = vld [vmem:[%s3 + $0xb0] sm:$0xf]
    %v71 = vld [vmem:[%s3 + $0xb4] sm:$0xf]
    %v72 = vld [vmem:[%s3 + $0xb8] sm:$0xf]
    %v73 = vld [vmem:[%s3 + $0xbc] sm:$0xf]
    %v74 = vld [vmem:[%s3 + $0xc0] sm:$0xf]
    %v75 = vld [vmem:[%s3 + $0xc4] sm:$0xf]
    %v76 = vld [vmem:[%s3 + $0xc8] sm:$0xf]
    %v77 = vld [vmem:[%s3 + $0xcc] sm:$0xf]
    %v78 = vld [vmem:[%s3 + $0xd0] sm:$0xf]
    %v79 = vld [vmem:[%s3 + $0xd4] sm:$0xf]
    %v80 = vld [vmem:[%s3 + $0xd8] sm:$0xf]
    %v81 = vld [vmem:[%s3 + $0xdc] sm:$0xf]
    %v82 = vld [vmem:[%s3 + $0xe0] sm:$0xf]
    %v83 = vld [vmem:[%s3 + $0xe4] sm:$0xf]
    %v84 = vld [vmem:[%s3 + $0xe8] sm:$0xf]
    %v85 = vld [vmem:[%s3 + $0xec] sm:$0xf]
    %v86 = vld [vmem:[%s3 + $0xf0] sm:$0xf]
    %v87 = vld [vmem:[%s3 + $0xf4] sm:$0xf]
    %v88 = vld [vmem:[%s3 + $0xf8] sm:$0xf]
    %v89 = vld [vmem:[%s3 + $0xfc] sm:$0xf]
    %v90 = vld [vmem:[%s3 + $0x100] sm:$0xf]
    %v91 = vld [vmem:[%s3 + $0x104] sm:$0xf]
    %v92 = vld [vmem:[%s3 + $0x108] sm:$0xf]
    %v93 = vld [vmem:[%s3 + $0x10c] sm:$0xf]
    %v94 = vld [vmem:[%s3 + $0x110] sm:$0xf]
    %v95 = vld [vmem:[%s3 + $0x114] sm:$0xf]
    %v96 = vld [vmem:[%s3 + $0x118] sm:$0xf]
    %v97 = vld [vmem:[%s3 + $0x11c] sm:$0xf]
    %v98 = vld [vmem:[%s3 + $0x120] sm:$0xf]
    %v99 = vld [vmem:[%s3 + $0x124] sm:$0xf]
    %v100 = vld [vmem:[%s3 + $0x128] sm:$0xf]
    %v101 = vld [vmem:[%s3 + $0x12c] sm:$0xf]
    %v102 = vld [vmem:[%s3 + $0x130] sm:$0xf]
    %v103 = vld [vmem:[%s3 + $0x134] sm:$0xf]
    %v104 = vld [vmem:[%s3 + $0x138] sm:$0xf]
    %v105 = vld [vmem:[%s3 + $0x13c] sm:$0xf]
    %v106 = vld [vmem:[%s3 + $0x140] sm:$0xf]
    %v107 = vld [vmem:[%s3 + $0x144] sm:$0xf]
    %v108 = vld [vmem:[%s3 + $0x148] sm:$0xf]
    %v109 = vld [vmem:[%s3 + $0x14c] sm:$0xf]
    %v110 = vld [vmem:[%s3 + $0x150] sm:$0xf]
    %v111 = vld [vmem:[%s3 + $0x154] sm:$0xf]
    %v112 = vld [vmem:[%s3 + $0x158] sm:$0xf]
    %v113 = vld [vmem:[%s3 + $0x15c] sm:$0xf]
    %v114 = vld [vmem:[%s3 + $0x160] sm:$0xf]
    %v115 = vld [vmem:[%s3 + $0x164] sm:$0xf]
    %v116 = vld [vmem:[%s3 + $0x168] sm:$0xf]
    %v117 = vld [vmem:[%s3 + $0x16c] sm:$0xf]
    %v118 = vld [vmem:[%s3 + $0x170] sm:$0xf]
    %v119 = vld [vmem:[%s3 + $0x174] sm:$0xf]
    %v120 = vld [vmem:[%s3 + $0x178] sm:$0xf]
    %v121 = vld [vmem:[%s3 + $0x17c] sm:$0xf]
    %v122 = vld [vmem:[%s3 + $0x180] sm:$0xf]
    %v123 = vld [vmem:[%s3 + $0x184] sm:$0xf]
    %v124 = vld [vmem:[%s3 + $0x188] sm:$0xf]
    %v125 = vld [vmem:[%s3 + $0x18c] sm:$0xf]
    %v126 = vld [vmem:[%s3 + $0x190] sm:$0xf]
    %v127 = vld [vmem:[%s3 + $0x194] sm:$0xf]
    %v128 = vld [vmem:[%s3 + $0x198] sm:$0xf]
    %v129 = vld [vmem:[%s3 + $0x19c] sm:$0xf]
    %v130 = vld [vmem:[%s3 + $0x1a0] sm:$0xf]
    %v131 = vld [vmem:[%s3 + $0x1a4] sm:$0xf]
    %v132 = vld [vmem:[%s3 + $0x1a8] sm:$0xf]
    %v133 = vld [vmem:[%s3 + $0x1ac] sm:$0xf]
    %v134 = vld [vmem:[%s2] sm:$0xff]
    %v135 = vld [vmem:[%s2 + $0x8] sm:$0xff]
    %v136 = vld [vmem:[%s2 + $0x10] sm:$0xf]
    %v137 = vld [vmem:[%s2 + $0x14] sm:$0xff]
    %v138 = vld [vmem:[%s2 + $0x1c] sm:$0xff]
    %v139 = vld [vmem:[%s2 + $0x24] sm:$0xf]
    %v140 = vld [vmem:[%s2 + $0x28] sm:$0xff]
    %v141 = vld [vmem:[%s2 + $0x30] sm:$0xff]
    %v142 = vld [vmem:[%s2 + $0x38] sm:$0xf]
    %v143 = vld [vmem:[%s2 + $0x3c] sm:$0xff]
    %v144 = vld [vmem:[%s2 + $0x44] sm:$0xff]
    %v145 = vld [vmem:[%s2 + $0x4c] sm:$0xf]
    %v146 = vld [vmem:[%s2 + $0x50] sm:$0xff]
    %v147 = vld [vmem:[%s2 + $0x58] sm:$0xff]
    %v148 = vld [vmem:[%s2 + $0x60] sm:$0xf]
    %v149 = vld [vmem:[%s2 + $0x64] sm:$0xff]
    %v150 = vld [vmem:[%s2 + $0x6c] sm:$0xff]
    %v151 = vld [vmem:[%s2 + $0x74] sm:$0xf]
    %v152 = vld [vmem:[%s2 + $0x78] sm:$0xff]
    %v153 = vld [vmem:[%s2 + $0x80] sm:$0xff]
    %v154 = vld [vmem:[%s2 + $0x88] sm:$0xf]
    %v155 = vld [vmem:[%s2 + $0x8c] sm:$0xff]
    %v156 = vld [vmem:[%s2 + $0x94] sm:$0xff]
    %v157 = vld [vmem:[%s2 + $0x9c] sm:$0xf]
    %v158 = vld [vmem:[%s2 + $0xa0] sm:$0xff]
    %v159 = vld [vmem:[%s2 + $0xa8] sm:$0xff]
    %v160 = vld [vmem:[%s2 + $0xb0] sm:$0xf]
    %v161 = vld [vmem:[%s2 + $0xc8] sm:$0xff]
    %v162 = vld [vmem:[%s2 + $0xd0] sm:$0xff]
    %v163 = vld [vmem:[%s2 + $0xd8] sm:$0xf]
    %v164 = vld [vmem:[%s2 + $0xdc] sm:$0xff]
    %v165 = vld [vmem:[%s2 + $0xe4] sm:$0xff]
    %v166 = vld [vmem:[%s2 + $0xec] sm:$0xf]
    %v167 = vld [vmem:[%s2 + $0xf0] sm:$0xff]
    %v168 = vld [vmem:[%s2 + $0xf8] sm:$0xff]
    %v169 = vld [vmem:[%s2 + $0x100] sm:$0xf]
    %v170 = vld [vmem:[%s2 + $0x104] sm:$0xff]
    %v171 = vld [vmem:[%s2 + $0x10c] sm:$0xff]
    %v172 = vld [vmem:[%s2 + $0x114] sm:$0xf]
    %v173 = vld [vmem:[%s2 + $0x118] sm:$0xff]
    %v174 = vld [vmem:[%s2 + $0x120] sm:$0xff]
    %v175 = vld [vmem:[%s2 + $0x128] sm:$0xf]
    %v176 = vld [vmem:[%s2 + $0x12c] sm:$0xff]
    %v177 = vld [vmem:[%s2 + $0x134] sm:$0xff]
    %v178 = vld [vmem:[%s2 + $0x13c] sm:$0xf]
    %v179 = vld [vmem:[%s2 + $0x140] sm:$0xff]
    %v180 = vld [vmem:[%s2 + $0x148] sm:$0xff]
    %v181 = vld [vmem:[%s2 + $0x150] sm:$0xf]
    %v182 = vld [vmem:[%s2 + $0x154] sm:$0xff]
    %v183 = vld [vmem:[%s2 + $0x15c] sm:$0xff]
    %v184 = vld [vmem:[%s2 + $0x164] sm:$0xf]
    %v185 = vld [vmem:[%s2 + $0x168] sm:$0xff]
    %v186 = vld [vmem:[%s2 + $0x170] sm:$0xff]
    %v187 = vld [vmem:[%s2 + $0x178] sm:$0xf]
    %v188 = vld [vmem:[%s2 + $0x17c] sm:$0xff]
    %v189 = vld [vmem:[%s2 + $0x184] sm:$0xff]
    %v190 = vld [vmem:[%s2 + $0x18c] sm:$0xf]
    %v191 = vld [vmem:[%s2 + $0x190] sm:$0xff]
    %v192 = vld [vmem:[%s2 + $0x198] sm:$0xff]
    %v193 = vld [vmem:[%s2 + $0x1a0] sm:$0xf]
    %v194 = vld [vmem:[%s2 + $0x1a4] sm:$0xff]
    %v195 = vld [vmem:[%s2 + $0x1ac] sm:$0xff]
    %v196 = vld [vmem:[%s2 + $0x1b4] sm:$0xf]
    %v197 = vld [vmem:[%s2 + $0x1b8] sm:$0xff]
    %v198 = vld [vmem:[%s2 + $0x1c0] sm:$0xff]
    %v199 = vld [vmem:[%s2 + $0x1c8] sm:$0xf]
    %v200 = vld [vmem:[%s2 + $0x1cc] sm:$0xff]
    %v201 = vld [vmem:[%s2 + $0x1d4] sm:$0xff]
    %v202 = vld [vmem:[%s2 + $0x1dc] sm:$0xf]
    %v203 = vld [vmem:[%s2 + $0x1e0] sm:$0xff]
    %v204 = vld [vmem:[%s2 + $0x1e8] sm:$0xff]
    %v205 = vld [vmem:[%s2 + $0x1f0] sm:$0xf]
    %v206 = vld [vmem:[%s2 + $0x1f4] sm:$0xff]
    %v207 = vld [vmem:[%s2 + $0x1fc] sm:$0xff]
    %v208 = vld [vmem:[%s2 + $0x204] sm:$0xf]
    %v209 = vld [vmem:[%s2 + $0x208] sm:$0xff]
    %v210 = vld [vmem:[%s2 + $0x210] sm:$0xff]
    %v211 = vld [vmem:[%s2 + $0x218] sm:$0xf]
    %v212 = vld [vmem:[%s2 + $0x21c] sm:$0xff]
    %v213 = vld [vmem:[%s2 + $0x224] sm:$0xff]
    %v214 = vld [vmem:[%s2 + $0x22c] sm:$0xf]
    %v215 = vld [vmem:[%s2 + $0x230] sm:$0xff]
    %v216 = vld [vmem:[%s2 + $0x238] sm:$0xff]
    %v217 = vld [vmem:[%s2 + $0x240] sm:$0xf]
    %v218 = vld [vmem:[%s2 + $0x244] sm:$0xff]
    %v219 = vld [vmem:[%s2 + $0x24c] sm:$0xff]
    %v220 = vld [vmem:[%s2 + $0x254] sm:$0xf]
    %v221 = vld [vmem:[%s2 + $0x258] sm:$0xff]
    %v222 = vld [vmem:[%s2 + $0x260] sm:$0xff]
    %v223 = vld [vmem:[%s2 + $0x268] sm:$0xf]
    %v224 = vld [vmem:[%s2 + $0x26c] sm:$0xff]
    %v225 = vld [vmem:[%s2 + $0x274] sm:$0xff]
    %v226 = vld [vmem:[%s2 + $0x27c] sm:$0xf]
    %v227 = vld [vmem:[%s2 + $0x280] sm:$0xff]
    %v228 = vld [vmem:[%s2 + $0x288] sm:$0xff]
    %v229 = vld [vmem:[%s2 + $0x290] sm:$0xf]
    %v230 = vld [vmem:[%s2 + $0x294] sm:$0xff]
    %v231 = vld [vmem:[%s2 + $0x29c] sm:$0xff]
    %v232 = vld [vmem:[%s2 + $0x2a4] sm:$0xf]
    %v233 = vld [vmem:[%s2 + $0x2a8] sm:$0xff]
    %v234 = vld [vmem:[%s2 + $0x2b0] sm:$0xff]
    %v235 = vld [vmem:[%s2 + $0x2b8] sm:$0xf]
    %v236 = vld [vmem:[%s2 + $0x2bc] sm:$0xff]
    %v237 = vld [vmem:[%s2 + $0x2c4] sm:$0xff]
    %v238 = vld [vmem:[%s2 + $0x2cc] sm:$0xf]
    %v239 = vld [vmem:[%s2 + $0x2d0] sm:$0xff]
    %v240 = vld [vmem:[%s2 + $0x2d8] sm:$0xff]
    %v241 = vld [vmem:[%s2 + $0x2e0] sm:$0xf]
    %v242 = vld [vmem:[%s2 + $0x2e4] sm:$0xff]
    %v243 = vld [vmem:[%s2 + $0x2ec] sm:$0xff]
    %v244 = vld [vmem:[%s2 + $0x2f4] sm:$0xf]
    %v245 = vld [vmem:[%s2 + $0x2f8] sm:$0xff]
    %v246 = vld [vmem:[%s2 + $0x300] sm:$0xff]
    %v247 = vld [vmem:[%s2 + $0x308] sm:$0xf]
    %v248 = vld [vmem:[%s2 + $0x30c] sm:$0xff]
    %v249 = vld [vmem:[%s2 + $0x314] sm:$0xff]
    %v250 = vld [vmem:[%s2 + $0x31c] sm:$0xf]
    %v251 = vld [vmem:[%s2 + $0x320] sm:$0xff]
    %v252 = vld [vmem:[%s2 + $0x328] sm:$0xff]
    %v253 = vld [vmem:[%s2 + $0x330] sm:$0xf]
    %v254 = vld [vmem:[%s2 + $0x334] sm:$0xff]
    %v255 = vld [vmem:[%s2 + $0x33c] sm:$0xff]
    %v256 = vld [vmem:[%s2 + $0x344] sm:$0xf]
    %v257 = vld [vmem:[%s2 + $0x348] sm:$0xff]
    %v258 = vld [vmem:[%s2 + $0x350] sm:$0xff]
    %v259 = vld [vmem:[%s2 + $0x358] sm:$0xf]
    %v260 = vld [vmem:[%s2 + $0x35c] sm:$0xff]
    %v261 = vld [vmem:[%s2 + $0x364] sm:$0xff]
    %v262 = vld [vmem:[%s2 + $0x36c] sm:$0xf]
    %v263 = vld [vmem:[%s2 + $0x370] sm:$0xff]
    %v264 = vld [vmem:[%s2 + $0x378] sm:$0xff]
    %v265 = vld [vmem:[%s2 + $0x380] sm:$0xf]
    %v266 = vld [vmem:[%s2 + $0x384] sm:$0xff]
    %v267 = vld [vmem:[%s2 + $0x38c] sm:$0xff]
    %v268 = vld [vmem:[%s2 + $0x394] sm:$0xf]
    %v269 = vld [vmem:[%s2 + $0x398] sm:$0xff]
    %v270 = vld [vmem:[%s2 + $0x3a0] sm:$0xff]
    %v271 = vld [vmem:[%s2 + $0x3a8] sm:$0xf]
    %v272 = vld [vmem:[%s2 + $0x3ac] sm:$0xff]
    %v273 = vld [vmem:[%s2 + $0x3b4] sm:$0xff]
    %v274 = vld [vmem:[%s2 + $0x3bc] sm:$0xf]
    %v275 = vld [vmem:[%s2 + $0x3c0] sm:$0xff]
    %v276 = vld [vmem:[%s2 + $0x3c8] sm:$0xff]
    %v277 = vld [vmem:[%s2 + $0x3d0] sm:$0xf]
    %v278 = vld [vmem:[%s2 + $0x3d4] sm:$0xff]
    %v279 = vld [vmem:[%s2 + $0x3dc] sm:$0xff]
    %v280 = vld [vmem:[%s2 + $0x3e4] sm:$0xf]
    %v281 = vld [vmem:[%s2 + $0x3e8] sm:$0xff]
    %v282 = vld [vmem:[%s2 + $0x3f0] sm:$0xff]
    %v283 = vld [vmem:[%s2 + $0x3f8] sm:$0xf]
    %v284 = vld [vmem:[%s2 + $0x3fc] sm:$0xff]
    %v285 = vld [vmem:[%s2 + $0x404] sm:$0xff]
    %v286 = vld [vmem:[%s2 + $0x40c] sm:$0xf]
    %v287 = vld [vmem:[%s2 + $0x410] sm:$0xff]
    %v288 = vld [vmem:[%s2 + $0x418] sm:$0xff]
    %v289 = vld [vmem:[%s2 + $0x420] sm:$0xf]
    %v290 = vld [vmem:[%s2 + $0x424] sm:$0xff]
    %v291 = vld [vmem:[%s2 + $0x42c] sm:$0xff]
    %v292 = vld [vmem:[%s2 + $0x434] sm:$0xf]
    %v293 = vld [vmem:[%s2 + $0x438] sm:$0xff]
    %v294 = vld [vmem:[%s2 + $0x440] sm:$0xff]
    %v295 = vld [vmem:[%s2 + $0x448] sm:$0xf]
    %v296 = vld [vmem:[%s2 + $0x44c] sm:$0xff]
    %v297 = vld [vmem:[%s2 + $0x454] sm:$0xff]
    %v298 = vld [vmem:[%s2 + $0x45c] sm:$0xf]
    %v299 = vld [vmem:[%s2 + $0x460] sm:$0xff]
    %v300 = vld [vmem:[%s2 + $0x468] sm:$0xff]
    %v301 = vld [vmem:[%s2 + $0x470] sm:$0xf]
    %v302 = vld [vmem:[%s2 + $0x474] sm:$0xff]
    %v303 = vld [vmem:[%s2 + $0x47c] sm:$0xff]
    %v304 = vld [vmem:[%s2 + $0x484] sm:$0xf]
    %v305 = vld [vmem:[%s2 + $0x488] sm:$0xff]
    %v306 = vld [vmem:[%s2 + $0x490] sm:$0xff]
    %v307 = vld [vmem:[%s2 + $0x498] sm:$0xf]
    %v308 = vld [vmem:[%s2 + $0x49c] sm:$0xff]
    %v309 = vld [vmem:[%s2 + $0x4a4] sm:$0xff]
    %v310 = vld [vmem:[%s2 + $0x4ac] sm:$0xf]
    %v311 = vld [vmem:[%s2 + $0x4b0] sm:$0xff]
    %v312 = vld [vmem:[%s2 + $0x4b8] sm:$0xff]
    %v313 = vld [vmem:[%s2 + $0x4c0] sm:$0xf]
    %v314 = vld [vmem:[%s2 + $0x4c4] sm:$0xff]
    %v315 = vld [vmem:[%s2 + $0x4cc] sm:$0xff]
    %v316 = vld [vmem:[%s2 + $0x4d4] sm:$0xf]
    %v317 = vld [vmem:[%s2 + $0x4d8] sm:$0xff]
    %v318 = vld [vmem:[%s2 + $0x4e0] sm:$0xff]
    %v319 = vld [vmem:[%s2 + $0x4e8] sm:$0xf]
    %v320 = vld [vmem:[%s2 + $0x4ec] sm:$0xff]
    %v321 = vld [vmem:[%s2 + $0x4f4] sm:$0xff]
    %v322 = vld [vmem:[%s2 + $0x4fc] sm:$0xf]
    %v323 = vld [vmem:[%s2 + $0x500] sm:$0xff]
    %v324 = vld [vmem:[%s2 + $0x508] sm:$0xff]
    %v325 = vld [vmem:[%s2 + $0x510] sm:$0xf]
    %v326 = vld [vmem:[%s2 + $0x514] sm:$0xff]
    %v327 = vld [vmem:[%s2 + $0x51c] sm:$0xff]
    %v328 = vld [vmem:[%s2 + $0x524] sm:$0xf]
    %v329 = vld [vmem:[%s2 + $0x528] sm:$0xff]
    %v330 = vld [vmem:[%s2 + $0x530] sm:$0xff]
    %v331 = vld [vmem:[%s2 + $0x538] sm:$0xf]
    %v332 = vld [vmem:[%s2 + $0x53c] sm:$0xff]
    %v333 = vld [vmem:[%s2 + $0x544] sm:$0xff]
    %v334 = vld [vmem:[%s2 + $0x54c] sm:$0xf]
    %v335 = vld [vmem:[%s2 + $0x550] sm:$0xff]
    %v336 = vld [vmem:[%s2 + $0x558] sm:$0xff]
    %v337 = vld [vmem:[%s2 + $0x560] sm:$0xf]
    %v338 = vld [vmem:[%s2 + $0x564] sm:$0xff]
    %v339 = vld [vmem:[%s2 + $0x56c] sm:$0xff]
    %v340 = vld [vmem:[%s2 + $0x574] sm:$0xf]
    %v341 = vld [vmem:[%s2 + $0x578] sm:$0xff]
    %v342 = vld [vmem:[%s2 + $0x580] sm:$0xff]
    %v343 = vld [vmem:[%s2 + $0x588] sm:$0xf]
    %v344 = vld [vmem:[%s2 + $0x58c] sm:$0xff]
    %v345 = vld [vmem:[%s2 + $0x594] sm:$0xff]
    %v346 = vld [vmem:[%s2 + $0x59c] sm:$0xf]
    %v347 = vld [vmem:[%s2 + $0x5a0] sm:$0xff]
    %v348 = vld [vmem:[%s2 + $0x5a8] sm:$0xff]
    %v349 = vld [vmem:[%s2 + $0x5b0] sm:$0xf]
    %v350 = vld [vmem:[%s2 + $0x5b4] sm:$0xff]
    %v351 = vld [vmem:[%s2 + $0x5bc] sm:$0xff]
    %v352 = vld [vmem:[%s2 + $0x5c4] sm:$0xf]
    %v353 = vld [vmem:[%s2 + $0x5c8] sm:$0xff]
    %v354 = vld [vmem:[%s2 + $0x5d0] sm:$0xff]
    %v355 = vld [vmem:[%s2 + $0x5d8] sm:$0xf]
    %v356 = vld [vmem:[%s2 + $0x5dc] sm:$0xff]
    %v357 = vld [vmem:[%s2 + $0x5e4] sm:$0xff]
    %v358 = vld [vmem:[%s2 + $0x5ec] sm:$0xf]
    %v359 = vld [vmem:[%s2 + $0x5f0] sm:$0xff]
    %v360 = vld [vmem:[%s2 + $0x5f8] sm:$0xff]
    %v361 = vld [vmem:[%s2 + $0x600] sm:$0xf]
    %v362 = vld [vmem:[%s2 + $0x604] sm:$0xff]
    %v363 = vld [vmem:[%s2 + $0x60c] sm:$0xff]
    %v364 = vld [vmem:[%s2 + $0x614] sm:$0xf]
    %v365 = vld [vmem:[%s2 + $0x618] sm:$0xff]
    %v366 = vld [vmem:[%s2 + $0x620] sm:$0xff]
    %v367 = vld [vmem:[%s2 + $0x628] sm:$0xf]
    %v368 = vld [vmem:[%s2 + $0x62c] sm:$0xff]
    %v369 = vld [vmem:[%s2 + $0x634] sm:$0xff]
    %v370 = vld [vmem:[%s2 + $0x63c] sm:$0xf]
    %v371 = vld [vmem:[%s2 + $0x640] sm:$0xff]
    %v372 = vld [vmem:[%s2 + $0x648] sm:$0xff]
    %v373 = vld [vmem:[%s2 + $0x650] sm:$0xf]
    %v374 = vld [vmem:[%s2 + $0x654] sm:$0xff]
    %v375 = vld [vmem:[%s2 + $0x65c] sm:$0xff]
    %v376 = vld [vmem:[%s2 + $0x664] sm:$0xf]
    %v377 = vld [vmem:[%s2 + $0x668] sm:$0xff]
    %v378 = vld [vmem:[%s2 + $0x670] sm:$0xff]
    %v379 = vld [vmem:[%s2 + $0x678] sm:$0xf]
    %v380 = vld [vmem:[%s2 + $0x67c] sm:$0xff]
    %v381 = vld [vmem:[%s2 + $0x684] sm:$0xff]
    %v382 = vld [vmem:[%s2 + $0x68c] sm:$0xf]
    %v383 = vld [vmem:[%s2 + $0x690] sm:$0xff]
    %v384 = vld [vmem:[%s2 + $0x698] sm:$0xff]
    %v385 = vld [vmem:[%s2 + $0x6a0] sm:$0xf]
    %v386 = vld [vmem:[%s2 + $0x6a4] sm:$0xff]
    %v387 = vld [vmem:[%s2 + $0x6ac] sm:$0xff]
    %v388 = vld [vmem:[%s2 + $0x6b4] sm:$0xf]
    %v389 = vld [vmem:[%s2 + $0x6b8] sm:$0xff]
    %v390 = vld [vmem:[%s2 + $0x6c0] sm:$0xff]
    %v391 = vld [vmem:[%s2 + $0x6c8] sm:$0xf]
    %v392 = vld [vmem:[%s2 + $0x6cc] sm:$0xff]
    %v393 = vld [vmem:[%s2 + $0x6d4] sm:$0xff]
    %v394 = vld [vmem:[%s2 + $0x6dc] sm:$0xf]
    %v395 = vld [vmem:[%s2 + $0x6e0] sm:$0xff]
    %v396 = vld [vmem:[%s2 + $0x6e8] sm:$0xff]
    %v397 = vld [vmem:[%s2 + $0x6f0] sm:$0xf]
    %v398 = vld [vmem:[%s2 + $0x6f4] sm:$0xff]
    %v399 = vld [vmem:[%s2 + $0x6fc] sm:$0xff]
    %v400 = vld [vmem:[%s2 + $0x704] sm:$0xf]
    %v401 = vld [vmem:[%s2 + $0x708] sm:$0xff]
    %v402 = vld [vmem:[%s2 + $0x710] sm:$0xff]
    %v403 = vld [vmem:[%s2 + $0x718] sm:$0xf]
    %v404 = vld [vmem:[%s2 + $0x71c] sm:$0xff]
    %v405 = vld [vmem:[%s2 + $0x724] sm:$0xff]
    %v406 = vld [vmem:[%s2 + $0x72c] sm:$0xf]
    %v407 = vld [vmem:[%s2 + $0x730] sm:$0xff]
    %v408 = vld [vmem:[%s2 + $0x738] sm:$0xff]
    %v409 = vld [vmem:[%s2 + $0x740] sm:$0xf]
    %v410 = vld [vmem:[%s2 + $0x744] sm:$0xff]
    %v411 = vld [vmem:[%s2 + $0x74c] sm:$0xff]
    %v412 = vld [vmem:[%s2 + $0x754] sm:$0xf]
    %v413 = vld [vmem:[%s2 + $0x758] sm:$0xff]
    %v414 = vld [vmem:[%s2 + $0x760] sm:$0xff]
    %v415 = vld [vmem:[%s2 + $0x768] sm:$0xf]
    %v416 = vld [vmem:[%s2 + $0x76c] sm:$0xff]
    %v417 = vld [vmem:[%s2 + $0x774] sm:$0xff]
    %v418 = vld [vmem:[%s2 + $0x77c] sm:$0xf]
    %v419 = vld [vmem:[%s2 + $0x780] sm:$0xff]
    %v420 = vld [vmem:[%s2 + $0x788] sm:$0xff]
    %v421 = vld [vmem:[%s2 + $0x790] sm:$0xf]
    %v422 = vld [vmem:[%s2 + $0x794] sm:$0xff]
    %v423 = vld [vmem:[%s2 + $0x79c] sm:$0xff]
    %v424 = vld [vmem:[%s2 + $0x7a4] sm:$0xf]
    %v425 = vld [vmem:[%s2 + $0x7a8] sm:$0xff]
    %v426 = vld [vmem:[%s2 + $0x7b0] sm:$0xff]
    %v427 = vld [vmem:[%s2 + $0x7b8] sm:$0xf]
    %v428 = vld [vmem:[%s2 + $0x7bc] sm:$0xff]
    %v429 = vld [vmem:[%s2 + $0x7c4] sm:$0xff]
    %v430 = vld [vmem:[%s2 + $0x7cc] sm:$0xf]
    %v431 = vld [vmem:[%s2 + $0x7d0] sm:$0xff]
    %v432 = vld [vmem:[%s2 + $0x7d8] sm:$0xff]
    %v433 = vld [vmem:[%s2 + $0x7e0] sm:$0xf]
    %v434 = vld [vmem:[%s2 + $0x7e4] sm:$0xff]
    %v435 = vld [vmem:[%s2 + $0x7ec] sm:$0xff]
    %v436 = vld [vmem:[%s2 + $0x7f4] sm:$0xf]
    %v437 = vld [vmem:[%s2 + $0x7f8] sm:$0xff]
    %v438 = vld [vmem:[%s2 + $0x800] sm:$0xff]
    %v439 = vld [vmem:[%s2 + $0x808] sm:$0xf]
    %v440 = vld [vmem:[%s2 + $0x80c] sm:$0xff]
    %v441 = vld [vmem:[%s2 + $0x814] sm:$0xff]
    %v442 = vld [vmem:[%s2 + $0x81c] sm:$0xf]
    %v443 = vld [vmem:[%s2 + $0x820] sm:$0xff]
    %v444 = vld [vmem:[%s2 + $0x828] sm:$0xff]
    %v445 = vld [vmem:[%s2 + $0x830] sm:$0xf]
    %v446 = vld [vmem:[%s2 + $0x834] sm:$0xff]
    %v447 = vld [vmem:[%s2 + $0x83c] sm:$0xff]
    %v448 = vld [vmem:[%s2 + $0x844] sm:$0xf]
    %v449 = vld [vmem:[%s2 + $0x848] sm:$0xff]
    %v450 = vld [vmem:[%s2 + $0x850] sm:$0xff]
    %v451 = vld [vmem:[%s2 + $0x858] sm:$0xf]
    %v452 = vld [vmem:[%s2 + $0x85c] sm:$0xff]
    %v453 = vld [vmem:[%s2 + $0x864] sm:$0xff]
    %v454 = vld [vmem:[%s2 + $0x86c] sm:$0xf]
    %v455 = vld [vmem:[%s2 + $0x870] sm:$0xff]
    %v456 = vld [vmem:[%s2 + $0x878] sm:$0xff]
    %v457 = vld [vmem:[%s2 + $0x880] sm:$0xf]
    %v458 = vld [vmem:[%s2 + $0x884] sm:$0xff]
    %v459 = vld [vmem:[%s2 + $0x88c] sm:$0xff]
    %v460 = vld [vmem:[%s2 + $0x894] sm:$0xf]
    %v461 = vld [vmem:[%s2 + $0x898] sm:$0xff]
    %v462 = vld [vmem:[%s2 + $0x8a0] sm:$0xff]
    %v463 = vld [vmem:[%s2 + $0x8a8] sm:$0xf]
    %v464 = vld [vmem:[%s2 + $0x8ac] sm:$0xff]
    %v465 = vld [vmem:[%s2 + $0x8b4] sm:$0xff]
    %v466 = vld [vmem:[%s2 + $0x8bc] sm:$0xf]
    %v467 = vld [vmem:[%s2 + $0x8c0] sm:$0xff]
    %v468 = vld [vmem:[%s2 + $0x8c8] sm:$0xff]
    %v469 = vld [vmem:[%s2 + $0x8d0] sm:$0xf]
    %v470 = vld [vmem:[%s2 + $0x8d4] sm:$0xff]
    %v471 = vld [vmem:[%s2 + $0x8dc] sm:$0xff]
    %v472 = vld [vmem:[%s2 + $0x8e4] sm:$0xf]
    %v473 = vld [vmem:[%s2 + $0x8e8] sm:$0xff]
    %v474 = vld [vmem:[%s2 + $0x8f0] sm:$0xff]
    %v475 = vld [vmem:[%s2 + $0x8f8] sm:$0xf]
    %v476 = vld [vmem:[%s2 + $0x8fc] sm:$0xff]
    %v477 = vld [vmem:[%s2 + $0x904] sm:$0xff]
    %v478 = vld [vmem:[%s2 + $0x90c] sm:$0xf]
    %v479 = vld [vmem:[%s2 + $0x910] sm:$0xff]
    %v480 = vld [vmem:[%s2 + $0x918] sm:$0xff]
    %v481 = vld [vmem:[%s2 + $0x920] sm:$0xf]
    %v482 = vld [vmem:[%s2 + $0x924] sm:$0xff]
    %v483 = vld [vmem:[%s2 + $0x92c] sm:$0xff]
    %v484 = vld [vmem:[%s2 + $0x934] sm:$0xf]
    %v485 = vld [vmem:[%s2 + $0x938] sm:$0xff]
    %v486 = vld [vmem:[%s2 + $0x940] sm:$0xff]
    %v487 = vld [vmem:[%s2 + $0x948] sm:$0xf]
    %v488 = vld [vmem:[%s2 + $0x94c] sm:$0xff]
    %v489 = vld [vmem:[%s2 + $0x954] sm:$0xff]
    %v490 = vld [vmem:[%s2 + $0x95c] sm:$0xf]
    %v491 = vld [vmem:[%s2 + $0x960] sm:$0xff]
    %v492 = vld [vmem:[%s2 + $0x968] sm:$0xff]
    %v493 = vld [vmem:[%s2 + $0x970] sm:$0xf]
    %v494 = vld [vmem:[%s2 + $0x974] sm:$0xff]
    %v495 = vld [vmem:[%s2 + $0x97c] sm:$0xff]
    %v496 = vld [vmem:[%s2 + $0x984] sm:$0xf]
    %v497 = vld [vmem:[%s2 + $0x988] sm:$0xff]
    %v498 = vld [vmem:[%s2 + $0x990] sm:$0xff]
    %v499 = vld [vmem:[%s2 + $0x998] sm:$0xf]
    %v500 = vld [vmem:[%s2 + $0x99c] sm:$0xff]
    %v501 = vld [vmem:[%s2 + $0x9a4] sm:$0xff]
    %v502 = vld [vmem:[%s2 + $0x9ac] sm:$0xf]
    %v503 = vld [vmem:[%s2 + $0x9b0] sm:$0xff]
    %v504 = vld [vmem:[%s2 + $0x9b8] sm:$0xff]
    %v505 = vld [vmem:[%s2 + $0x9c0] sm:$0xf]
    %v506 = vld [vmem:[%s2 + $0x9c4] sm:$0xff]
    %v507 = vld [vmem:[%s2 + $0x9cc] sm:$0xff]
    %v508 = vld [vmem:[%s2 + $0x9d4] sm:$0xf]
    %v509 = vld [vmem:[%s2 + $0x9d8] sm:$0xff]
    %v510 = vld [vmem:[%s2 + $0x9e0] sm:$0xff]
    %v511 = vld [vmem:[%s2 + $0x9e8] sm:$0xf]
    %v512 = vld [vmem:[%s2 + $0x9ec] sm:$0xff]
    %v513 = vld [vmem:[%s2 + $0x9f4] sm:$0xff]
    %v514 = vld [vmem:[%s2 + $0x9fc] sm:$0xf]
    %v515 = vld [vmem:[%s2 + $0xa00] sm:$0xff]
    %v516 = vld [vmem:[%s2 + $0xa08] sm:$0xff]
    %v517 = vld [vmem:[%s2 + $0xa10] sm:$0xf]
    %v518 = vld [vmem:[%s2 + $0xa14] sm:$0xff]
    %v519 = vld [vmem:[%s2 + $0xa1c] sm:$0xff]
    %v520 = vld [vmem:[%s2 + $0xa24] sm:$0xf]
    %v521 = vld [vmem:[%s2 + $0xa28] sm:$0xff]
    %v522 = vld [vmem:[%s2 + $0xa30] sm:$0xff]
    %v523 = vld [vmem:[%s2 + $0xa38] sm:$0xf]
    %v524 = vld [vmem:[%s2 + $0xa3c] sm:$0xff]
    %v525 = vld [vmem:[%s2 + $0xa44] sm:$0xff]
    %v526 = vld [vmem:[%s2 + $0xa4c] sm:$0xf]
    %v527 = vld [vmem:[%s2 + $0xa50] sm:$0xff]
    %v528 = vld [vmem:[%s2 + $0xa58] sm:$0xff]
    %v529 = vld [vmem:[%s2 + $0xa60] sm:$0xf]
    %v530 = vld [vmem:[%s2 + $0xa64] sm:$0xff]
    %v531 = vld [vmem:[%s2 + $0xa6c] sm:$0xff]
    %v532 = vld [vmem:[%s2 + $0xa74] sm:$0xf]
    %v533 = vld [vmem:[%s2 + $0xa78] sm:$0xff]
    %v534 = vld [vmem:[%s2 + $0xa80] sm:$0xff]
    %v535 = vld [vmem:[%s2 + $0xa88] sm:$0xf]
    %v536 = vld [vmem:[%s2 + $0xa8c] sm:$0xff]
    %v537 = vld [vmem:[%s2 + $0xa94] sm:$0xff]
    %v538 = vld [vmem:[%s2 + $0xa9c] sm:$0xf]
    %v539 = vld [vmem:[%s2 + $0xaa0] sm:$0xff]
    %v540 = vld [vmem:[%s2 + $0xaa8] sm:$0xff]
    %v541 = vld [vmem:[%s2 + $0xab0] sm:$0xf]
    %v542 = vld [vmem:[%s2 + $0xab4] sm:$0xff]
    %v543 = vld [vmem:[%s2 + $0xabc] sm:$0xff]
    %v544 = vld [vmem:[%s2 + $0xac4] sm:$0xf]
    %v545 = vld [vmem:[%s2 + $0xac8] sm:$0xff]
    %v546 = vld [vmem:[%s2 + $0xad0] sm:$0xff]
    %v547 = vld [vmem:[%s2 + $0xad8] sm:$0xf]
    %v548 = vld [vmem:[%s2 + $0xadc] sm:$0xff]
    %v549 = vld [vmem:[%s2 + $0xae4] sm:$0xff]
    %v550 = vld [vmem:[%s2 + $0xaec] sm:$0xf]
    %v551 = vld [vmem:[%s2 + $0xaf0] sm:$0xff]
    %v552 = vld [vmem:[%s2 + $0xaf8] sm:$0xff]
    %v553 = vld [vmem:[%s2 + $0xb00] sm:$0xf]
    %v554 = vld [vmem:[%s2 + $0xb04] sm:$0xff]
    %v555 = vld [vmem:[%s2 + $0xb0c] sm:$0xff]
    %v556 = vld [vmem:[%s2 + $0xb14] sm:$0xf]
    %v557 = vld [vmem:[%s2 + $0xb18] sm:$0xff]
    %v558 = vld [vmem:[%s2 + $0xb20] sm:$0xff]
    %v559 = vld [vmem:[%s2 + $0xb28] sm:$0xf]
    %v560 = vld [vmem:[%s2 + $0xb2c] sm:$0xff]
    %v561 = vld [vmem:[%s2 + $0xb34] sm:$0xff]
    %v562 = vld [vmem:[%s2 + $0xb3c] sm:$0xf]
    %v563 = vld [vmem:[%s2 + $0xb40] sm:$0xff]
    %v564 = vld [vmem:[%s2 + $0xb48] sm:$0xff]
    %v565 = vld [vmem:[%s2 + $0xb50] sm:$0xf]
    %v566 = vld [vmem:[%s2 + $0xb54] sm:$0xff]
    %v567 = vld [vmem:[%s2 + $0xb5c] sm:$0xff]
    %v568 = vld [vmem:[%s2 + $0xb64] sm:$0xf]
    %v569 = vld [vmem:[%s2 + $0xb68] sm:$0xff]
    %v570 = vld [vmem:[%s2 + $0xb70] sm:$0xff]
    %v571 = vld [vmem:[%s2 + $0xb78] sm:$0xf]
    %v572 = vld [vmem:[%s2 + $0xb7c] sm:$0xff]
    %v573 = vld [vmem:[%s2 + $0xb84] sm:$0xff]
    %v574 = vld [vmem:[%s2 + $0xb8c] sm:$0xf]
    %v575 = vld [vmem:[%s2 + $0xb90] sm:$0xff]
    %v576 = vld [vmem:[%s2 + $0xb98] sm:$0xff]
    %v577 = vld [vmem:[%s2 + $0xba0] sm:$0xf]
    %v578 = vld [vmem:[%s2 + $0xba4] sm:$0xff]
    %v579 = vld [vmem:[%s2 + $0xbac] sm:$0xff]
    %v580 = vld [vmem:[%s2 + $0xbb4] sm:$0xf]
    %v581 = vld [vmem:[%s2 + $0xbb8] sm:$0xff]
    %v582 = vld [vmem:[%s2 + $0xbc0] sm:$0xff]
    %v583 = vld [vmem:[%s2 + $0xbc8] sm:$0xf]
    %v584 = vld [vmem:[%s2 + $0xbcc] sm:$0xff]
    %v585 = vld [vmem:[%s2 + $0xbd4] sm:$0xff]
    %v586 = vld [vmem:[%s2 + $0xbdc] sm:$0xf]
    %v587 = vld [vmem:[%s2 + $0xbe0] sm:$0xff]
    %v588 = vld [vmem:[%s2 + $0xbe8] sm:$0xff]
    %v589 = vld [vmem:[%s2 + $0xbf0] sm:$0xf]
    %v590 = vld [vmem:[%s2 + $0xbf4] sm:$0xff]
    %v591 = vld [vmem:[%s2 + $0xbfc] sm:$0xff]
    %v592 = vld [vmem:[%s2 + $0xc04] sm:$0xf]
    %v593 = vld [vmem:[%s4] ss:$0 sm:$0xff]
    %v594 = vld [vmem:[%s4 + $0x1] ss:$0 sm:$0xff]
    %v595 = vld [vmem:[%s4 + $0x2] ss:$0 sm:$0xff]
    %v596 = vld [vmem:[%s4 + $0x3] ss:$0 sm:$0xff]
    %s597 = scalar_lea.vmem %s4, 4
    %v598 = vld [vmem:[%s597] ss:$8 sm:$0xf]
    %v599 = vld [vmem:[%s597] ss:$8 sm:$0x10]
    %v600 = vor.u32 %v598, %v599
    %v601 = vld [vmem:[%s4 + $0x28] ss:$0 sm:$0xff]
    %v602 = vld [vmem:[%s4 + $0x29] ss:$0 sm:$0xff]
    %v603 = vld [vmem:[%s4 + $0x2a] ss:$0 sm:$0xff]
    %v604 = vld [vmem:[%s4 + $0x2b] ss:$0 sm:$0xff]
    %v605 = vld [vmem:[%s4 + $0x2c] ss:$0 sm:$0xff]
    %v606 = vld [vmem:[%s4 + $0x50] ss:$0 sm:$0xff]
    %v607 = vld [vmem:[%s4 + $0x51] ss:$0 sm:$0xff]
    %v608 = vld [vmem:[%s4 + $0x52] ss:$0 sm:$0xff]
    %v609 = vld [vmem:[%s4 + $0x53] ss:$0 sm:$0xff]
    %v610 = vld [vmem:[%s4 + $0x54] ss:$0 sm:$0xff]
    %v611 = vld [vmem:[%s1] sm:$0xff]
    %v612 = vpack.c.bf16 %v611, %v611
    %v618 = vunpack.c.l.b16 %v29
    %v619 = vunpack.c.l.b16 %v30
    %v620 = vunpack.c.l.b16 %v31
    %v621 = vunpack.c.l.b16 %v32
    %v622 = vunpack.c.l.b16 %v33
    %v623 = vpack.c.b16 %v619, %v618
    %v624 = vpack.c.b16 %v621, %v620
    %v625 = vpack.c.b16 %v622, %v622
    %vm628 = vcmask 293888
    %v630 = vsel %vm628, %v612, 0
    %vm632 = vcmask 1041408
    %v634 = vsel %vm632, %v625, 0
    %636 = vmatpush.bf16.msra.mxu0 0
    %637 = vmatpush.bf16.msra.mxu0 0
    %638 = vmatpush.bf16.msra.mxu0 0
    %639 = vmatpush.bf16.msra.mxu0 0
    %640 = vmatpush.bf16.msra.mxu0 0
    %641 = vmatpush.bf16.msra.mxu0 %v634
    %642 = vmatpush.bf16.msra.mxu0 %v624
    %643 = vmatpush.bf16.msra.mxu0 %v623
    %644 = vmatmul.bf16.gmra.mxu0 %v630
    %v645 = vpop.f32.mrf.mxu0
    %v646 = vadd.f32 0.0, %v645
    %v647 = vpop.f32.mrf.mxu0
    %648 = vdwg.mxu0
    %v649 = vmul.f32 %v646, %v28
    %vm650 = vcmask 588800
    %v651 = vsel %vm650, %v649, 0.0
    %v652 = vrot.slane %v651, 4
    %v653 = vadd.f32 %v651, %v652
    %v654 = vrot.slane %v653, 2
    %v655 = vadd.f32 %v653, %v654
    %v656 = vrot.slane %v655, 1
    %v657 = vadd.f32 %v655, %v656
    %659 = vrot.lane.b32.xlu0 %v657, 120
    %v660 = vpop.permute.xlu0 %659
    %v662 = vadd.f32 %v657, %v660
    %663 = vrot.lane.b32.xlu0 %v657, 112
    %v664 = vpop.permute.xlu0 %663
    %v666 = vadd.f32 %v662, %v664
    %667 = vrot.lane.b32.xlu0 %v657, 104
    %v668 = vpop.permute.xlu0 %667
    %v670 = vadd.f32 %v666, %v668
    %671 = vrot.lane.b32.xlu0 %v657, 96
    %v672 = vpop.permute.xlu0 %671
    %v674 = vadd.f32 %v670, %v672
    %675 = vrot.lane.b32.xlu0 %v657, 88
    %v676 = vpop.permute.xlu0 %675
    %v678 = vadd.f32 %v674, %v676
    %679 = vrot.lane.b32.xlu0 %v657, 80
    %v680 = vpop.permute.xlu0 %679
    %v682 = vadd.f32 %v678, %v680
    %683 = vrot.lane.b32.xlu0 %v657, 72
    %v684 = vpop.permute.xlu0 %683
    %v686 = vadd.f32 %v682, %v684
    %687 = vrot.lane.b32.xlu0 %v657, 64
    %v688 = vpop.permute.xlu0 %687
    %v690 = vadd.f32 %v686, %v688
    %v691 = vmul.f32 %v649, %v646
    %v692 = vsel %vm650, %v691, 0.0
    %v693 = vrot.slane %v692, 4
    %v694 = vadd.f32 %v692, %v693
    %v695 = vrot.slane %v694, 2
    %v696 = vadd.f32 %v694, %v695
    %v697 = vrot.slane %v696, 1
    %v698 = vadd.f32 %v696, %v697
    %700 = vrot.lane.b32.xlu0 %v698, 120
    %v701 = vpop.permute.xlu0 %700
    %v703 = vadd.f32 %v698, %v701
    %704 = vrot.lane.b32.xlu0 %v698, 112
    %v705 = vpop.permute.xlu0 %704
    %v707 = vadd.f32 %v703, %v705
    %708 = vrot.lane.b32.xlu0 %v698, 104
    %v709 = vpop.permute.xlu0 %708
    %v711 = vadd.f32 %v707, %v709
    %712 = vrot.lane.b32.xlu0 %v698, 96
    %v713 = vpop.permute.xlu0 %712
    %v715 = vadd.f32 %v711, %v713
    %716 = vrot.lane.b32.xlu0 %v698, 88
    %v717 = vpop.permute.xlu0 %716
    %v719 = vadd.f32 %v715, %v717
    %720 = vrot.lane.b32.xlu0 %v698, 80
    %v721 = vpop.permute.xlu0 %720
    %v723 = vadd.f32 %v719, %v721
    %724 = vrot.lane.b32.xlu0 %v698, 72
    %v725 = vpop.permute.xlu0 %724
    %v727 = vadd.f32 %v723, %v725
    %728 = vrot.lane.b32.xlu0 %v698, 64
    %v729 = vpop.permute.xlu0 %728
    %v731 = vadd.f32 %v727, %v729
    %s732 = smul.f32 %s22, 9.0
    %v733 = vstv %s732
    %v734 = vrcp.pop %v733
    %v735 = vmul.f32 %v733, %v734
    %v736 = vsub.f32 1.0, %v735
    %v737 = vmul.f32 %v734, %v736
    %v738 = vadd.f32 %v734, %v737
    %vm739 = vweird.f32 %v733
    %vm740 = vweird.f32 %v734
    %vm741 = vmor %vm739, %vm740
    %v742 = vsel %vm741, %v734, %v738
    %v743 = vand.u32 2147483647, %v733
    %vm744 = vcmp.eq.f32.partialorder %v743, 8.507059e+37
    %v745 = vand.u32 %v733, 2147483648
    %v746 = vor.u32 1.1754944e-38, %v745
    %v747 = vsel %vm744, %v746, %v742
    %v748 = vmul.f32 %v690, %v747
    %v749 = vmul.f32 %v731, %v747
    %v750 = vmul.f32 %v748, %v748
    %v751 = vsub.f32 %v749, %v750
    %v752 = vmax.f32 %v751, 0.0
    %v753 = vadd.f32 %v752, 1e-05
    %v754 = vrsqrt.pop %v753
    %v755 = vmul.f32 %v754, %v753
    %v756 = vmul.f32 %v755, %v754
    %v757 = vmul.f32 0.5, %v756
    %v758 = vsub.f32 1.5, %v757
    %v759 = vmul.f32 %v754, %v758
    %vm760 = vweird.f32 %v753
    %vm761 = vweird.f32 %v754
    %vm762 = vmor %vm760, %vm761
    %v763 = vsel %vm762, %v754, %v759
    %v764 = vmul.f32 %v601, %v763
    %v765 = vmul.f32 %v748, %v764
    %v766 = vsub.f32 %v602, %v765
    %768 = vrot.lane.b32.xlu0 %v764, 8
    %v769 = vpop.permute.xlu0 %768
    %771 = vrot.lane.b32.xlu0 %v764, 16
    %v772 = vpop.permute.xlu0 %771
    %774 = vrot.lane.b32.xlu0 %v764, 24
    %v775 = vpop.permute.xlu0 %774
    %777 = vrot.lane.b32.xlu0 %v764, 32
    %v778 = vpop.permute.xlu0 %777
    %780 = vrot.lane.b32.xlu0 %v764, 40
    %v781 = vpop.permute.xlu0 %780
    %783 = vrot.lane.b32.xlu0 %v764, 48
    %v784 = vpop.permute.xlu0 %783
    %786 = vrot.lane.b32.xlu0 %v764, 56
    %v787 = vpop.permute.xlu0 %786
    %789 = vrot.lane.b32.xlu0 %v764, 64
    %v790 = vpop.permute.xlu0 %789
    %vm792 = vcmask 64512
    %v793 = vsel %vm792, %v764, %v769
    %vm794 = vcmask 130048
    %v795 = vsel %vm794, %v793, %v772
    %vm796 = vcmask 195584
    %v797 = vsel %vm796, %v795, %v775
    %vm798 = vcmask 261120
    %v799 = vsel %vm798, %v797, %v778
    %vm800 = vcmask 326656
    %v801 = vsel %vm800, %v799, %v781
    %vm802 = vcmask 392192
    %v803 = vsel %vm802, %v801, %v784
    %vm804 = vcmask 457728
    %v805 = vsel %vm804, %v803, %v787
    %vm806 = vcmask 523264
    %v807 = vsel %vm806, %v805, %v790
    %v808 = vperm.slane %v807, 0
    %v809 = vmul.f32 %v646, %v808
    %811 = vrot.lane.b32.xlu0 %v766, 8
    %v812 = vpop.permute.xlu0 %811
    %814 = vrot.lane.b32.xlu0 %v766, 16
    %v815 = vpop.permute.xlu0 %814
    %817 = vrot.lane.b32.xlu0 %v766, 24
    %v818 = vpop.permute.xlu0 %817
    %820 = vrot.lane.b32.xlu0 %v766, 32
    %v821 = vpop.permute.xlu0 %820
    %823 = vrot.lane.b32.xlu0 %v766, 40
    %v824 = vpop.permute.xlu0 %823
    %826 = vrot.lane.b32.xlu0 %v766, 48
    %v827 = vpop.permute.xlu0 %826
    %829 = vrot.lane.b32.xlu0 %v766, 56
    %v830 = vpop.permute.xlu0 %829
    %832 = vrot.lane.b32.xlu0 %v766, 64
    %v833 = vpop.permute.xlu0 %832
    %v835 = vsel %vm792, %v766, %v812
    %v836 = vsel %vm794, %v835, %v815
    %v837 = vsel %vm796, %v836, %v818
    %v838 = vsel %vm798, %v837, %v821
    %v839 = vsel %vm800, %v838, %v824
    %v840 = vsel %vm802, %v839, %v827
    %v841 = vsel %vm804, %v840, %v830
    %v842 = vsel %vm806, %v841, %v833
    %v843 = vperm.slane %v842, 0
    %v844 = vadd.f32 %v809, %v843
    %v845 = vmax.f32 %v844, 0.0
    %v846 = vpack.c.bf16 %v845, %v845
    %v856 = vunpack.c.l.b16 %v34
    %v857 = vunpack.c.l.b16 %v35
    %v858 = vunpack.c.l.b16 %v36
    %v859 = vunpack.c.l.b16 %v37
    %v860 = vunpack.c.l.b16 %v38
    %v861 = vunpack.c.l.b16 %v39
    %v862 = vunpack.c.l.b16 %v40
    %v863 = vunpack.c.l.b16 %v41
    %v864 = vunpack.c.l.b16 %v42
    %v865 = vpack.c.b16 %v857, %v856
    %v866 = vpack.c.b16 %v859, %v858
    %v867 = vpack.c.b16 %v861, %v860
    %v868 = vpack.c.b16 %v863, %v862
    %v869 = vpack.c.b16 %v864, %v864
    %v875 = vsel %vm650, %v846, 0
    %vm877 = vcmask 1043456
    %v879 = vsel %vm877, %v869, 0
    %881 = vmatpush.bf16.msra.mxu0 0
    %882 = vmatpush.bf16.msra.mxu0 0
    %883 = vmatpush.bf16.msra.mxu0 0
    %884 = vmatpush.bf16.msra.mxu0 %v879
    %885 = vmatpush.bf16.msra.mxu0 %v868
    %886 = vmatpush.bf16.msra.mxu0 %v867
    %887 = vmatpush.bf16.msra.mxu0 %v866
    %888 = vmatpush.bf16.msra.mxu0 %v865
    %889 = vmatmul.bf16.gmra.mxu0 %v875
    %v890 = vpop.f32.mrf.mxu0
    %v891 = vadd.f32 %v605, %v890
    %v892 = vpop.f32.mrf.mxu0
    %893 = vdwg.mxu0
    %v894 = vpack.c.bf16 %v891, %v891
    %v904 = vunpack.c.l.b16 %v43
    %v905 = vunpack.c.l.b16 %v44
    %v906 = vunpack.c.l.b16 %v45
    %v907 = vunpack.c.l.b16 %v46
    %v908 = vunpack.c.l.b16 %v47
    %v909 = vunpack.c.l.b16 %v48
    %v910 = vunpack.c.l.b16 %v49
    %v911 = vunpack.c.l.b16 %v50
    %v912 = vunpack.c.l.b16 %v51
    %v913 = vpack.c.b16 %v905, %v904
    %v914 = vpack.c.b16 %v907, %v906
    %v915 = vpack.c.b16 %v909, %v908
    %v916 = vpack.c.b16 %v911, %v910
    %v917 = vpack.c.b16 %v912, %v912
    %v923 = vsel %vm650, %v894, 0
    %v926 = vsel %vm877, %v917, 0
    %928 = vmatpush.bf16.msra.mxu0 0
    %929 = vmatpush.bf16.msra.mxu0 0
    %930 = vmatpush.bf16.msra.mxu0 0
    %931 = vmatpush.bf16.msra.mxu0 %v926
    %932 = vmatpush.bf16.msra.mxu0 %v916
    %933 = vmatpush.bf16.msra.mxu0 %v915
    %934 = vmatpush.bf16.msra.mxu0 %v914
    %935 = vmatpush.bf16.msra.mxu0 %v913
    %936 = vmatmul.bf16.gmra.mxu0 %v923
    %v937 = vpop.f32.mrf.mxu0
    %v938 = vadd.f32 0.0, %v937
    %v939 = vpop.f32.mrf.mxu0
    %940 = vdwg.mxu0
    %v941 = vadd.f32 %v845, %v938
    %v942 = vmul.f32 %v941, %v28
    %v943 = vsel %vm650, %v942, 0.0
    %v944 = vrot.slane %v943, 4
    %v945 = vadd.f32 %v943, %v944
    %v946 = vrot.slane %v945, 2
    %v947 = vadd.f32 %v945, %v946
    %v948 = vrot.slane %v947, 1
    %v949 = vadd.f32 %v947, %v948
    %951 = vrot.lane.b32.xlu0 %v949, 120
    %v952 = vpop.permute.xlu0 %951
    %v954 = vadd.f32 %v949, %v952
    %955 = vrot.lane.b32.xlu0 %v949, 112
    %v956 = vpop.permute.xlu0 %955
    %v958 = vadd.f32 %v954, %v956
    %959 = vrot.lane.b32.xlu0 %v949, 104
    %v960 = vpop.permute.xlu0 %959
    %v962 = vadd.f32 %v958, %v960
    %963 = vrot.lane.b32.xlu0 %v949, 96
    %v964 = vpop.permute.xlu0 %963
    %v966 = vadd.f32 %v962, %v964
    %967 = vrot.lane.b32.xlu0 %v949, 88
    %v968 = vpop.permute.xlu0 %967
    %v970 = vadd.f32 %v966, %v968
    %971 = vrot.lane.b32.xlu0 %v949, 80
    %v972 = vpop.permute.xlu0 %971
    %v974 = vadd.f32 %v970, %v972
    %975 = vrot.lane.b32.xlu0 %v949, 72
    %v976 = vpop.permute.xlu0 %975
    %v978 = vadd.f32 %v974, %v976
    %979 = vrot.lane.b32.xlu0 %v949, 64
    %v980 = vpop.permute.xlu0 %979
    %v982 = vadd.f32 %v978, %v980
    %v983 = vmul.f32 %v942, %v941
    %v984 = vsel %vm650, %v983, 0.0
    %v985 = vrot.slane %v984, 4
    %v986 = vadd.f32 %v984, %v985
    %v987 = vrot.slane %v986, 2
    %v988 = vadd.f32 %v986, %v987
    %v989 = vrot.slane %v988, 1
    %v990 = vadd.f32 %v988, %v989
    %992 = vrot.lane.b32.xlu0 %v990, 120
    %v993 = vpop.permute.xlu0 %992
    %v995 = vadd.f32 %v990, %v993
    %996 = vrot.lane.b32.xlu0 %v990, 112
    %v997 = vpop.permute.xlu0 %996
    %v999 = vadd.f32 %v995, %v997
    %1000 = vrot.lane.b32.xlu0 %v990, 104
    %v1001 = vpop.permute.xlu0 %1000
    %v1003 = vadd.f32 %v999, %v1001
    %1004 = vrot.lane.b32.xlu0 %v990, 96
    %v1005 = vpop.permute.xlu0 %1004
    %v1007 = vadd.f32 %v1003, %v1005
    %1008 = vrot.lane.b32.xlu0 %v990, 88
    %v1009 = vpop.permute.xlu0 %1008
    %v1011 = vadd.f32 %v1007, %v1009
    %1012 = vrot.lane.b32.xlu0 %v990, 80
    %v1013 = vpop.permute.xlu0 %1012
    %v1015 = vadd.f32 %v1011, %v1013
    %1016 = vrot.lane.b32.xlu0 %v990, 72
    %v1017 = vpop.permute.xlu0 %1016
    %v1019 = vadd.f32 %v1015, %v1017
    %1020 = vrot.lane.b32.xlu0 %v990, 64
    %v1021 = vpop.permute.xlu0 %1020
    %v1023 = vadd.f32 %v1019, %v1021
    %v1024 = vmul.f32 %v982, %v747
    %v1025 = vmul.f32 %v1023, %v747
    %v1026 = vmul.f32 %v1024, %v1024
    %v1027 = vsub.f32 %v1025, %v1026
    %v1028 = vmax.f32 %v1027, 0.0
    %v1029 = vadd.f32 %v1028, 1e-05
    %v1030 = vrsqrt.pop %v1029
    %v1031 = vmul.f32 %v1030, %v1029
    %v1032 = vmul.f32 %v1031, %v1030
    %v1033 = vmul.f32 0.5, %v1032
    %v1034 = vsub.f32 1.5, %v1033
    %v1035 = vmul.f32 %v1030, %v1034
    %vm1036 = vweird.f32 %v1029
    %vm1037 = vweird.f32 %v1030
    %vm1038 = vmor %vm1036, %vm1037
    %v1039 = vsel %vm1038, %v1030, %v1035
    %v1040 = vmul.f32 %v603, %v1039
    %v1041 = vmul.f32 %v1024, %v1040
    %v1042 = vsub.f32 %v604, %v1041
    %1044 = vrot.lane.b32.xlu0 %v1040, 8
    %v1045 = vpop.permute.xlu0 %1044
    %1047 = vrot.lane.b32.xlu0 %v1040, 16
    %v1048 = vpop.permute.xlu0 %1047
    %1050 = vrot.lane.b32.xlu0 %v1040, 24
    %v1051 = vpop.permute.xlu0 %1050
    %1053 = vrot.lane.b32.xlu0 %v1040, 32
    %v1054 = vpop.permute.xlu0 %1053
    %1056 = vrot.lane.b32.xlu0 %v1040, 40
    %v1057 = vpop.permute.xlu0 %1056
    %1059 = vrot.lane.b32.xlu0 %v1040, 48
    %v1060 = vpop.permute.xlu0 %1059
    %1062 = vrot.lane.b32.xlu0 %v1040, 56
    %v1063 = vpop.permute.xlu0 %1062
    %1065 = vrot.lane.b32.xlu0 %v1040, 64
    %v1066 = vpop.permute.xlu0 %1065
    %v1068 = vsel %vm792, %v1040, %v1045
    %v1069 = vsel %vm794, %v1068, %v1048
    %v1070 = vsel %vm796, %v1069, %v1051
    %v1071 = vsel %vm798, %v1070, %v1054
    %v1072 = vsel %vm800, %v1071, %v1057
    %v1073 = vsel %vm802, %v1072, %v1060
    %v1074 = vsel %vm804, %v1073, %v1063
    %v1075 = vsel %vm806, %v1074, %v1066
    %v1076 = vperm.slane %v1075, 0
    %v1077 = vmul.f32 %v941, %v1076
    %1079 = vrot.lane.b32.xlu0 %v1042, 8
    %v1080 = vpop.permute.xlu0 %1079
    %1082 = vrot.lane.b32.xlu0 %v1042, 16
    %v1083 = vpop.permute.xlu0 %1082
    %1085 = vrot.lane.b32.xlu0 %v1042, 24
    %v1086 = vpop.permute.xlu0 %1085
    %1088 = vrot.lane.b32.xlu0 %v1042, 32
    %v1089 = vpop.permute.xlu0 %1088
    %1091 = vrot.lane.b32.xlu0 %v1042, 40
    %v1092 = vpop.permute.xlu0 %1091
    %1094 = vrot.lane.b32.xlu0 %v1042, 48
    %v1095 = vpop.permute.xlu0 %1094
    %1097 = vrot.lane.b32.xlu0 %v1042, 56
    %v1098 = vpop.permute.xlu0 %1097
    %1100 = vrot.lane.b32.xlu0 %v1042, 64
    %v1101 = vpop.permute.xlu0 %1100
    %v1103 = vsel %vm792, %v1042, %v1080
    %v1104 = vsel %vm794, %v1103, %v1083
    %v1105 = vsel %vm796, %v1104, %v1086
    %v1106 = vsel %vm798, %v1105, %v1089
    %v1107 = vsel %vm800, %v1106, %v1092
    %v1108 = vsel %vm802, %v1107, %v1095
    %v1109 = vsel %vm804, %v1108, %v1098
    %v1110 = vsel %vm806, %v1109, %v1101
    %v1111 = vperm.slane %v1110, 0
    %v1112 = vadd.f32 %v1077, %v1111
    %v1113 = vmax.f32 %v1112, 0.0
    %v1114 = vpack.c.bf16 %v1113, %v1113
    %v1142 = vunpack.c.l.b16 %v134
    %v1143 = vunpack.c.h.b16 %v134
    %v1144 = vunpack.c.l.b16 %v135
    %v1145 = vunpack.c.h.b16 %v135
    %v1146 = vunpack.c.l.b16 %v136
    %v1147 = vunpack.c.l.b16 %v137
    %v1148 = vunpack.c.h.b16 %v137
    %v1149 = vunpack.c.l.b16 %v138
    %v1150 = vunpack.c.h.b16 %v138
    %v1151 = vunpack.c.l.b16 %v139
    %v1152 = vunpack.c.l.b16 %v140
    %v1153 = vunpack.c.h.b16 %v140
    %v1154 = vunpack.c.l.b16 %v141
    %v1155 = vunpack.c.h.b16 %v141
    %v1156 = vunpack.c.l.b16 %v142
    %v1157 = vunpack.c.l.b16 %v143
    %v1158 = vunpack.c.h.b16 %v143
    %v1159 = vunpack.c.l.b16 %v144
    %v1160 = vunpack.c.h.b16 %v144
    %v1161 = vunpack.c.l.b16 %v145
    %v1162 = vunpack.c.l.b16 %v146
    %v1163 = vunpack.c.h.b16 %v146
    %v1164 = vunpack.c.l.b16 %v147
    %v1165 = vunpack.c.h.b16 %v147
    %v1166 = vunpack.c.l.b16 %v148
    %v1167 = vunpack.c.l.b16 %v149
    %v1168 = vunpack.c.h.b16 %v149
    %v1169 = vunpack.c.l.b16 %v150
    %v1170 = vunpack.c.h.b16 %v150
    %v1171 = vunpack.c.l.b16 %v151
    %v1172 = vunpack.c.l.b16 %v152
    %v1173 = vunpack.c.h.b16 %v152
    %v1174 = vunpack.c.l.b16 %v153
    %v1175 = vunpack.c.h.b16 %v153
    %v1176 = vunpack.c.l.b16 %v154
    %v1177 = vunpack.c.l.b16 %v155
    %v1178 = vunpack.c.h.b16 %v155
    %v1179 = vunpack.c.l.b16 %v156
    %v1180 = vunpack.c.h.b16 %v156
    %v1181 = vunpack.c.l.b16 %v157
    %v1182 = vunpack.c.l.b16 %v158
    %v1183 = vunpack.c.h.b16 %v158
    %v1184 = vunpack.c.l.b16 %v159
    %v1185 = vunpack.c.h.b16 %v159
    %v1186 = vunpack.c.l.b16 %v160
    %v1187 = vpack.c.b16 %v1147, %v1142
    %v1188 = vpack.c.b16 %v1148, %v1143
    %v1189 = vpack.c.b16 %v1149, %v1144
    %v1190 = vpack.c.b16 %v1150, %v1145
    %v1191 = vpack.c.b16 %v1151, %v1146
    %v1192 = vpack.c.b16 %v1157, %v1152
    %v1193 = vpack.c.b16 %v1158, %v1153
    %v1194 = vpack.c.b16 %v1159, %v1154
    %v1195 = vpack.c.b16 %v1160, %v1155
    %v1196 = vpack.c.b16 %v1161, %v1156
    %v1197 = vpack.c.b16 %v1167, %v1162
    %v1198 = vpack.c.b16 %v1168, %v1163
    %v1199 = vpack.c.b16 %v1169, %v1164
    %v1200 = vpack.c.b16 %v1170, %v1165
    %v1201 = vpack.c.b16 %v1171, %v1166
    %v1202 = vpack.c.b16 %v1177, %v1172
    %v1203 = vpack.c.b16 %v1178, %v1173
    %v1204 = vpack.c.b16 %v1179, %v1174
    %v1205 = vpack.c.b16 %v1180, %v1175
    %v1206 = vpack.c.b16 %v1181, %v1176
    %v1207 = vpack.c.b16 %v1182, %v1182
    %v1208 = vpack.c.b16 %v1183, %v1183
    %v1209 = vpack.c.b16 %v1184, %v1184
    %v1210 = vpack.c.b16 %v1185, %v1185
    %v1211 = vpack.c.b16 %v1186, %v1186
    %v1233 = vsel %vm650, %v1114, 0
    %v1236 = vsel %vm877, %v1207, 0
    %v1239 = vsel %vm877, %v1208, 0
    %v1242 = vsel %vm877, %v1209, 0
    %v1245 = vsel %vm877, %v1210, 0
    %v1248 = vsel %vm877, %v1211, 0
    %1250 = vmatpush.bf16.msra.mxu0 0
    %1251 = vmatpush.bf16.msra.mxu0 0
    %1252 = vmatpush.bf16.msra.mxu0 0
    %1253 = vmatpush.bf16.msra.mxu0 %v1236
    %1254 = vmatpush.bf16.msra.mxu0 %v1202
    %1255 = vmatpush.bf16.msra.mxu0 %v1197
    %1256 = vmatpush.bf16.msra.mxu0 %v1192
    %1257 = vmatpush.bf16.msra.mxu0 %v1187
    %1258 = vmatmul.bf16.gmra.mxu0 %v1233
    %v1259 = vpop.f32.mrf.mxu0
    %v1260 = vadd.f32 0.0, %v1259
    %v1261 = vpop.f32.mrf.mxu0
    %1262 = vdwg.mxu0
    %1263 = vmatpush.bf16.msra.mxu0 0
    %1264 = vmatpush.bf16.msra.mxu0 0
    %1265 = vmatpush.bf16.msra.mxu0 0
    %1266 = vmatpush.bf16.msra.mxu0 %v1239
    %1267 = vmatpush.bf16.msra.mxu0 %v1203
    %1268 = vmatpush.bf16.msra.mxu0 %v1198
    %1269 = vmatpush.bf16.msra.mxu0 %v1193
    %1270 = vmatpush.bf16.msra.mxu0 %v1188
    %1271 = vmatmul.bf16.gmra.mxu0 %v1233
    %v1272 = vpop.f32.mrf.mxu0
    %v1273 = vadd.f32 0.0, %v1272
    %v1274 = vpop.f32.mrf.mxu0
    %1275 = vdwg.mxu0
    %1276 = vmatpush.bf16.msra.mxu0 0
    %1277 = vmatpush.bf16.msra.mxu0 0
    %1278 = vmatpush.bf16.msra.mxu0 0
    %1279 = vmatpush.bf16.msra.mxu0 %v1242
    %1280 = vmatpush.bf16.msra.mxu0 %v1204
    %1281 = vmatpush.bf16.msra.mxu0 %v1199
    %1282 = vmatpush.bf16.msra.mxu0 %v1194
    %1283 = vmatpush.bf16.msra.mxu0 %v1189
    %1284 = vmatmul.bf16.gmra.mxu0 %v1233
    %v1285 = vpop.f32.mrf.mxu0
    %v1286 = vadd.f32 0.0, %v1285
    %v1287 = vpop.f32.mrf.mxu0
    %1288 = vdwg.mxu0
    %1289 = vmatpush.bf16.msra.mxu0 0
    %1290 = vmatpush.bf16.msra.mxu0 0
    %1291 = vmatpush.bf16.msra.mxu0 0
    %1292 = vmatpush.bf16.msra.mxu0 %v1245
    %1293 = vmatpush.bf16.msra.mxu0 %v1205
    %1294 = vmatpush.bf16.msra.mxu0 %v1200
    %1295 = vmatpush.bf16.msra.mxu0 %v1195
    %1296 = vmatpush.bf16.msra.mxu0 %v1190
    %1297 = vmatmul.bf16.gmra.mxu0 %v1233
    %v1298 = vpop.f32.mrf.mxu0
    %v1299 = vadd.f32 0.0, %v1298
    %v1300 = vpop.f32.mrf.mxu0
    %1301 = vdwg.mxu0
    %1302 = vmatpush.bf16.msra.mxu0 0
    %1303 = vmatpush.bf16.msra.mxu0 0
    %1304 = vmatpush.bf16.msra.mxu0 0
    %1305 = vmatpush.bf16.msra.mxu0 %v1248
    %1306 = vmatpush.bf16.msra.mxu0 %v1206
    %1307 = vmatpush.bf16.msra.mxu0 %v1201
    %1308 = vmatpush.bf16.msra.mxu0 %v1196
    %1309 = vmatpush.bf16.msra.mxu0 %v1191
    %1310 = vmatmul.bf16.gmra.mxu0 %v1233
    %v1311 = vpop.f32.mrf.mxu0
    %v1312 = vadd.f32 0.0, %v1311
    %v1313 = vpop.f32.mrf.mxu0
    %1314 = vdwg.mxu0
    %v1315 = vmul.f32 %v1260, %v28
    %v1316 = vmul.f32 %v1273, %v28
    %v1317 = vmul.f32 %v1286, %v28
    %v1318 = vmul.f32 %v1299, %v28
    %v1319 = vmul.f32 %v1312, %v28
    %v1320 = vrot.slane %v1315, 4
    %v1321 = vadd.f32 %v1315, %v1320
    %v1322 = vrot.slane %v1321, 2
    %v1323 = vadd.f32 %v1321, %v1322
    %v1324 = vrot.slane %v1323, 1
    %v1325 = vadd.f32 %v1323, %v1324
    %v1326 = vrot.slane %v1316, 4
    %v1327 = vadd.f32 %v1316, %v1326
    %v1328 = vrot.slane %v1327, 2
    %v1329 = vadd.f32 %v1327, %v1328
    %v1330 = vrot.slane %v1329, 1
    %v1331 = vadd.f32 %v1329, %v1330
    %v1332 = vrot.slane %v1317, 4
    %v1333 = vadd.f32 %v1317, %v1332
    %v1334 = vrot.slane %v1333, 2
    %v1335 = vadd.f32 %v1333, %v1334
    %v1336 = vrot.slane %v1335, 1
    %v1337 = vadd.f32 %v1335, %v1336
    %v1338 = vrot.slane %v1318, 4
    %v1339 = vadd.f32 %v1318, %v1338
    %v1340 = vrot.slane %v1339, 2
    %v1341 = vadd.f32 %v1339, %v1340
    %v1342 = vrot.slane %v1341, 1
    %v1343 = vadd.f32 %v1341, %v1342
    %v1344 = vsel %vm806, %v1319, 0.0
    %v1345 = vrot.slane %v1344, 4
    %v1346 = vadd.f32 %v1344, %v1345
    %v1347 = vrot.slane %v1346, 2
    %v1348 = vadd.f32 %v1346, %v1347
    %v1349 = vrot.slane %v1348, 1
    %v1350 = vadd.f32 %v1348, %v1349
    %1352 = vrot.lane.b32.xlu0 %v1325, 64
    %v1353 = vpop.permute.xlu0 %1352
    %v1355 = vadd.f32 %v1325, %v1353
    %v1356 = vadd.f32 %v1355, %v1331
    %1358 = vrot.lane.b32.xlu0 %v1331, 64
    %v1359 = vpop.permute.xlu0 %1358
    %v1361 = vadd.f32 %v1356, %v1359
    %v1362 = vadd.f32 %v1361, %v1337
    %1364 = vrot.lane.b32.xlu0 %v1337, 64
    %v1365 = vpop.permute.xlu0 %1364
    %v1367 = vadd.f32 %v1362, %v1365
    %v1368 = vadd.f32 %v1367, %v1343
    %1370 = vrot.lane.b32.xlu0 %v1343, 64
    %v1371 = vpop.permute.xlu0 %1370
    %v1373 = vadd.f32 %v1368, %v1371
    %v1374 = vadd.f32 %v1373, %v1350
    %v1375 = vmul.f32 %v1315, %v1260
    %v1376 = vmul.f32 %v1316, %v1273
    %v1377 = vmul.f32 %v1317, %v1286
    %v1378 = vmul.f32 %v1318, %v1299
    %v1379 = vmul.f32 %v1319, %v1312
    %v1380 = vrot.slane %v1375, 4
    %v1381 = vadd.f32 %v1375, %v1380
    %v1382 = vrot.slane %v1381, 2
    %v1383 = vadd.f32 %v1381, %v1382
    %v1384 = vrot.slane %v1383, 1
    %v1385 = vadd.f32 %v1383, %v1384
    %v1386 = vrot.slane %v1376, 4
    %v1387 = vadd.f32 %v1376, %v1386
    %v1388 = vrot.slane %v1387, 2
    %v1389 = vadd.f32 %v1387, %v1388
    %v1390 = vrot.slane %v1389, 1
    %v1391 = vadd.f32 %v1389, %v1390
    %v1392 = vrot.slane %v1377, 4
    %v1393 = vadd.f32 %v1377, %v1392
    %v1394 = vrot.slane %v1393, 2
    %v1395 = vadd.f32 %v1393, %v1394
    %v1396 = vrot.slane %v1395, 1
    %v1397 = vadd.f32 %v1395, %v1396
    %v1398 = vrot.slane %v1378, 4
    %v1399 = vadd.f32 %v1378, %v1398
    %v1400 = vrot.slane %v1399, 2
    %v1401 = vadd.f32 %v1399, %v1400
    %v1402 = vrot.slane %v1401, 1
    %v1403 = vadd.f32 %v1401, %v1402
    %v1404 = vsel %vm806, %v1379, 0.0
    %v1405 = vrot.slane %v1404, 4
    %v1406 = vadd.f32 %v1404, %v1405
    %v1407 = vrot.slane %v1406, 2
    %v1408 = vadd.f32 %v1406, %v1407
    %v1409 = vrot.slane %v1408, 1
    %v1410 = vadd.f32 %v1408, %v1409
    %1412 = vrot.lane.b32.xlu0 %v1385, 64
    %v1413 = vpop.permute.xlu0 %1412
    %v1415 = vadd.f32 %v1385, %v1413
    %v1416 = vadd.f32 %v1415, %v1391
    %1418 = vrot.lane.b32.xlu0 %v1391, 64
    %v1419 = vpop.permute.xlu0 %1418
    %v1421 = vadd.f32 %v1416, %v1419
    %v1422 = vadd.f32 %v1421, %v1397
    %1424 = vrot.lane.b32.xlu0 %v1397, 64
    %v1425 = vpop.permute.xlu0 %1424
    %v1427 = vadd.f32 %v1422, %v1425
    %v1428 = vadd.f32 %v1427, %v1403
    %1430 = vrot.lane.b32.xlu0 %v1403, 64
    %v1431 = vpop.permute.xlu0 %1430
    %v1433 = vadd.f32 %v1428, %v1431
    %v1434 = vadd.f32 %v1433, %v1410
    %v1435 = vmul.f32 %v1374, %v747
    %v1436 = vmul.f32 %v1434, %v747
    %v1437 = vmul.f32 %v1435, %v1435
    %v1438 = vsub.f32 %v1436, %v1437
    %v1439 = vmax.f32 %v1438, 0.0
    %v1440 = vadd.f32 %v1439, 1e-05
    %v1441 = vrsqrt.pop %v1440
    %v1442 = vmul.f32 %v1441, %v1440
    %v1443 = vmul.f32 %v1442, %v1441
    %v1444 = vmul.f32 0.5, %v1443
    %v1445 = vsub.f32 1.5, %v1444
    %v1446 = vmul.f32 %v1441, %v1445
    %vm1447 = vweird.f32 %v1440
    %vm1448 = vweird.f32 %v1441
    %vm1449 = vmor %vm1447, %vm1448
    %v1450 = vsel %vm1449, %v1441, %v1446
    %v1451 = vmul.f32 %v593, %v1450
    %v1452 = vmul.f32 %v1435, %v1451
    %v1453 = vsub.f32 %v594, %v1452
    %1455 = vrot.lane.b32.xlu0 %v1451, 64
    %v1456 = vpop.permute.xlu0 %1455
    %v1458 = vsel %vm806, %v1451, %v1456
    %v1459 = vperm.slane %v1458, 0
    %v1460 = vperm.slane %v1451, 0
    %v1461 = vmul.f32 %v1260, %v1459
    %v1462 = vmul.f32 %v1273, %v1459
    %v1463 = vmul.f32 %v1286, %v1459
    %v1464 = vmul.f32 %v1299, %v1459
    %v1465 = vmul.f32 %v1312, %v1460
    %1467 = vrot.lane.b32.xlu0 %v1453, 64
    %v1468 = vpop.permute.xlu0 %1467
    %v1470 = vsel %vm806, %v1453, %v1468
    %v1471 = vperm.slane %v1470, 0
    %v1472 = vperm.slane %v1453, 0
    %v1473 = vadd.f32 %v1461, %v1471
    %v1474 = vadd.f32 %v1462, %v1471
    %v1475 = vadd.f32 %v1463, %v1471
    %v1476 = vadd.f32 %v1464, %v1471
    %v1477 = vadd.f32 %v1465, %v1472
    %v1478 = vmax.f32 %v1473, 0.0
    %v1479 = vmax.f32 %v1474, 0.0
    %v1480 = vmax.f32 %v1475, 0.0
    %v1481 = vmax.f32 %v1476, 0.0
    %v1482 = vmax.f32 %v1477, 0.0
    %v1483 = vpack.c.bf16 %v1478, %v1478
    %v1484 = vpack.c.bf16 %v1479, %v1479
    %v1485 = vpack.c.bf16 %v1480, %v1480
    %v1486 = vpack.c.bf16 %v1481, %v1481
    %v1487 = vpack.c.bf16 %v1482, %v1482
    %v1489 = vperm.slane %v600, 0
    %v1490 = vperm.slane %v600, 1
    %v1491 = vperm.slane %v600, 2
    %v1492 = vperm.slane %v600, 3
    %v1493 = vperm.slane %v600, 4
    %v1715 = vunpack.c.l.b16 %v161
    %v1716 = vunpack.c.h.b16 %v161
    %v1717 = vunpack.c.l.b16 %v162
    %v1718 = vunpack.c.h.b16 %v162
    %v1719 = vunpack.c.l.b16 %v163
    %v1720 = vunpack.c.l.b16 %v164
    %v1721 = vunpack.c.h.b16 %v164
    %v1722 = vunpack.c.l.b16 %v165
    %v1723 = vunpack.c.h.b16 %v165
    %v1724 = vunpack.c.l.b16 %v166
    %v1725 = vunpack.c.l.b16 %v167
    %v1726 = vunpack.c.h.b16 %v167
    %v1727 = vunpack.c.l.b16 %v168
    %v1728 = vunpack.c.h.b16 %v168
    %v1729 = vunpack.c.l.b16 %v169
    %v1730 = vunpack.c.l.b16 %v170
    %v1731 = vunpack.c.h.b16 %v170
    %v1732 = vunpack.c.l.b16 %v171
    %v1733 = vunpack.c.h.b16 %v171
    %v1734 = vunpack.c.l.b16 %v172
    %v1735 = vunpack.c.l.b16 %v173
    %v1736 = vunpack.c.h.b16 %v173
    %v1737 = vunpack.c.l.b16 %v174
    %v1738 = vunpack.c.h.b16 %v174
    %v1739 = vunpack.c.l.b16 %v175
    %v1740 = vunpack.c.l.b16 %v176
    %v1741 = vunpack.c.h.b16 %v176
    %v1742 = vunpack.c.l.b16 %v177
    %v1743 = vunpack.c.h.b16 %v177
    %v1744 = vunpack.c.l.b16 %v178
    %v1745 = vunpack.c.l.b16 %v179
    %v1746 = vunpack.c.h.b16 %v179
    %v1747 = vunpack.c.l.b16 %v180
    %v1748 = vunpack.c.h.b16 %v180
    %v1749 = vunpack.c.l.b16 %v181
    %v1750 = vunpack.c.l.b16 %v182
    %v1751 = vunpack.c.h.b16 %v182
    %v1752 = vunpack.c.l.b16 %v183
    %v1753 = vunpack.c.h.b16 %v183
    %v1754 = vunpack.c.l.b16 %v184
    %v1755 = vunpack.c.l.b16 %v185
    %v1756 = vunpack.c.h.b16 %v185
    %v1757 = vunpack.c.l.b16 %v186
    %v1758 = vunpack.c.h.b16 %v186
    %v1759 = vunpack.c.l.b16 %v187
    %v1760 = vunpack.c.l.b16 %v188
    %v1761 = vunpack.c.h.b16 %v188
    %v1762 = vunpack.c.l.b16 %v189
    %v1763 = vunpack.c.h.b16 %v189
    %v1764 = vunpack.c.l.b16 %v190
    %v1765 = vunpack.c.l.b16 %v191
    %v1766 = vunpack.c.h.b16 %v191
    %v1767 = vunpack.c.l.b16 %v192
    %v1768 = vunpack.c.h.b16 %v192
    %v1769 = vunpack.c.l.b16 %v193
    %v1770 = vunpack.c.l.b16 %v194
    %v1771 = vunpack.c.h.b16 %v194
    %v1772 = vunpack.c.l.b16 %v195
    %v1773 = vunpack.c.h.b16 %v195
    %v1774 = vunpack.c.l.b16 %v196
    %v1775 = vunpack.c.l.b16 %v197
    %v1776 = vunpack.c.h.b16 %v197
    %v1777 = vunpack.c.l.b16 %v198
    %v1778 = vunpack.c.h.b16 %v198
    %v1779 = vunpack.c.l.b16 %v199
    %v1780 = vunpack.c.l.b16 %v200
    %v1781 = vunpack.c.h.b16 %v200
    %v1782 = vunpack.c.l.b16 %v201
    %v1783 = vunpack.c.h.b16 %v201
    %v1784 = vunpack.c.l.b16 %v202
    %v1785 = vunpack.c.l.b16 %v203
    %v1786 = vunpack.c.h.b16 %v203
    %v1787 = vunpack.c.l.b16 %v204
    %v1788 = vunpack.c.h.b16 %v204
    %v1789 = vunpack.c.l.b16 %v205
    %v1790 = vunpack.c.l.b16 %v206
    %v1791 = vunpack.c.h.b16 %v206
    %v1792 = vunpack.c.l.b16 %v207
    %v1793 = vunpack.c.h.b16 %v207
    %v1794 = vunpack.c.l.b16 %v208
    %v1795 = vunpack.c.l.b16 %v209
    %v1796 = vunpack.c.h.b16 %v209
    %v1797 = vunpack.c.l.b16 %v210
    %v1798 = vunpack.c.h.b16 %v210
    %v1799 = vunpack.c.l.b16 %v211
    %v1800 = vunpack.c.l.b16 %v212
    %v1801 = vunpack.c.h.b16 %v212
    %v1802 = vunpack.c.l.b16 %v213
    %v1803 = vunpack.c.h.b16 %v213
    %v1804 = vunpack.c.l.b16 %v214
    %v1805 = vunpack.c.l.b16 %v215
    %v1806 = vunpack.c.h.b16 %v215
    %v1807 = vunpack.c.l.b16 %v216
    %v1808 = vunpack.c.h.b16 %v216
    %v1809 = vunpack.c.l.b16 %v217
    %v1810 = vunpack.c.l.b16 %v218
    %v1811 = vunpack.c.h.b16 %v218
    %v1812 = vunpack.c.l.b16 %v219
    %v1813 = vunpack.c.h.b16 %v219
    %v1814 = vunpack.c.l.b16 %v220
    %v1815 = vunpack.c.l.b16 %v221
    %v1816 = vunpack.c.h.b16 %v221
    %v1817 = vunpack.c.l.b16 %v222
    %v1818 = vunpack.c.h.b16 %v222
    %v1819 = vunpack.c.l.b16 %v223
    %v1820 = vunpack.c.l.b16 %v224
    %v1821 = vunpack.c.h.b16 %v224
    %v1822 = vunpack.c.l.b16 %v225
    %v1823 = vunpack.c.h.b16 %v225
    %v1824 = vunpack.c.l.b16 %v226
    %v1825 = vunpack.c.l.b16 %v227
    %v1826 = vunpack.c.h.b16 %v227
    %v1827 = vunpack.c.l.b16 %v228
    %v1828 = vunpack.c.h.b16 %v228
    %v1829 = vunpack.c.l.b16 %v229
    %v1830 = vunpack.c.l.b16 %v230
    %v1831 = vunpack.c.h.b16 %v230
    %v1832 = vunpack.c.l.b16 %v231
    %v1833 = vunpack.c.h.b16 %v231
    %v1834 = vunpack.c.l.b16 %v232
    %v1835 = vunpack.c.l.b16 %v233
    %v1836 = vunpack.c.h.b16 %v233
    %v1837 = vunpack.c.l.b16 %v234
    %v1838 = vunpack.c.h.b16 %v234
    %v1839 = vunpack.c.l.b16 %v235
    %v1840 = vunpack.c.l.b16 %v236
    %v1841 = vunpack.c.h.b16 %v236
    %v1842 = vunpack.c.l.b16 %v237
    %v1843 = vunpack.c.h.b16 %v237
    %v1844 = vunpack.c.l.b16 %v238
    %v1845 = vunpack.c.l.b16 %v239
    %v1846 = vunpack.c.h.b16 %v239
    %v1847 = vunpack.c.l.b16 %v240
    %v1848 = vunpack.c.h.b16 %v240
    %v1849 = vunpack.c.l.b16 %v241
    %v1850 = vunpack.c.l.b16 %v242
    %v1851 = vunpack.c.h.b16 %v242
    %v1852 = vunpack.c.l.b16 %v243
    %v1853 = vunpack.c.h.b16 %v243
    %v1854 = vunpack.c.l.b16 %v244
    %v1855 = vunpack.c.l.b16 %v245
    %v1856 = vunpack.c.h.b16 %v245
    %v1857 = vunpack.c.l.b16 %v246
    %v1858 = vunpack.c.h.b16 %v246
    %v1859 = vunpack.c.l.b16 %v247
    %v1860 = vunpack.c.l.b16 %v248
    %v1861 = vunpack.c.h.b16 %v248
    %v1862 = vunpack.c.l.b16 %v249
    %v1863 = vunpack.c.h.b16 %v249
    %v1864 = vunpack.c.l.b16 %v250
    %v1865 = vunpack.c.l.b16 %v251
    %v1866 = vunpack.c.h.b16 %v251
    %v1867 = vunpack.c.l.b16 %v252
    %v1868 = vunpack.c.h.b16 %v252
    %v1869 = vunpack.c.l.b16 %v253
    %v1870 = vunpack.c.l.b16 %v254
    %v1871 = vunpack.c.h.b16 %v254
    %v1872 = vunpack.c.l.b16 %v255
    %v1873 = vunpack.c.h.b16 %v255
    %v1874 = vunpack.c.l.b16 %v256
    %v1875 = vunpack.c.l.b16 %v257
    %v1876 = vunpack.c.h.b16 %v257
    %v1877 = vunpack.c.l.b16 %v258
    %v1878 = vunpack.c.h.b16 %v258
    %v1879 = vunpack.c.l.b16 %v259
    %v1880 = vunpack.c.l.b16 %v260
    %v1881 = vunpack.c.h.b16 %v260
    %v1882 = vunpack.c.l.b16 %v261
    %v1883 = vunpack.c.h.b16 %v261
    %v1884 = vunpack.c.l.b16 %v262
    %v1885 = vunpack.c.l.b16 %v263
    %v1886 = vunpack.c.h.b16 %v263
    %v1887 = vunpack.c.l.b16 %v264
    %v1888 = vunpack.c.h.b16 %v264
    %v1889 = vunpack.c.l.b16 %v265
    %v1890 = vunpack.c.l.b16 %v266
    %v1891 = vunpack.c.h.b16 %v266
    %v1892 = vunpack.c.l.b16 %v267
    %v1893 = vunpack.c.h.b16 %v267
    %v1894 = vunpack.c.l.b16 %v268
    %v1895 = vunpack.c.l.b16 %v269
    %v1896 = vunpack.c.h.b16 %v269
    %v1897 = vunpack.c.l.b16 %v270
    %v1898 = vunpack.c.h.b16 %v270
    %v1899 = vunpack.c.l.b16 %v271
    %v1900 = vunpack.c.l.b16 %v272
    %v1901 = vunpack.c.h.b16 %v272
    %v1902 = vunpack.c.l.b16 %v273
    %v1903 = vunpack.c.h.b16 %v273
    %v1904 = vunpack.c.l.b16 %v274
    %v1905 = vunpack.c.l.b16 %v275
    %v1906 = vunpack.c.h.b16 %v275
    %v1907 = vunpack.c.l.b16 %v276
    %v1908 = vunpack.c.h.b16 %v276
    %v1909 = vunpack.c.l.b16 %v277
    %v1910 = vunpack.c.l.b16 %v278
    %v1911 = vunpack.c.h.b16 %v278
    %v1912 = vunpack.c.l.b16 %v279
    %v1913 = vunpack.c.h.b16 %v279
    %v1914 = vunpack.c.l.b16 %v280
    %v1915 = vunpack.c.l.b16 %v281
    %v1916 = vunpack.c.h.b16 %v281
    %v1917 = vunpack.c.l.b16 %v282
    %v1918 = vunpack.c.h.b16 %v282
    %v1919 = vunpack.c.l.b16 %v283
    %v1920 = vunpack.c.l.b16 %v284
    %v1921 = vunpack.c.h.b16 %v284
    %v1922 = vunpack.c.l.b16 %v285
    %v1923 = vunpack.c.h.b16 %v285
    %v1924 = vunpack.c.l.b16 %v286
    %v1925 = vunpack.c.l.b16 %v287
    %v1926 = vunpack.c.h.b16 %v287
    %v1927 = vunpack.c.l.b16 %v288
    %v1928 = vunpack.c.h.b16 %v288
    %v1929 = vunpack.c.l.b16 %v289
    %v1930 = vunpack.c.l.b16 %v290
    %v1931 = vunpack.c.h.b16 %v290
    %v1932 = vunpack.c.l.b16 %v291
    %v1933 = vunpack.c.h.b16 %v291
    %v1934 = vunpack.c.l.b16 %v292
    %v1935 = vunpack.c.l.b16 %v293
    %v1936 = vunpack.c.h.b16 %v293
    %v1937 = vunpack.c.l.b16 %v294
    %v1938 = vunpack.c.h.b16 %v294
    %v1939 = vunpack.c.l.b16 %v295
    %v1940 = vunpack.c.l.b16 %v296
    %v1941 = vunpack.c.h.b16 %v296
    %v1942 = vunpack.c.l.b16 %v297
    %v1943 = vunpack.c.h.b16 %v297
    %v1944 = vunpack.c.l.b16 %v298
    %v1945 = vunpack.c.l.b16 %v299
    %v1946 = vunpack.c.h.b16 %v299
    %v1947 = vunpack.c.l.b16 %v300
    %v1948 = vunpack.c.h.b16 %v300
    %v1949 = vunpack.c.l.b16 %v301
    %v1950 = vunpack.c.l.b16 %v302
    %v1951 = vunpack.c.h.b16 %v302
    %v1952 = vunpack.c.l.b16 %v303
    %v1953 = vunpack.c.h.b16 %v303
    %v1954 = vunpack.c.l.b16 %v304
    %v1955 = vunpack.c.l.b16 %v305
    %v1956 = vunpack.c.h.b16 %v305
    %v1957 = vunpack.c.l.b16 %v306
    %v1958 = vunpack.c.h.b16 %v306
    %v1959 = vunpack.c.l.b16 %v307
    %v1960 = vunpack.c.l.b16 %v308
    %v1961 = vunpack.c.h.b16 %v308
    %v1962 = vunpack.c.l.b16 %v309
    %v1963 = vunpack.c.h.b16 %v309
    %v1964 = vunpack.c.l.b16 %v310
    %v1965 = vunpack.c.l.b16 %v311
    %v1966 = vunpack.c.h.b16 %v311
    %v1967 = vunpack.c.l.b16 %v312
    %v1968 = vunpack.c.h.b16 %v312
    %v1969 = vunpack.c.l.b16 %v313
    %v1970 = vunpack.c.l.b16 %v314
    %v1971 = vunpack.c.h.b16 %v314
    %v1972 = vunpack.c.l.b16 %v315
    %v1973 = vunpack.c.h.b16 %v315
    %v1974 = vunpack.c.l.b16 %v316
    %v1975 = vunpack.c.l.b16 %v317
    %v1976 = vunpack.c.h.b16 %v317
    %v1977 = vunpack.c.l.b16 %v318
    %v1978 = vunpack.c.h.b16 %v318
    %v1979 = vunpack.c.l.b16 %v319
    %v1980 = vunpack.c.l.b16 %v320
    %v1981 = vunpack.c.h.b16 %v320
    %v1982 = vunpack.c.l.b16 %v321
    %v1983 = vunpack.c.h.b16 %v321
    %v1984 = vunpack.c.l.b16 %v322
    %v1985 = vunpack.c.l.b16 %v323
    %v1986 = vunpack.c.h.b16 %v323
    %v1987 = vunpack.c.l.b16 %v324
    %v1988 = vunpack.c.h.b16 %v324
    %v1989 = vunpack.c.l.b16 %v325
    %v1990 = vunpack.c.l.b16 %v326
    %v1991 = vunpack.c.h.b16 %v326
    %v1992 = vunpack.c.l.b16 %v327
    %v1993 = vunpack.c.h.b16 %v327
    %v1994 = vunpack.c.l.b16 %v328
    %v1995 = vunpack.c.l.b16 %v329
    %v1996 = vunpack.c.h.b16 %v329
    %v1997 = vunpack.c.l.b16 %v330
    %v1998 = vunpack.c.h.b16 %v330
    %v1999 = vunpack.c.l.b16 %v331
    %v2000 = vunpack.c.l.b16 %v332
    %v2001 = vunpack.c.h.b16 %v332
    %v2002 = vunpack.c.l.b16 %v333
    %v2003 = vunpack.c.h.b16 %v333
    %v2004 = vunpack.c.l.b16 %v334
    %v2005 = vunpack.c.l.b16 %v335
    %v2006 = vunpack.c.h.b16 %v335
    %v2007 = vunpack.c.l.b16 %v336
    %v2008 = vunpack.c.h.b16 %v336
    %v2009 = vunpack.c.l.b16 %v337
    %v2010 = vunpack.c.l.b16 %v338
    %v2011 = vunpack.c.h.b16 %v338
    %v2012 = vunpack.c.l.b16 %v339
    %v2013 = vunpack.c.h.b16 %v339
    %v2014 = vunpack.c.l.b16 %v340
    %v2015 = vunpack.c.l.b16 %v341
    %v2016 = vunpack.c.h.b16 %v341
    %v2017 = vunpack.c.l.b16 %v342
    %v2018 = vunpack.c.h.b16 %v342
    %v2019 = vunpack.c.l.b16 %v343
    %v2020 = vunpack.c.l.b16 %v344
    %v2021 = vunpack.c.h.b16 %v344
    %v2022 = vunpack.c.l.b16 %v345
    %v2023 = vunpack.c.h.b16 %v345
    %v2024 = vunpack.c.l.b16 %v346
    %v2025 = vunpack.c.l.b16 %v347
    %v2026 = vunpack.c.h.b16 %v347
    %v2027 = vunpack.c.l.b16 %v348
    %v2028 = vunpack.c.h.b16 %v348
    %v2029 = vunpack.c.l.b16 %v349
    %v2030 = vunpack.c.l.b16 %v350
    %v2031 = vunpack.c.h.b16 %v350
    %v2032 = vunpack.c.l.b16 %v351
    %v2033 = vunpack.c.h.b16 %v351
    %v2034 = vunpack.c.l.b16 %v352
    %v2035 = vunpack.c.l.b16 %v353
    %v2036 = vunpack.c.h.b16 %v353
    %v2037 = vunpack.c.l.b16 %v354
    %v2038 = vunpack.c.h.b16 %v354
    %v2039 = vunpack.c.l.b16 %v355
    %v2040 = vunpack.c.l.b16 %v356
    %v2041 = vunpack.c.h.b16 %v356
    %v2042 = vunpack.c.l.b16 %v357
    %v2043 = vunpack.c.h.b16 %v357
    %v2044 = vunpack.c.l.b16 %v358
    %v2045 = vunpack.c.l.b16 %v359
    %v2046 = vunpack.c.h.b16 %v359
    %v2047 = vunpack.c.l.b16 %v360
    %v2048 = vunpack.c.h.b16 %v360
    %v2049 = vunpack.c.l.b16 %v361
    %v2050 = vunpack.c.l.b16 %v362
    %v2051 = vunpack.c.h.b16 %v362
    %v2052 = vunpack.c.l.b16 %v363
    %v2053 = vunpack.c.h.b16 %v363
    %v2054 = vunpack.c.l.b16 %v364
    %v2055 = vunpack.c.l.b16 %v365
    %v2056 = vunpack.c.h.b16 %v365
    %v2057 = vunpack.c.l.b16 %v366
    %v2058 = vunpack.c.h.b16 %v366
    %v2059 = vunpack.c.l.b16 %v367
    %v2060 = vunpack.c.l.b16 %v368
    %v2061 = vunpack.c.h.b16 %v368
    %v2062 = vunpack.c.l.b16 %v369
    %v2063 = vunpack.c.h.b16 %v369
    %v2064 = vunpack.c.l.b16 %v370
    %v2065 = vunpack.c.l.b16 %v371
    %v2066 = vunpack.c.h.b16 %v371
    %v2067 = vunpack.c.l.b16 %v372
    %v2068 = vunpack.c.h.b16 %v372
    %v2069 = vunpack.c.l.b16 %v373
    %v2070 = vunpack.c.l.b16 %v374
    %v2071 = vunpack.c.h.b16 %v374
    %v2072 = vunpack.c.l.b16 %v375
    %v2073 = vunpack.c.h.b16 %v375
    %v2074 = vunpack.c.l.b16 %v376
    %v2075 = vpack.c.b16 %v1720, %v1715
    %v2076 = vpack.c.b16 %v1721, %v1716
    %v2077 = vpack.c.b16 %v1722, %v1717
    %v2078 = vpack.c.b16 %v1723, %v1718
    %v2079 = vpack.c.b16 %v1724, %v1719
    %v2080 = vpack.c.b16 %v1730, %v1725
    %v2081 = vpack.c.b16 %v1731, %v1726
    %v2082 = vpack.c.b16 %v1732, %v1727
    %v2083 = vpack.c.b16 %v1733, %v1728
    %v2084 = vpack.c.b16 %v1734, %v1729
    %v2085 = vpack.c.b16 %v1740, %v1735
    %v2086 = vpack.c.b16 %v1741, %v1736
    %v2087 = vpack.c.b16 %v1742, %v1737
    %v2088 = vpack.c.b16 %v1743, %v1738
    %v2089 = vpack.c.b16 %v1744, %v1739
    %v2090 = vpack.c.b16 %v1750, %v1745
    %v2091 = vpack.c.b16 %v1751, %v1746
    %v2092 = vpack.c.b16 %v1752, %v1747
    %v2093 = vpack.c.b16 %v1753, %v1748
    %v2094 = vpack.c.b16 %v1754, %v1749
    %v2095 = vpack.c.b16 %v1760, %v1755
    %v2096 = vpack.c.b16 %v1761, %v1756
    %v2097 = vpack.c.b16 %v1762, %v1757
    %v2098 = vpack.c.b16 %v1763, %v1758
    %v2099 = vpack.c.b16 %v1764, %v1759
    %v2100 = vpack.c.b16 %v1770, %v1765
    %v2101 = vpack.c.b16 %v1771, %v1766
    %v2102 = vpack.c.b16 %v1772, %v1767
    %v2103 = vpack.c.b16 %v1773, %v1768
    %v2104 = vpack.c.b16 %v1774, %v1769
    %v2105 = vpack.c.b16 %v1780, %v1775
    %v2106 = vpack.c.b16 %v1781, %v1776
    %v2107 = vpack.c.b16 %v1782, %v1777
    %v2108 = vpack.c.b16 %v1783, %v1778
    %v2109 = vpack.c.b16 %v1784, %v1779
    %v2110 = vpack.c.b16 %v1790, %v1785
    %v2111 = vpack.c.b16 %v1791, %v1786
    %v2112 = vpack.c.b16 %v1792, %v1787
    %v2113 = vpack.c.b16 %v1793, %v1788
    %v2114 = vpack.c.b16 %v1794, %v1789
    %v2115 = vpack.c.b16 %v1800, %v1795
    %v2116 = vpack.c.b16 %v1801, %v1796
    %v2117 = vpack.c.b16 %v1802, %v1797
    %v2118 = vpack.c.b16 %v1803, %v1798
    %v2119 = vpack.c.b16 %v1804, %v1799
    %v2120 = vpack.c.b16 %v1810, %v1805
    %v2121 = vpack.c.b16 %v1811, %v1806
    %v2122 = vpack.c.b16 %v1812, %v1807
    %v2123 = vpack.c.b16 %v1813, %v1808
    %v2124 = vpack.c.b16 %v1814, %v1809
    %v2125 = vpack.c.b16 %v1820, %v1815
    %v2126 = vpack.c.b16 %v1821, %v1816
    %v2127 = vpack.c.b16 %v1822, %v1817
    %v2128 = vpack.c.b16 %v1823, %v1818
    %v2129 = vpack.c.b16 %v1824, %v1819
    %v2130 = vpack.c.b16 %v1830, %v1825
    %v2131 = vpack.c.b16 %v1831, %v1826
    %v2132 = vpack.c.b16 %v1832, %v1827
    %v2133 = vpack.c.b16 %v1833, %v1828
    %v2134 = vpack.c.b16 %v1834, %v1829
    %v2135 = vpack.c.b16 %v1840, %v1835
    %v2136 = vpack.c.b16 %v1841, %v1836
    %v2137 = vpack.c.b16 %v1842, %v1837
    %v2138 = vpack.c.b16 %v1843, %v1838
    %v2139 = vpack.c.b16 %v1844, %v1839
    %v2140 = vpack.c.b16 %v1850, %v1845
    %v2141 = vpack.c.b16 %v1851, %v1846
    %v2142 = vpack.c.b16 %v1852, %v1847
    %v2143 = vpack.c.b16 %v1853, %v1848
    %v2144 = vpack.c.b16 %v1854, %v1849
    %v2145 = vpack.c.b16 %v1860, %v1855
    %v2146 = vpack.c.b16 %v1861, %v1856
    %v2147 = vpack.c.b16 %v1862, %v1857
    %v2148 = vpack.c.b16 %v1863, %v1858
    %v2149 = vpack.c.b16 %v1864, %v1859
    %v2150 = vpack.c.b16 %v1870, %v1865
    %v2151 = vpack.c.b16 %v1871, %v1866
    %v2152 = vpack.c.b16 %v1872, %v1867
    %v2153 = vpack.c.b16 %v1873, %v1868
    %v2154 = vpack.c.b16 %v1874, %v1869
    %v2155 = vpack.c.b16 %v1880, %v1875
    %v2156 = vpack.c.b16 %v1881, %v1876
    %v2157 = vpack.c.b16 %v1882, %v1877
    %v2158 = vpack.c.b16 %v1883, %v1878
    %v2159 = vpack.c.b16 %v1884, %v1879
    %v2160 = vpack.c.b16 %v1890, %v1885
    %v2161 = vpack.c.b16 %v1891, %v1886
    %v2162 = vpack.c.b16 %v1892, %v1887
    %v2163 = vpack.c.b16 %v1893, %v1888
    %v2164 = vpack.c.b16 %v1894, %v1889
    %v2165 = vpack.c.b16 %v1900, %v1895
    %v2166 = vpack.c.b16 %v1901, %v1896
    %v2167 = vpack.c.b16 %v1902, %v1897
    %v2168 = vpack.c.b16 %v1903, %v1898
    %v2169 = vpack.c.b16 %v1904, %v1899
    %v2170 = vpack.c.b16 %v1910, %v1905
    %v2171 = vpack.c.b16 %v1911, %v1906
    %v2172 = vpack.c.b16 %v1912, %v1907
    %v2173 = vpack.c.b16 %v1913, %v1908
    %v2174 = vpack.c.b16 %v1914, %v1909
    %v2175 = vpack.c.b16 %v1920, %v1915
    %v2176 = vpack.c.b16 %v1921, %v1916
    %v2177 = vpack.c.b16 %v1922, %v1917
    %v2178 = vpack.c.b16 %v1923, %v1918
    %v2179 = vpack.c.b16 %v1924, %v1919
    %v2180 = vpack.c.b16 %v1930, %v1925
    %v2181 = vpack.c.b16 %v1931, %v1926
    %v2182 = vpack.c.b16 %v1932, %v1927
    %v2183 = vpack.c.b16 %v1933, %v1928
    %v2184 = vpack.c.b16 %v1934, %v1929
    %v2185 = vpack.c.b16 %v1940, %v1935
    %v2186 = vpack.c.b16 %v1941, %v1936
    %v2187 = vpack.c.b16 %v1942, %v1937
    %v2188 = vpack.c.b16 %v1943, %v1938
    %v2189 = vpack.c.b16 %v1944, %v1939
    %v2190 = vpack.c.b16 %v1950, %v1945
    %v2191 = vpack.c.b16 %v1951, %v1946
    %v2192 = vpack.c.b16 %v1952, %v1947
    %v2193 = vpack.c.b16 %v1953, %v1948
    %v2194 = vpack.c.b16 %v1954, %v1949
    %v2195 = vpack.c.b16 %v1960, %v1955
    %v2196 = vpack.c.b16 %v1961, %v1956
    %v2197 = vpack.c.b16 %v1962, %v1957
    %v2198 = vpack.c.b16 %v1963, %v1958
    %v2199 = vpack.c.b16 %v1964, %v1959
    %v2200 = vpack.c.b16 %v1970, %v1965
    %v2201 = vpack.c.b16 %v1971, %v1966
    %v2202 = vpack.c.b16 %v1972, %v1967
    %v2203 = vpack.c.b16 %v1973, %v1968
    %v2204 = vpack.c.b16 %v1974, %v1969
    %v2205 = vpack.c.b16 %v1980, %v1975
    %v2206 = vpack.c.b16 %v1981, %v1976
    %v2207 = vpack.c.b16 %v1982, %v1977
    %v2208 = vpack.c.b16 %v1983, %v1978
    %v2209 = vpack.c.b16 %v1984, %v1979
    %v2210 = vpack.c.b16 %v1990, %v1985
    %v2211 = vpack.c.b16 %v1991, %v1986
    %v2212 = vpack.c.b16 %v1992, %v1987
    %v2213 = vpack.c.b16 %v1993, %v1988
    %v2214 = vpack.c.b16 %v1994, %v1989
    %v2215 = vpack.c.b16 %v2000, %v1995
    %v2216 = vpack.c.b16 %v2001, %v1996
    %v2217 = vpack.c.b16 %v2002, %v1997
    %v2218 = vpack.c.b16 %v2003, %v1998
    %v2219 = vpack.c.b16 %v2004, %v1999
    %v2220 = vpack.c.b16 %v2010, %v2005
    %v2221 = vpack.c.b16 %v2011, %v2006
    %v2222 = vpack.c.b16 %v2012, %v2007
    %v2223 = vpack.c.b16 %v2013, %v2008
    %v2224 = vpack.c.b16 %v2014, %v2009
    %v2225 = vpack.c.b16 %v2020, %v2015
    %v2226 = vpack.c.b16 %v2021, %v2016
    %v2227 = vpack.c.b16 %v2022, %v2017
    %v2228 = vpack.c.b16 %v2023, %v2018
    %v2229 = vpack.c.b16 %v2024, %v2019
    %v2230 = vpack.c.b16 %v2030, %v2025
    %v2231 = vpack.c.b16 %v2031, %v2026
    %v2232 = vpack.c.b16 %v2032, %v2027
    %v2233 = vpack.c.b16 %v2033, %v2028
    %v2234 = vpack.c.b16 %v2034, %v2029
    %v2235 = vpack.c.b16 %v2040, %v2035
    %v2236 = vpack.c.b16 %v2041, %v2036
    %v2237 = vpack.c.b16 %v2042, %v2037
    %v2238 = vpack.c.b16 %v2043, %v2038
    %v2239 = vpack.c.b16 %v2044, %v2039
    %v2240 = vpack.c.b16 %v2050, %v2045
    %v2241 = vpack.c.b16 %v2051, %v2046
    %v2242 = vpack.c.b16 %v2052, %v2047
    %v2243 = vpack.c.b16 %v2053, %v2048
    %v2244 = vpack.c.b16 %v2054, %v2049
    %v2245 = vpack.c.b16 %v2060, %v2055
    %v2246 = vpack.c.b16 %v2061, %v2056
    %v2247 = vpack.c.b16 %v2062, %v2057
    %v2248 = vpack.c.b16 %v2063, %v2058
    %v2249 = vpack.c.b16 %v2064, %v2059
    %v2250 = vpack.c.b16 %v2070, %v2065
    %v2251 = vpack.c.b16 %v2071, %v2066
    %v2252 = vpack.c.b16 %v2072, %v2067
    %v2253 = vpack.c.b16 %v2073, %v2068
    %v2254 = vpack.c.b16 %v2074, %v2069
    %v2436 = vsel %vm806, %v1487, 0
    %2438 = vmatpush.bf16.msra.mxu0 %v2110
    %2439 = vmatpush.bf16.msra.mxu0 %v2105
    %2440 = vmatpush.bf16.msra.mxu0 %v2100
    %2441 = vmatpush.bf16.msra.mxu0 %v2095
    %2442 = vmatpush.bf16.msra.mxu0 %v2090
    %2443 = vmatpush.bf16.msra.mxu0 %v2085
    %2444 = vmatpush.bf16.msra.mxu0 %v2080
    %2445 = vmatpush.bf16.msra.mxu0 %v2075
    %2446 = vmatmul.bf16.gmra.mxu0 %v1483
    %v2447 = vpop.f32.mrf.mxu0
    %v2448 = vadd.f32 %v1489, %v2447
    %v2449 = vpop.f32.mrf.mxu0
    %2450 = vdwg.mxu0
    %2451 = vmatpush.bf16.msra.mxu0 %v2150
    %2452 = vmatpush.bf16.msra.mxu0 %v2145
    %2453 = vmatpush.bf16.msra.mxu0 %v2140
    %2454 = vmatpush.bf16.msra.mxu0 %v2135
    %2455 = vmatpush.bf16.msra.mxu0 %v2130
    %2456 = vmatpush.bf16.msra.mxu0 %v2125
    %2457 = vmatpush.bf16.msra.mxu0 %v2120
    %2458 = vmatpush.bf16.msra.mxu0 %v2115
    %2459 = vmatmul.bf16.gmra.mxu0 %v1484
    %v2460 = vpop.f32.mrf.mxu0
    %v2461 = vadd.f32 %v2448, %v2460
    %v2462 = vpop.f32.mrf.mxu0
    %2463 = vdwg.mxu0
    %2464 = vmatpush.bf16.msra.mxu0 %v2190
    %2465 = vmatpush.bf16.msra.mxu0 %v2185
    %2466 = vmatpush.bf16.msra.mxu0 %v2180
    %2467 = vmatpush.bf16.msra.mxu0 %v2175
    %2468 = vmatpush.bf16.msra.mxu0 %v2170
    %2469 = vmatpush.bf16.msra.mxu0 %v2165
    %2470 = vmatpush.bf16.msra.mxu0 %v2160
    %2471 = vmatpush.bf16.msra.mxu0 %v2155
    %2472 = vmatmul.bf16.gmra.mxu0 %v1485
    %v2473 = vpop.f32.mrf.mxu0
    %v2474 = vadd.f32 %v2461, %v2473
    %v2475 = vpop.f32.mrf.mxu0
    %2476 = vdwg.mxu0
    %2477 = vmatpush.bf16.msra.mxu0 %v2230
    %2478 = vmatpush.bf16.msra.mxu0 %v2225
    %2479 = vmatpush.bf16.msra.mxu0 %v2220
    %2480 = vmatpush.bf16.msra.mxu0 %v2215
    %2481 = vmatpush.bf16.msra.mxu0 %v2210
    %2482 = vmatpush.bf16.msra.mxu0 %v2205
    %2483 = vmatpush.bf16.msra.mxu0 %v2200
    %2484 = vmatpush.bf16.msra.mxu0 %v2195
    %2485 = vmatmul.bf16.gmra.mxu0 %v1486
    %v2486 = vpop.f32.mrf.mxu0
    %v2487 = vadd.f32 %v2474, %v2486
    %v2488 = vpop.f32.mrf.mxu0
    %2489 = vdwg.mxu0
    %2490 = vmatpush.bf16.msra.mxu0 0
    %2491 = vmatpush.bf16.msra.mxu0 0
    %2492 = vmatpush.bf16.msra.mxu0 0
    %2493 = vmatpush.bf16.msra.mxu0 0
    %2494 = vmatpush.bf16.msra.mxu0 %v2250
    %2495 = vmatpush.bf16.msra.mxu0 %v2245
    %2496 = vmatpush.bf16.msra.mxu0 %v2240
    %2497 = vmatpush.bf16.msra.mxu0 %v2235
    %2498 = vmatmul.bf16.gmra.mxu0 %v2436
    %v2499 = vpop.f32.mrf.mxu0
    %v2500 = vadd.f32 %v2487, %v2499
    %v2501 = vpop.f32.mrf.mxu0
    %2502 = vdwg.mxu0
    %2503 = vmatpush.bf16.msra.mxu0 %v2111
    %2504 = vmatpush.bf16.msra.mxu0 %v2106
    %2505 = vmatpush.bf16.msra.mxu0 %v2101
    %2506 = vmatpush.bf16.msra.mxu0 %v2096
    %2507 = vmatpush.bf16.msra.mxu0 %v2091
    %2508 = vmatpush.bf16.msra.mxu0 %v2086
    %2509 = vmatpush.bf16.msra.mxu0 %v2081
    %2510 = vmatpush.bf16.msra.mxu0 %v2076
    %2511 = vmatmul.bf16.gmra.mxu0 %v1483
    %v2512 = vpop.f32.mrf.mxu0
    %v2513 = vadd.f32 %v1490, %v2512
    %v2514 = vpop.f32.mrf.mxu0
    %2515 = vdwg.mxu0
    %2516 = vmatpush.bf16.msra.mxu0 %v2151
    %2517 = vmatpush.bf16.msra.mxu0 %v2146
    %2518 = vmatpush.bf16.msra.mxu0 %v2141
    %2519 = vmatpush.bf16.msra.mxu0 %v2136
    %2520 = vmatpush.bf16.msra.mxu0 %v2131
    %2521 = vmatpush.bf16.msra.mxu0 %v2126
    %2522 = vmatpush.bf16.msra.mxu0 %v2121
    %2523 = vmatpush.bf16.msra.mxu0 %v2116
    %2524 = vmatmul.bf16.gmra.mxu0 %v1484
    %v2525 = vpop.f32.mrf.mxu0
    %v2526 = vadd.f32 %v2513, %v2525
    %v2527 = vpop.f32.mrf.mxu0
    %2528 = vdwg.mxu0
    %2529 = vmatpush.bf16.msra.mxu0 %v2191
    %2530 = vmatpush.bf16.msra.mxu0 %v2186
    %2531 = vmatpush.bf16.msra.mxu0 %v2181
    %2532 = vmatpush.bf16.msra.mxu0 %v2176
    %2533 = vmatpush.bf16.msra.mxu0 %v2171
    %2534 = vmatpush.bf16.msra.mxu0 %v2166
    %2535 = vmatpush.bf16.msra.mxu0 %v2161
    %2536 = vmatpush.bf16.msra.mxu0 %v2156
    %2537 = vmatmul.bf16.gmra.mxu0 %v1485
    %v2538 = vpop.f32.mrf.mxu0
    %v2539 = vadd.f32 %v2526, %v2538
    %v2540 = vpop.f32.mrf.mxu0
    %2541 = vdwg.mxu0
    %2542 = vmatpush.bf16.msra.mxu0 %v2231
    %2543 = vmatpush.bf16.msra.mxu0 %v2226
    %2544 = vmatpush.bf16.msra.mxu0 %v2221
    %2545 = vmatpush.bf16.msra.mxu0 %v2216
    %2546 = vmatpush.bf16.msra.mxu0 %v2211
    %2547 = vmatpush.bf16.msra.mxu0 %v2206
    %2548 = vmatpush.bf16.msra.mxu0 %v2201
    %2549 = vmatpush.bf16.msra.mxu0 %v2196
    %2550 = vmatmul.bf16.gmra.mxu0 %v1486
    %v2551 = vpop.f32.mrf.mxu0
    %v2552 = vadd.f32 %v2539, %v2551
    %v2553 = vpop.f32.mrf.mxu0
    %2554 = vdwg.mxu0
    %2555 = vmatpush.bf16.msra.mxu0 0
    %2556 = vmatpush.bf16.msra.mxu0 0
    %2557 = vmatpush.bf16.msra.mxu0 0
    %2558 = vmatpush.bf16.msra.mxu0 0
    %2559 = vmatpush.bf16.msra.mxu0 %v2251
    %2560 = vmatpush.bf16.msra.mxu0 %v2246
    %2561 = vmatpush.bf16.msra.mxu0 %v2241
    %2562 = vmatpush.bf16.msra.mxu0 %v2236
    %2563 = vmatmul.bf16.gmra.mxu0 %v2436
    %v2564 = vpop.f32.mrf.mxu0
    %v2565 = vadd.f32 %v2552, %v2564
    %v2566 = vpop.f32.mrf.mxu0
    %2567 = vdwg.mxu0
    %2568 = vmatpush.bf16.msra.mxu0 %v2112
    %2569 = vmatpush.bf16.msra.mxu0 %v2107
    %2570 = vmatpush.bf16.msra.mxu0 %v2102
    %2571 = vmatpush.bf16.msra.mxu0 %v2097
    %2572 = vmatpush.bf16.msra.mxu0 %v2092
    %2573 = vmatpush.bf16.msra.mxu0 %v2087
    %2574 = vmatpush.bf16.msra.mxu0 %v2082
    %2575 = vmatpush.bf16.msra.mxu0 %v2077
    %2576 = vmatmul.bf16.gmra.mxu0 %v1483
    %v2577 = vpop.f32.mrf.mxu0
    %v2578 = vadd.f32 %v1491, %v2577
    %v2579 = vpop.f32.mrf.mxu0
    %2580 = vdwg.mxu0
    %2581 = vmatpush.bf16.msra.mxu0 %v2152
    %2582 = vmatpush.bf16.msra.mxu0 %v2147
    %2583 = vmatpush.bf16.msra.mxu0 %v2142
    %2584 = vmatpush.bf16.msra.mxu0 %v2137
    %2585 = vmatpush.bf16.msra.mxu0 %v2132
    %2586 = vmatpush.bf16.msra.mxu0 %v2127
    %2587 = vmatpush.bf16.msra.mxu0 %v2122
    %2588 = vmatpush.bf16.msra.mxu0 %v2117
    %2589 = vmatmul.bf16.gmra.mxu0 %v1484
    %v2590 = vpop.f32.mrf.mxu0
    %v2591 = vadd.f32 %v2578, %v2590
    %v2592 = vpop.f32.mrf.mxu0
    %2593 = vdwg.mxu0
    %2594 = vmatpush.bf16.msra.mxu0 %v2192
    %2595 = vmatpush.bf16.msra.mxu0 %v2187
    %2596 = vmatpush.bf16.msra.mxu0 %v2182
    %2597 = vmatpush.bf16.msra.mxu0 %v2177
    %2598 = vmatpush.bf16.msra.mxu0 %v2172
    %2599 = vmatpush.bf16.msra.mxu0 %v2167
    %2600 = vmatpush.bf16.msra.mxu0 %v2162
    %2601 = vmatpush.bf16.msra.mxu0 %v2157
    %2602 = vmatmul.bf16.gmra.mxu0 %v1485
    %v2603 = vpop.f32.mrf.mxu0
    %v2604 = vadd.f32 %v2591, %v2603
    %v2605 = vpop.f32.mrf.mxu0
    %2606 = vdwg.mxu0
    %2607 = vmatpush.bf16.msra.mxu0 %v2232
    %2608 = vmatpush.bf16.msra.mxu0 %v2227
    %2609 = vmatpush.bf16.msra.mxu0 %v2222
    %2610 = vmatpush.bf16.msra.mxu0 %v2217
    %2611 = vmatpush.bf16.msra.mxu0 %v2212
    %2612 = vmatpush.bf16.msra.mxu0 %v2207
    %2613 = vmatpush.bf16.msra.mxu0 %v2202
    %2614 = vmatpush.bf16.msra.mxu0 %v2197
    %2615 = vmatmul.bf16.gmra.mxu0 %v1486
    %v2616 = vpop.f32.mrf.mxu0
    %v2617 = vadd.f32 %v2604, %v2616
    %v2618 = vpop.f32.mrf.mxu0
    %2619 = vdwg.mxu0
    %2620 = vmatpush.bf16.msra.mxu0 0
    %2621 = vmatpush.bf16.msra.mxu0 0
    %2622 = vmatpush.bf16.msra.mxu0 0
    %2623 = vmatpush.bf16.msra.mxu0 0
    %2624 = vmatpush.bf16.msra.mxu0 %v2252
    %2625 = vmatpush.bf16.msra.mxu0 %v2247
    %2626 = vmatpush.bf16.msra.mxu0 %v2242
    %2627 = vmatpush.bf16.msra.mxu0 %v2237
    %2628 = vmatmul.bf16.gmra.mxu0 %v2436
    %v2629 = vpop.f32.mrf.mxu0
    %v2630 = vadd.f32 %v2617, %v2629
    %v2631 = vpop.f32.mrf.mxu0
    %2632 = vdwg.mxu0
    %2633 = vmatpush.bf16.msra.mxu0 %v2113
    %2634 = vmatpush.bf16.msra.mxu0 %v2108
    %2635 = vmatpush.bf16.msra.mxu0 %v2103
    %2636 = vmatpush.bf16.msra.mxu0 %v2098
    %2637 = vmatpush.bf16.msra.mxu0 %v2093
    %2638 = vmatpush.bf16.msra.mxu0 %v2088
    %2639 = vmatpush.bf16.msra.mxu0 %v2083
    %2640 = vmatpush.bf16.msra.mxu0 %v2078
    %2641 = vmatmul.bf16.gmra.mxu0 %v1483
    %v2642 = vpop.f32.mrf.mxu0
    %v2643 = vadd.f32 %v1492, %v2642
    %v2644 = vpop.f32.mrf.mxu0
    %2645 = vdwg.mxu0
    %2646 = vmatpush.bf16.msra.mxu0 %v2153
    %2647 = vmatpush.bf16.msra.mxu0 %v2148
    %2648 = vmatpush.bf16.msra.mxu0 %v2143
    %2649 = vmatpush.bf16.msra.mxu0 %v2138
    %2650 = vmatpush.bf16.msra.mxu0 %v2133
    %2651 = vmatpush.bf16.msra.mxu0 %v2128
    %2652 = vmatpush.bf16.msra.mxu0 %v2123
    %2653 = vmatpush.bf16.msra.mxu0 %v2118
    %2654 = vmatmul.bf16.gmra.mxu0 %v1484
    %v2655 = vpop.f32.mrf.mxu0
    %v2656 = vadd.f32 %v2643, %v2655
    %v2657 = vpop.f32.mrf.mxu0
    %2658 = vdwg.mxu0
    %2659 = vmatpush.bf16.msra.mxu0 %v2193
    %2660 = vmatpush.bf16.msra.mxu0 %v2188
    %2661 = vmatpush.bf16.msra.mxu0 %v2183
    %2662 = vmatpush.bf16.msra.mxu0 %v2178
    %2663 = vmatpush.bf16.msra.mxu0 %v2173
    %2664 = vmatpush.bf16.msra.mxu0 %v2168
    %2665 = vmatpush.bf16.msra.mxu0 %v2163
    %2666 = vmatpush.bf16.msra.mxu0 %v2158
    %2667 = vmatmul.bf16.gmra.mxu0 %v1485
    %v2668 = vpop.f32.mrf.mxu0
    %v2669 = vadd.f32 %v2656, %v2668
    %v2670 = vpop.f32.mrf.mxu0
    %2671 = vdwg.mxu0
    %2672 = vmatpush.bf16.msra.mxu0 %v2233
    %2673 = vmatpush.bf16.msra.mxu0 %v2228
    %2674 = vmatpush.bf16.msra.mxu0 %v2223
    %2675 = vmatpush.bf16.msra.mxu0 %v2218
    %2676 = vmatpush.bf16.msra.mxu0 %v2213
    %2677 = vmatpush.bf16.msra.mxu0 %v2208
    %2678 = vmatpush.bf16.msra.mxu0 %v2203
    %2679 = vmatpush.bf16.msra.mxu0 %v2198
    %2680 = vmatmul.bf16.gmra.mxu0 %v1486
    %v2681 = vpop.f32.mrf.mxu0
    %v2682 = vadd.f32 %v2669, %v2681
    %v2683 = vpop.f32.mrf.mxu0
    %2684 = vdwg.mxu0
    %2685 = vmatpush.bf16.msra.mxu0 0
    %2686 = vmatpush.bf16.msra.mxu0 0
    %2687 = vmatpush.bf16.msra.mxu0 0
    %2688 = vmatpush.bf16.msra.mxu0 0
    %2689 = vmatpush.bf16.msra.mxu0 %v2253
    %2690 = vmatpush.bf16.msra.mxu0 %v2248
    %2691 = vmatpush.bf16.msra.mxu0 %v2243
    %2692 = vmatpush.bf16.msra.mxu0 %v2238
    %2693 = vmatmul.bf16.gmra.mxu0 %v2436
    %v2694 = vpop.f32.mrf.mxu0
    %v2695 = vadd.f32 %v2682, %v2694
    %v2696 = vpop.f32.mrf.mxu0
    %2697 = vdwg.mxu0
    %2698 = vmatpush.bf16.msra.mxu0 %v2114
    %2699 = vmatpush.bf16.msra.mxu0 %v2109
    %2700 = vmatpush.bf16.msra.mxu0 %v2104
    %2701 = vmatpush.bf16.msra.mxu0 %v2099
    %2702 = vmatpush.bf16.msra.mxu0 %v2094
    %2703 = vmatpush.bf16.msra.mxu0 %v2089
    %2704 = vmatpush.bf16.msra.mxu0 %v2084
    %2705 = vmatpush.bf16.msra.mxu0 %v2079
    %2706 = vmatmul.bf16.gmra.mxu0 %v1483
    %v2707 = vpop.f32.mrf.mxu0
    %v2708 = vadd.f32 %v1493, %v2707
    %v2709 = vpop.f32.mrf.mxu0
    %2710 = vdwg.mxu0
    %2711 = vmatpush.bf16.msra.mxu0 %v2154
    %2712 = vmatpush.bf16.msra.mxu0 %v2149
    %2713 = vmatpush.bf16.msra.mxu0 %v2144
    %2714 = vmatpush.bf16.msra.mxu0 %v2139
    %2715 = vmatpush.bf16.msra.mxu0 %v2134
    %2716 = vmatpush.bf16.msra.mxu0 %v2129
    %2717 = vmatpush.bf16.msra.mxu0 %v2124
    %2718 = vmatpush.bf16.msra.mxu0 %v2119
    %2719 = vmatmul.bf16.gmra.mxu0 %v1484
    %v2720 = vpop.f32.mrf.mxu0
    %v2721 = vadd.f32 %v2708, %v2720
    %v2722 = vpop.f32.mrf.mxu0
    %2723 = vdwg.mxu0
    %2724 = vmatpush.bf16.msra.mxu0 %v2194
    %2725 = vmatpush.bf16.msra.mxu0 %v2189
    %2726 = vmatpush.bf16.msra.mxu0 %v2184
    %2727 = vmatpush.bf16.msra.mxu0 %v2179
    %2728 = vmatpush.bf16.msra.mxu0 %v2174
    %2729 = vmatpush.bf16.msra.mxu0 %v2169
    %2730 = vmatpush.bf16.msra.mxu0 %v2164
    %2731 = vmatpush.bf16.msra.mxu0 %v2159
    %2732 = vmatmul.bf16.gmra.mxu0 %v1485
    %v2733 = vpop.f32.mrf.mxu0
    %v2734 = vadd.f32 %v2721, %v2733
    %v2735 = vpop.f32.mrf.mxu0
    %2736 = vdwg.mxu0
    %2737 = vmatpush.bf16.msra.mxu0 %v2234
    %2738 = vmatpush.bf16.msra.mxu0 %v2229
    %2739 = vmatpush.bf16.msra.mxu0 %v2224
    %2740 = vmatpush.bf16.msra.mxu0 %v2219
    %2741 = vmatpush.bf16.msra.mxu0 %v2214
    %2742 = vmatpush.bf16.msra.mxu0 %v2209
    %2743 = vmatpush.bf16.msra.mxu0 %v2204
    %2744 = vmatpush.bf16.msra.mxu0 %v2199
    %2745 = vmatmul.bf16.gmra.mxu0 %v1486
    %v2746 = vpop.f32.mrf.mxu0
    %v2747 = vadd.f32 %v2734, %v2746
    %v2748 = vpop.f32.mrf.mxu0
    %2749 = vdwg.mxu0
    %2750 = vmatpush.bf16.msra.mxu0 0
    %2751 = vmatpush.bf16.msra.mxu0 0
    %2752 = vmatpush.bf16.msra.mxu0 0
    %2753 = vmatpush.bf16.msra.mxu0 0
    %2754 = vmatpush.bf16.msra.mxu0 %v2254
    %2755 = vmatpush.bf16.msra.mxu0 %v2249
    %2756 = vmatpush.bf16.msra.mxu0 %v2244
    %2757 = vmatpush.bf16.msra.mxu0 %v2239
    %2758 = vmatmul.bf16.gmra.mxu0 %v2436
    %v2759 = vpop.f32.mrf.mxu0
    %v2760 = vadd.f32 %v2747, %v2759
    %v2761 = vpop.f32.mrf.mxu0
    %2762 = vdwg.mxu0
    %v2763 = vpack.c.bf16 %v2500, %v2500
    %v2764 = vpack.c.bf16 %v2565, %v2565
    %v2765 = vpack.c.bf16 %v2630, %v2630
    %v2766 = vpack.c.bf16 %v2695, %v2695
    %v2767 = vpack.c.bf16 %v2760, %v2760
    %v2984 = vunpack.c.l.b16 %v377
    %v2985 = vunpack.c.h.b16 %v377
    %v2986 = vunpack.c.l.b16 %v378
    %v2987 = vunpack.c.h.b16 %v378
    %v2988 = vunpack.c.l.b16 %v379
    %v2989 = vunpack.c.l.b16 %v380
    %v2990 = vunpack.c.h.b16 %v380
    %v2991 = vunpack.c.l.b16 %v381
    %v2992 = vunpack.c.h.b16 %v381
    %v2993 = vunpack.c.l.b16 %v382
    %v2994 = vunpack.c.l.b16 %v383
    %v2995 = vunpack.c.h.b16 %v383
    %v2996 = vunpack.c.l.b16 %v384
    %v2997 = vunpack.c.h.b16 %v384
    %v2998 = vunpack.c.l.b16 %v385
    %v2999 = vunpack.c.l.b16 %v386
    %v3000 = vunpack.c.h.b16 %v386
    %v3001 = vunpack.c.l.b16 %v387
    %v3002 = vunpack.c.h.b16 %v387
    %v3003 = vunpack.c.l.b16 %v388
    %v3004 = vunpack.c.l.b16 %v389
    %v3005 = vunpack.c.h.b16 %v389
    %v3006 = vunpack.c.l.b16 %v390
    %v3007 = vunpack.c.h.b16 %v390
    %v3008 = vunpack.c.l.b16 %v391
    %v3009 = vunpack.c.l.b16 %v392
    %v3010 = vunpack.c.h.b16 %v392
    %v3011 = vunpack.c.l.b16 %v393
    %v3012 = vunpack.c.h.b16 %v393
    %v3013 = vunpack.c.l.b16 %v394
    %v3014 = vunpack.c.l.b16 %v395
    %v3015 = vunpack.c.h.b16 %v395
    %v3016 = vunpack.c.l.b16 %v396
    %v3017 = vunpack.c.h.b16 %v396
    %v3018 = vunpack.c.l.b16 %v397
    %v3019 = vunpack.c.l.b16 %v398
    %v3020 = vunpack.c.h.b16 %v398
    %v3021 = vunpack.c.l.b16 %v399
    %v3022 = vunpack.c.h.b16 %v399
    %v3023 = vunpack.c.l.b16 %v400
    %v3024 = vunpack.c.l.b16 %v401
    %v3025 = vunpack.c.h.b16 %v401
    %v3026 = vunpack.c.l.b16 %v402
    %v3027 = vunpack.c.h.b16 %v402
    %v3028 = vunpack.c.l.b16 %v403
    %v3029 = vunpack.c.l.b16 %v404
    %v3030 = vunpack.c.h.b16 %v404
    %v3031 = vunpack.c.l.b16 %v405
    %v3032 = vunpack.c.h.b16 %v405
    %v3033 = vunpack.c.l.b16 %v406
    %v3034 = vunpack.c.l.b16 %v407
    %v3035 = vunpack.c.h.b16 %v407
    %v3036 = vunpack.c.l.b16 %v408
    %v3037 = vunpack.c.h.b16 %v408
    %v3038 = vunpack.c.l.b16 %v409
    %v3039 = vunpack.c.l.b16 %v410
    %v3040 = vunpack.c.h.b16 %v410
    %v3041 = vunpack.c.l.b16 %v411
    %v3042 = vunpack.c.h.b16 %v411
    %v3043 = vunpack.c.l.b16 %v412
    %v3044 = vunpack.c.l.b16 %v413
    %v3045 = vunpack.c.h.b16 %v413
    %v3046 = vunpack.c.l.b16 %v414
    %v3047 = vunpack.c.h.b16 %v414
    %v3048 = vunpack.c.l.b16 %v415
    %v3049 = vunpack.c.l.b16 %v416
    %v3050 = vunpack.c.h.b16 %v416
    %v3051 = vunpack.c.l.b16 %v417
    %v3052 = vunpack.c.h.b16 %v417
    %v3053 = vunpack.c.l.b16 %v418
    %v3054 = vunpack.c.l.b16 %v419
    %v3055 = vunpack.c.h.b16 %v419
    %v3056 = vunpack.c.l.b16 %v420
    %v3057 = vunpack.c.h.b16 %v420
    %v3058 = vunpack.c.l.b16 %v421
    %v3059 = vunpack.c.l.b16 %v422
    %v3060 = vunpack.c.h.b16 %v422
    %v3061 = vunpack.c.l.b16 %v423
    %v3062 = vunpack.c.h.b16 %v423
    %v3063 = vunpack.c.l.b16 %v424
    %v3064 = vunpack.c.l.b16 %v425
    %v3065 = vunpack.c.h.b16 %v425
    %v3066 = vunpack.c.l.b16 %v426
    %v3067 = vunpack.c.h.b16 %v426
    %v3068 = vunpack.c.l.b16 %v427
    %v3069 = vunpack.c.l.b16 %v428
    %v3070 = vunpack.c.h.b16 %v428
    %v3071 = vunpack.c.l.b16 %v429
    %v3072 = vunpack.c.h.b16 %v429
    %v3073 = vunpack.c.l.b16 %v430
    %v3074 = vunpack.c.l.b16 %v431
    %v3075 = vunpack.c.h.b16 %v431
    %v3076 = vunpack.c.l.b16 %v432
    %v3077 = vunpack.c.h.b16 %v432
    %v3078 = vunpack.c.l.b16 %v433
    %v3079 = vunpack.c.l.b16 %v434
    %v3080 = vunpack.c.h.b16 %v434
    %v3081 = vunpack.c.l.b16 %v435
    %v3082 = vunpack.c.h.b16 %v435
    %v3083 = vunpack.c.l.b16 %v436
    %v3084 = vunpack.c.l.b16 %v437
    %v3085 = vunpack.c.h.b16 %v437
    %v3086 = vunpack.c.l.b16 %v438
    %v3087 = vunpack.c.h.b16 %v438
    %v3088 = vunpack.c.l.b16 %v439
    %v3089 = vunpack.c.l.b16 %v440
    %v3090 = vunpack.c.h.b16 %v440
    %v3091 = vunpack.c.l.b16 %v441
    %v3092 = vunpack.c.h.b16 %v441
    %v3093 = vunpack.c.l.b16 %v442
    %v3094 = vunpack.c.l.b16 %v443
    %v3095 = vunpack.c.h.b16 %v443
    %v3096 = vunpack.c.l.b16 %v444
    %v3097 = vunpack.c.h.b16 %v444
    %v3098 = vunpack.c.l.b16 %v445
    %v3099 = vunpack.c.l.b16 %v446
    %v3100 = vunpack.c.h.b16 %v446
    %v3101 = vunpack.c.l.b16 %v447
    %v3102 = vunpack.c.h.b16 %v447
    %v3103 = vunpack.c.l.b16 %v448
    %v3104 = vunpack.c.l.b16 %v449
    %v3105 = vunpack.c.h.b16 %v449
    %v3106 = vunpack.c.l.b16 %v450
    %v3107 = vunpack.c.h.b16 %v450
    %v3108 = vunpack.c.l.b16 %v451
    %v3109 = vunpack.c.l.b16 %v452
    %v3110 = vunpack.c.h.b16 %v452
    %v3111 = vunpack.c.l.b16 %v453
    %v3112 = vunpack.c.h.b16 %v453
    %v3113 = vunpack.c.l.b16 %v454
    %v3114 = vunpack.c.l.b16 %v455
    %v3115 = vunpack.c.h.b16 %v455
    %v3116 = vunpack.c.l.b16 %v456
    %v3117 = vunpack.c.h.b16 %v456
    %v3118 = vunpack.c.l.b16 %v457
    %v3119 = vunpack.c.l.b16 %v458
    %v3120 = vunpack.c.h.b16 %v458
    %v3121 = vunpack.c.l.b16 %v459
    %v3122 = vunpack.c.h.b16 %v459
    %v3123 = vunpack.c.l.b16 %v460
    %v3124 = vunpack.c.l.b16 %v461
    %v3125 = vunpack.c.h.b16 %v461
    %v3126 = vunpack.c.l.b16 %v462
    %v3127 = vunpack.c.h.b16 %v462
    %v3128 = vunpack.c.l.b16 %v463
    %v3129 = vunpack.c.l.b16 %v464
    %v3130 = vunpack.c.h.b16 %v464
    %v3131 = vunpack.c.l.b16 %v465
    %v3132 = vunpack.c.h.b16 %v465
    %v3133 = vunpack.c.l.b16 %v466
    %v3134 = vunpack.c.l.b16 %v467
    %v3135 = vunpack.c.h.b16 %v467
    %v3136 = vunpack.c.l.b16 %v468
    %v3137 = vunpack.c.h.b16 %v468
    %v3138 = vunpack.c.l.b16 %v469
    %v3139 = vunpack.c.l.b16 %v470
    %v3140 = vunpack.c.h.b16 %v470
    %v3141 = vunpack.c.l.b16 %v471
    %v3142 = vunpack.c.h.b16 %v471
    %v3143 = vunpack.c.l.b16 %v472
    %v3144 = vunpack.c.l.b16 %v473
    %v3145 = vunpack.c.h.b16 %v473
    %v3146 = vunpack.c.l.b16 %v474
    %v3147 = vunpack.c.h.b16 %v474
    %v3148 = vunpack.c.l.b16 %v475
    %v3149 = vunpack.c.l.b16 %v476
    %v3150 = vunpack.c.h.b16 %v476
    %v3151 = vunpack.c.l.b16 %v477
    %v3152 = vunpack.c.h.b16 %v477
    %v3153 = vunpack.c.l.b16 %v478
    %v3154 = vunpack.c.l.b16 %v479
    %v3155 = vunpack.c.h.b16 %v479
    %v3156 = vunpack.c.l.b16 %v480
    %v3157 = vunpack.c.h.b16 %v480
    %v3158 = vunpack.c.l.b16 %v481
    %v3159 = vunpack.c.l.b16 %v482
    %v3160 = vunpack.c.h.b16 %v482
    %v3161 = vunpack.c.l.b16 %v483
    %v3162 = vunpack.c.h.b16 %v483
    %v3163 = vunpack.c.l.b16 %v484
    %v3164 = vunpack.c.l.b16 %v485
    %v3165 = vunpack.c.h.b16 %v485
    %v3166 = vunpack.c.l.b16 %v486
    %v3167 = vunpack.c.h.b16 %v486
    %v3168 = vunpack.c.l.b16 %v487
    %v3169 = vunpack.c.l.b16 %v488
    %v3170 = vunpack.c.h.b16 %v488
    %v3171 = vunpack.c.l.b16 %v489
    %v3172 = vunpack.c.h.b16 %v489
    %v3173 = vunpack.c.l.b16 %v490
    %v3174 = vunpack.c.l.b16 %v491
    %v3175 = vunpack.c.h.b16 %v491
    %v3176 = vunpack.c.l.b16 %v492
    %v3177 = vunpack.c.h.b16 %v492
    %v3178 = vunpack.c.l.b16 %v493
    %v3179 = vunpack.c.l.b16 %v494
    %v3180 = vunpack.c.h.b16 %v494
    %v3181 = vunpack.c.l.b16 %v495
    %v3182 = vunpack.c.h.b16 %v495
    %v3183 = vunpack.c.l.b16 %v496
    %v3184 = vunpack.c.l.b16 %v497
    %v3185 = vunpack.c.h.b16 %v497
    %v3186 = vunpack.c.l.b16 %v498
    %v3187 = vunpack.c.h.b16 %v498
    %v3188 = vunpack.c.l.b16 %v499
    %v3189 = vunpack.c.l.b16 %v500
    %v3190 = vunpack.c.h.b16 %v500
    %v3191 = vunpack.c.l.b16 %v501
    %v3192 = vunpack.c.h.b16 %v501
    %v3193 = vunpack.c.l.b16 %v502
    %v3194 = vunpack.c.l.b16 %v503
    %v3195 = vunpack.c.h.b16 %v503
    %v3196 = vunpack.c.l.b16 %v504
    %v3197 = vunpack.c.h.b16 %v504
    %v3198 = vunpack.c.l.b16 %v505
    %v3199 = vunpack.c.l.b16 %v506
    %v3200 = vunpack.c.h.b16 %v506
    %v3201 = vunpack.c.l.b16 %v507
    %v3202 = vunpack.c.h.b16 %v507
    %v3203 = vunpack.c.l.b16 %v508
    %v3204 = vunpack.c.l.b16 %v509
    %v3205 = vunpack.c.h.b16 %v509
    %v3206 = vunpack.c.l.b16 %v510
    %v3207 = vunpack.c.h.b16 %v510
    %v3208 = vunpack.c.l.b16 %v511
    %v3209 = vunpack.c.l.b16 %v512
    %v3210 = vunpack.c.h.b16 %v512
    %v3211 = vunpack.c.l.b16 %v513
    %v3212 = vunpack.c.h.b16 %v513
    %v3213 = vunpack.c.l.b16 %v514
    %v3214 = vunpack.c.l.b16 %v515
    %v3215 = vunpack.c.h.b16 %v515
    %v3216 = vunpack.c.l.b16 %v516
    %v3217 = vunpack.c.h.b16 %v516
    %v3218 = vunpack.c.l.b16 %v517
    %v3219 = vunpack.c.l.b16 %v518
    %v3220 = vunpack.c.h.b16 %v518
    %v3221 = vunpack.c.l.b16 %v519
    %v3222 = vunpack.c.h.b16 %v519
    %v3223 = vunpack.c.l.b16 %v520
    %v3224 = vunpack.c.l.b16 %v521
    %v3225 = vunpack.c.h.b16 %v521
    %v3226 = vunpack.c.l.b16 %v522
    %v3227 = vunpack.c.h.b16 %v522
    %v3228 = vunpack.c.l.b16 %v523
    %v3229 = vunpack.c.l.b16 %v524
    %v3230 = vunpack.c.h.b16 %v524
    %v3231 = vunpack.c.l.b16 %v525
    %v3232 = vunpack.c.h.b16 %v525
    %v3233 = vunpack.c.l.b16 %v526
    %v3234 = vunpack.c.l.b16 %v527
    %v3235 = vunpack.c.h.b16 %v527
    %v3236 = vunpack.c.l.b16 %v528
    %v3237 = vunpack.c.h.b16 %v528
    %v3238 = vunpack.c.l.b16 %v529
    %v3239 = vunpack.c.l.b16 %v530
    %v3240 = vunpack.c.h.b16 %v530
    %v3241 = vunpack.c.l.b16 %v531
    %v3242 = vunpack.c.h.b16 %v531
    %v3243 = vunpack.c.l.b16 %v532
    %v3244 = vunpack.c.l.b16 %v533
    %v3245 = vunpack.c.h.b16 %v533
    %v3246 = vunpack.c.l.b16 %v534
    %v3247 = vunpack.c.h.b16 %v534
    %v3248 = vunpack.c.l.b16 %v535
    %v3249 = vunpack.c.l.b16 %v536
    %v3250 = vunpack.c.h.b16 %v536
    %v3251 = vunpack.c.l.b16 %v537
    %v3252 = vunpack.c.h.b16 %v537
    %v3253 = vunpack.c.l.b16 %v538
    %v3254 = vunpack.c.l.b16 %v539
    %v3255 = vunpack.c.h.b16 %v539
    %v3256 = vunpack.c.l.b16 %v540
    %v3257 = vunpack.c.h.b16 %v540
    %v3258 = vunpack.c.l.b16 %v541
    %v3259 = vunpack.c.l.b16 %v542
    %v3260 = vunpack.c.h.b16 %v542
    %v3261 = vunpack.c.l.b16 %v543
    %v3262 = vunpack.c.h.b16 %v543
    %v3263 = vunpack.c.l.b16 %v544
    %v3264 = vunpack.c.l.b16 %v545
    %v3265 = vunpack.c.h.b16 %v545
    %v3266 = vunpack.c.l.b16 %v546
    %v3267 = vunpack.c.h.b16 %v546
    %v3268 = vunpack.c.l.b16 %v547
    %v3269 = vunpack.c.l.b16 %v548
    %v3270 = vunpack.c.h.b16 %v548
    %v3271 = vunpack.c.l.b16 %v549
    %v3272 = vunpack.c.h.b16 %v549
    %v3273 = vunpack.c.l.b16 %v550
    %v3274 = vunpack.c.l.b16 %v551
    %v3275 = vunpack.c.h.b16 %v551
    %v3276 = vunpack.c.l.b16 %v552
    %v3277 = vunpack.c.h.b16 %v552
    %v3278 = vunpack.c.l.b16 %v553
    %v3279 = vunpack.c.l.b16 %v554
    %v3280 = vunpack.c.h.b16 %v554
    %v3281 = vunpack.c.l.b16 %v555
    %v3282 = vunpack.c.h.b16 %v555
    %v3283 = vunpack.c.l.b16 %v556
    %v3284 = vunpack.c.l.b16 %v557
    %v3285 = vunpack.c.h.b16 %v557
    %v3286 = vunpack.c.l.b16 %v558
    %v3287 = vunpack.c.h.b16 %v558
    %v3288 = vunpack.c.l.b16 %v559
    %v3289 = vunpack.c.l.b16 %v560
    %v3290 = vunpack.c.h.b16 %v560
    %v3291 = vunpack.c.l.b16 %v561
    %v3292 = vunpack.c.h.b16 %v561
    %v3293 = vunpack.c.l.b16 %v562
    %v3294 = vunpack.c.l.b16 %v563
    %v3295 = vunpack.c.h.b16 %v563
    %v3296 = vunpack.c.l.b16 %v564
    %v3297 = vunpack.c.h.b16 %v564
    %v3298 = vunpack.c.l.b16 %v565
    %v3299 = vunpack.c.l.b16 %v566
    %v3300 = vunpack.c.h.b16 %v566
    %v3301 = vunpack.c.l.b16 %v567
    %v3302 = vunpack.c.h.b16 %v567
    %v3303 = vunpack.c.l.b16 %v568
    %v3304 = vunpack.c.l.b16 %v569
    %v3305 = vunpack.c.h.b16 %v569
    %v3306 = vunpack.c.l.b16 %v570
    %v3307 = vunpack.c.h.b16 %v570
    %v3308 = vunpack.c.l.b16 %v571
    %v3309 = vunpack.c.l.b16 %v572
    %v3310 = vunpack.c.h.b16 %v572
    %v3311 = vunpack.c.l.b16 %v573
    %v3312 = vunpack.c.h.b16 %v573
    %v3313 = vunpack.c.l.b16 %v574
    %v3314 = vunpack.c.l.b16 %v575
    %v3315 = vunpack.c.h.b16 %v575
    %v3316 = vunpack.c.l.b16 %v576
    %v3317 = vunpack.c.h.b16 %v576
    %v3318 = vunpack.c.l.b16 %v577
    %v3319 = vunpack.c.l.b16 %v578
    %v3320 = vunpack.c.h.b16 %v578
    %v3321 = vunpack.c.l.b16 %v579
    %v3322 = vunpack.c.h.b16 %v579
    %v3323 = vunpack.c.l.b16 %v580
    %v3324 = vunpack.c.l.b16 %v581
    %v3325 = vunpack.c.h.b16 %v581
    %v3326 = vunpack.c.l.b16 %v582
    %v3327 = vunpack.c.h.b16 %v582
    %v3328 = vunpack.c.l.b16 %v583
    %v3329 = vunpack.c.l.b16 %v584
    %v3330 = vunpack.c.h.b16 %v584
    %v3331 = vunpack.c.l.b16 %v585
    %v3332 = vunpack.c.h.b16 %v585
    %v3333 = vunpack.c.l.b16 %v586
    %v3334 = vunpack.c.l.b16 %v587
    %v3335 = vunpack.c.h.b16 %v587
    %v3336 = vunpack.c.l.b16 %v588
    %v3337 = vunpack.c.h.b16 %v588
    %v3338 = vunpack.c.l.b16 %v589
    %v3339 = vunpack.c.l.b16 %v590
    %v3340 = vunpack.c.h.b16 %v590
    %v3341 = vunpack.c.l.b16 %v591
    %v3342 = vunpack.c.h.b16 %v591
    %v3343 = vunpack.c.l.b16 %v592
    %v3344 = vpack.c.b16 %v2989, %v2984
    %v3345 = vpack.c.b16 %v2990, %v2985
    %v3346 = vpack.c.b16 %v2991, %v2986
    %v3347 = vpack.c.b16 %v2992, %v2987
    %v3348 = vpack.c.b16 %v2993, %v2988
    %v3349 = vpack.c.b16 %v2999, %v2994
    %v3350 = vpack.c.b16 %v3000, %v2995
    %v3351 = vpack.c.b16 %v3001, %v2996
    %v3352 = vpack.c.b16 %v3002, %v2997
    %v3353 = vpack.c.b16 %v3003, %v2998
    %v3354 = vpack.c.b16 %v3009, %v3004
    %v3355 = vpack.c.b16 %v3010, %v3005
    %v3356 = vpack.c.b16 %v3011, %v3006
    %v3357 = vpack.c.b16 %v3012, %v3007
    %v3358 = vpack.c.b16 %v3013, %v3008
    %v3359 = vpack.c.b16 %v3019, %v3014
    %v3360 = vpack.c.b16 %v3020, %v3015
    %v3361 = vpack.c.b16 %v3021, %v3016
    %v3362 = vpack.c.b16 %v3022, %v3017
    %v3363 = vpack.c.b16 %v3023, %v3018
    %v3364 = vpack.c.b16 %v3029, %v3024
    %v3365 = vpack.c.b16 %v3030, %v3025
    %v3366 = vpack.c.b16 %v3031, %v3026
    %v3367 = vpack.c.b16 %v3032, %v3027
    %v3368 = vpack.c.b16 %v3033, %v3028
    %v3369 = vpack.c.b16 %v3039, %v3034
    %v3370 = vpack.c.b16 %v3040, %v3035
    %v3371 = vpack.c.b16 %v3041, %v3036
    %v3372 = vpack.c.b16 %v3042, %v3037
    %v3373 = vpack.c.b16 %v3043, %v3038
    %v3374 = vpack.c.b16 %v3049, %v3044
    %v3375 = vpack.c.b16 %v3050, %v3045
    %v3376 = vpack.c.b16 %v3051, %v3046
    %v3377 = vpack.c.b16 %v3052, %v3047
    %v3378 = vpack.c.b16 %v3053, %v3048
    %v3379 = vpack.c.b16 %v3059, %v3054
    %v3380 = vpack.c.b16 %v3060, %v3055
    %v3381 = vpack.c.b16 %v3061, %v3056
    %v3382 = vpack.c.b16 %v3062, %v3057
    %v3383 = vpack.c.b16 %v3063, %v3058
    %v3384 = vpack.c.b16 %v3069, %v3064
    %v3385 = vpack.c.b16 %v3070, %v3065
    %v3386 = vpack.c.b16 %v3071, %v3066
    %v3387 = vpack.c.b16 %v3072, %v3067
    %v3388 = vpack.c.b16 %v3073, %v3068
    %v3389 = vpack.c.b16 %v3079, %v3074
    %v3390 = vpack.c.b16 %v3080, %v3075
    %v3391 = vpack.c.b16 %v3081, %v3076
    %v3392 = vpack.c.b16 %v3082, %v3077
    %v3393 = vpack.c.b16 %v3083, %v3078
    %v3394 = vpack.c.b16 %v3089, %v3084
    %v3395 = vpack.c.b16 %v3090, %v3085
    %v3396 = vpack.c.b16 %v3091, %v3086
    %v3397 = vpack.c.b16 %v3092, %v3087
    %v3398 = vpack.c.b16 %v3093, %v3088
    %v3399 = vpack.c.b16 %v3099, %v3094
    %v3400 = vpack.c.b16 %v3100, %v3095
    %v3401 = vpack.c.b16 %v3101, %v3096
    %v3402 = vpack.c.b16 %v3102, %v3097
    %v3403 = vpack.c.b16 %v3103, %v3098
    %v3404 = vpack.c.b16 %v3109, %v3104
    %v3405 = vpack.c.b16 %v3110, %v3105
    %v3406 = vpack.c.b16 %v3111, %v3106
    %v3407 = vpack.c.b16 %v3112, %v3107
    %v3408 = vpack.c.b16 %v3113, %v3108
    %v3409 = vpack.c.b16 %v3119, %v3114
    %v3410 = vpack.c.b16 %v3120, %v3115
    %v3411 = vpack.c.b16 %v3121, %v3116
    %v3412 = vpack.c.b16 %v3122, %v3117
    %v3413 = vpack.c.b16 %v3123, %v3118
    %v3414 = vpack.c.b16 %v3129, %v3124
    %v3415 = vpack.c.b16 %v3130, %v3125
    %v3416 = vpack.c.b16 %v3131, %v3126
    %v3417 = vpack.c.b16 %v3132, %v3127
    %v3418 = vpack.c.b16 %v3133, %v3128
    %v3419 = vpack.c.b16 %v3139, %v3134
    %v3420 = vpack.c.b16 %v3140, %v3135
    %v3421 = vpack.c.b16 %v3141, %v3136
    %v3422 = vpack.c.b16 %v3142, %v3137
    %v3423 = vpack.c.b16 %v3143, %v3138
    %v3424 = vpack.c.b16 %v3149, %v3144
    %v3425 = vpack.c.b16 %v3150, %v3145
    %v3426 = vpack.c.b16 %v3151, %v3146
    %v3427 = vpack.c.b16 %v3152, %v3147
    %v3428 = vpack.c.b16 %v3153, %v3148
    %v3429 = vpack.c.b16 %v3159, %v3154
    %v3430 = vpack.c.b16 %v3160, %v3155
    %v3431 = vpack.c.b16 %v3161, %v3156
    %v3432 = vpack.c.b16 %v3162, %v3157
    %v3433 = vpack.c.b16 %v3163, %v3158
    %v3434 = vpack.c.b16 %v3169, %v3164
    %v3435 = vpack.c.b16 %v3170, %v3165
    %v3436 = vpack.c.b16 %v3171, %v3166
    %v3437 = vpack.c.b16 %v3172, %v3167
    %v3438 = vpack.c.b16 %v3173, %v3168
    %v3439 = vpack.c.b16 %v3179, %v3174
    %v3440 = vpack.c.b16 %v3180, %v3175
    %v3441 = vpack.c.b16 %v3181, %v3176
    %v3442 = vpack.c.b16 %v3182, %v3177
    %v3443 = vpack.c.b16 %v3183, %v3178
    %v3444 = vpack.c.b16 %v3189, %v3184
    %v3445 = vpack.c.b16 %v3190, %v3185
    %v3446 = vpack.c.b16 %v3191, %v3186
    %v3447 = vpack.c.b16 %v3192, %v3187
    %v3448 = vpack.c.b16 %v3193, %v3188
    %v3449 = vpack.c.b16 %v3199, %v3194
    %v3450 = vpack.c.b16 %v3200, %v3195
    %v3451 = vpack.c.b16 %v3201, %v3196
    %v3452 = vpack.c.b16 %v3202, %v3197
    %v3453 = vpack.c.b16 %v3203, %v3198
    %v3454 = vpack.c.b16 %v3209, %v3204
    %v3455 = vpack.c.b16 %v3210, %v3205
    %v3456 = vpack.c.b16 %v3211, %v3206
    %v3457 = vpack.c.b16 %v3212, %v3207
    %v3458 = vpack.c.b16 %v3213, %v3208
    %v3459 = vpack.c.b16 %v3219, %v3214
    %v3460 = vpack.c.b16 %v3220, %v3215
    %v3461 = vpack.c.b16 %v3221, %v3216
    %v3462 = vpack.c.b16 %v3222, %v3217
    %v3463 = vpack.c.b16 %v3223, %v3218
    %v3464 = vpack.c.b16 %v3229, %v3224
    %v3465 = vpack.c.b16 %v3230, %v3225
    %v3466 = vpack.c.b16 %v3231, %v3226
    %v3467 = vpack.c.b16 %v3232, %v3227
    %v3468 = vpack.c.b16 %v3233, %v3228
    %v3469 = vpack.c.b16 %v3239, %v3234
    %v3470 = vpack.c.b16 %v3240, %v3235
    %v3471 = vpack.c.b16 %v3241, %v3236
    %v3472 = vpack.c.b16 %v3242, %v3237
    %v3473 = vpack.c.b16 %v3243, %v3238
    %v3474 = vpack.c.b16 %v3249, %v3244
    %v3475 = vpack.c.b16 %v3250, %v3245
    %v3476 = vpack.c.b16 %v3251, %v3246
    %v3477 = vpack.c.b16 %v3252, %v3247
    %v3478 = vpack.c.b16 %v3253, %v3248
    %v3479 = vpack.c.b16 %v3259, %v3254
    %v3480 = vpack.c.b16 %v3260, %v3255
    %v3481 = vpack.c.b16 %v3261, %v3256
    %v3482 = vpack.c.b16 %v3262, %v3257
    %v3483 = vpack.c.b16 %v3263, %v3258
    %v3484 = vpack.c.b16 %v3269, %v3264
    %v3485 = vpack.c.b16 %v3270, %v3265
    %v3486 = vpack.c.b16 %v3271, %v3266
    %v3487 = vpack.c.b16 %v3272, %v3267
    %v3488 = vpack.c.b16 %v3273, %v3268
    %v3489 = vpack.c.b16 %v3279, %v3274
    %v3490 = vpack.c.b16 %v3280, %v3275
    %v3491 = vpack.c.b16 %v3281, %v3276
    %v3492 = vpack.c.b16 %v3282, %v3277
    %v3493 = vpack.c.b16 %v3283, %v3278
    %v3494 = vpack.c.b16 %v3289, %v3284
    %v3495 = vpack.c.b16 %v3290, %v3285
    %v3496 = vpack.c.b16 %v3291, %v3286
    %v3497 = vpack.c.b16 %v3292, %v3287
    %v3498 = vpack.c.b16 %v3293, %v3288
    %v3499 = vpack.c.b16 %v3299, %v3294
    %v3500 = vpack.c.b16 %v3300, %v3295
    %v3501 = vpack.c.b16 %v3301, %v3296
    %v3502 = vpack.c.b16 %v3302, %v3297
    %v3503 = vpack.c.b16 %v3303, %v3298
    %v3504 = vpack.c.b16 %v3309, %v3304
    %v3505 = vpack.c.b16 %v3310, %v3305
    %v3506 = vpack.c.b16 %v3311, %v3306
    %v3507 = vpack.c.b16 %v3312, %v3307
    %v3508 = vpack.c.b16 %v3313, %v3308
    %v3509 = vpack.c.b16 %v3319, %v3314
    %v3510 = vpack.c.b16 %v3320, %v3315
    %v3511 = vpack.c.b16 %v3321, %v3316
    %v3512 = vpack.c.b16 %v3322, %v3317
    %v3513 = vpack.c.b16 %v3323, %v3318
    %v3514 = vpack.c.b16 %v3329, %v3324
    %v3515 = vpack.c.b16 %v3330, %v3325
    %v3516 = vpack.c.b16 %v3331, %v3326
    %v3517 = vpack.c.b16 %v3332, %v3327
    %v3518 = vpack.c.b16 %v3333, %v3328
    %v3519 = vpack.c.b16 %v3339, %v3334
    %v3520 = vpack.c.b16 %v3340, %v3335
    %v3521 = vpack.c.b16 %v3341, %v3336
    %v3522 = vpack.c.b16 %v3342, %v3337
    %v3523 = vpack.c.b16 %v3343, %v3338
    %v3705 = vsel %vm806, %v2767, 0
    %3707 = vmatpush.bf16.msra.mxu0 %v3379
    %3708 = vmatpush.bf16.msra.mxu0 %v3374
    %3709 = vmatpush.bf16.msra.mxu0 %v3369
    %3710 = vmatpush.bf16.msra.mxu0 %v3364
    %3711 = vmatpush.bf16.msra.mxu0 %v3359
    %3712 = vmatpush.bf16.msra.mxu0 %v3354
    %3713 = vmatpush.bf16.msra.mxu0 %v3349
    %3714 = vmatpush.bf16.msra.mxu0 %v3344
    %3715 = vmatmul.bf16.gmra.mxu0 %v2763
    %v3716 = vpop.f32.mrf.mxu0
    %v3717 = vadd.f32 0.0, %v3716
    %v3718 = vpop.f32.mrf.mxu0
    %3719 = vdwg.mxu0
    %3720 = vmatpush.bf16.msra.mxu0 %v3419
    %3721 = vmatpush.bf16.msra.mxu0 %v3414
    %3722 = vmatpush.bf16.msra.mxu0 %v3409
    %3723 = vmatpush.bf16.msra.mxu0 %v3404
    %3724 = vmatpush.bf16.msra.mxu0 %v3399
    %3725 = vmatpush.bf16.msra.mxu0 %v3394
    %3726 = vmatpush.bf16.msra.mxu0 %v3389
    %3727 = vmatpush.bf16.msra.mxu0 %v3384
    %3728 = vmatmul.bf16.gmra.mxu0 %v2764
    %v3729 = vpop.f32.mrf.mxu0
    %v3730 = vadd.f32 %v3717, %v3729
    %v3731 = vpop.f32.mrf.mxu0
    %3732 = vdwg.mxu0
    %3733 = vmatpush.bf16.msra.mxu0 %v3459
    %3734 = vmatpush.bf16.msra.mxu0 %v3454
    %3735 = vmatpush.bf16.msra.mxu0 %v3449
    %3736 = vmatpush.bf16.msra.mxu0 %v3444
    %3737 = vmatpush.bf16.msra.mxu0 %v3439
    %3738 = vmatpush.bf16.msra.mxu0 %v3434
    %3739 = vmatpush.bf16.msra.mxu0 %v3429
    %3740 = vmatpush.bf16.msra.mxu0 %v3424
    %3741 = vmatmul.bf16.gmra.mxu0 %v2765
    %v3742 = vpop.f32.mrf.mxu0
    %v3743 = vadd.f32 %v3730, %v3742
    %v3744 = vpop.f32.mrf.mxu0
    %3745 = vdwg.mxu0
    %3746 = vmatpush.bf16.msra.mxu0 %v3499
    %3747 = vmatpush.bf16.msra.mxu0 %v3494
    %3748 = vmatpush.bf16.msra.mxu0 %v3489
    %3749 = vmatpush.bf16.msra.mxu0 %v3484
    %3750 = vmatpush.bf16.msra.mxu0 %v3479
    %3751 = vmatpush.bf16.msra.mxu0 %v3474
    %3752 = vmatpush.bf16.msra.mxu0 %v3469
    %3753 = vmatpush.bf16.msra.mxu0 %v3464
    %3754 = vmatmul.bf16.gmra.mxu0 %v2766
    %v3755 = vpop.f32.mrf.mxu0
    %v3756 = vadd.f32 %v3743, %v3755
    %v3757 = vpop.f32.mrf.mxu0
    %3758 = vdwg.mxu0
    %3759 = vmatpush.bf16.msra.mxu0 0
    %3760 = vmatpush.bf16.msra.mxu0 0
    %3761 = vmatpush.bf16.msra.mxu0 0
    %3762 = vmatpush.bf16.msra.mxu0 0
    %3763 = vmatpush.bf16.msra.mxu0 %v3519
    %3764 = vmatpush.bf16.msra.mxu0 %v3514
    %3765 = vmatpush.bf16.msra.mxu0 %v3509
    %3766 = vmatpush.bf16.msra.mxu0 %v3504
    %3767 = vmatmul.bf16.gmra.mxu0 %v3705
    %v3768 = vpop.f32.mrf.mxu0
    %v3769 = vadd.f32 %v3756, %v3768
    %v3770 = vpop.f32.mrf.mxu0
    %3771 = vdwg.mxu0
    %3772 = vmatpush.bf16.msra.mxu0 %v3380
    %3773 = vmatpush.bf16.msra.mxu0 %v3375
    %3774 = vmatpush.bf16.msra.mxu0 %v3370
    %3775 = vmatpush.bf16.msra.mxu0 %v3365
    %3776 = vmatpush.bf16.msra.mxu0 %v3360
    %3777 = vmatpush.bf16.msra.mxu0 %v3355
    %3778 = vmatpush.bf16.msra.mxu0 %v3350
    %3779 = vmatpush.bf16.msra.mxu0 %v3345
    %3780 = vmatmul.bf16.gmra.mxu0 %v2763
    %v3781 = vpop.f32.mrf.mxu0
    %v3782 = vadd.f32 0.0, %v3781
    %v3783 = vpop.f32.mrf.mxu0
    %3784 = vdwg.mxu0
    %3785 = vmatpush.bf16.msra.mxu0 %v3420
    %3786 = vmatpush.bf16.msra.mxu0 %v3415
    %3787 = vmatpush.bf16.msra.mxu0 %v3410
    %3788 = vmatpush.bf16.msra.mxu0 %v3405
    %3789 = vmatpush.bf16.msra.mxu0 %v3400
    %3790 = vmatpush.bf16.msra.mxu0 %v3395
    %3791 = vmatpush.bf16.msra.mxu0 %v3390
    %3792 = vmatpush.bf16.msra.mxu0 %v3385
    %3793 = vmatmul.bf16.gmra.mxu0 %v2764
    %v3794 = vpop.f32.mrf.mxu0
    %v3795 = vadd.f32 %v3782, %v3794
    %v3796 = vpop.f32.mrf.mxu0
    %3797 = vdwg.mxu0
    %3798 = vmatpush.bf16.msra.mxu0 %v3460
    %3799 = vmatpush.bf16.msra.mxu0 %v3455
    %3800 = vmatpush.bf16.msra.mxu0 %v3450
    %3801 = vmatpush.bf16.msra.mxu0 %v3445
    %3802 = vmatpush.bf16.msra.mxu0 %v3440
    %3803 = vmatpush.bf16.msra.mxu0 %v3435
    %3804 = vmatpush.bf16.msra.mxu0 %v3430
    %3805 = vmatpush.bf16.msra.mxu0 %v3425
    %3806 = vmatmul.bf16.gmra.mxu0 %v2765
    %v3807 = vpop.f32.mrf.mxu0
    %v3808 = vadd.f32 %v3795, %v3807
    %v3809 = vpop.f32.mrf.mxu0
    %3810 = vdwg.mxu0
    %3811 = vmatpush.bf16.msra.mxu0 %v3500
    %3812 = vmatpush.bf16.msra.mxu0 %v3495
    %3813 = vmatpush.bf16.msra.mxu0 %v3490
    %3814 = vmatpush.bf16.msra.mxu0 %v3485
    %3815 = vmatpush.bf16.msra.mxu0 %v3480
    %3816 = vmatpush.bf16.msra.mxu0 %v3475
    %3817 = vmatpush.bf16.msra.mxu0 %v3470
    %3818 = vmatpush.bf16.msra.mxu0 %v3465
    %3819 = vmatmul.bf16.gmra.mxu0 %v2766
    %v3820 = vpop.f32.mrf.mxu0
    %v3821 = vadd.f32 %v3808, %v3820
    %v3822 = vpop.f32.mrf.mxu0
    %3823 = vdwg.mxu0
    %3824 = vmatpush.bf16.msra.mxu0 0
    %3825 = vmatpush.bf16.msra.mxu0 0
    %3826 = vmatpush.bf16.msra.mxu0 0
    %3827 = vmatpush.bf16.msra.mxu0 0
    %3828 = vmatpush.bf16.msra.mxu0 %v3520
    %3829 = vmatpush.bf16.msra.mxu0 %v3515
    %3830 = vmatpush.bf16.msra.mxu0 %v3510
    %3831 = vmatpush.bf16.msra.mxu0 %v3505
    %3832 = vmatmul.bf16.gmra.mxu0 %v3705
    %v3833 = vpop.f32.mrf.mxu0
    %v3834 = vadd.f32 %v3821, %v3833
    %v3835 = vpop.f32.mrf.mxu0
    %3836 = vdwg.mxu0
    %3837 = vmatpush.bf16.msra.mxu0 %v3381
    %3838 = vmatpush.bf16.msra.mxu0 %v3376
    %3839 = vmatpush.bf16.msra.mxu0 %v3371
    %3840 = vmatpush.bf16.msra.mxu0 %v3366
    %3841 = vmatpush.bf16.msra.mxu0 %v3361
    %3842 = vmatpush.bf16.msra.mxu0 %v3356
    %3843 = vmatpush.bf16.msra.mxu0 %v3351
    %3844 = vmatpush.bf16.msra.mxu0 %v3346
    %3845 = vmatmul.bf16.gmra.mxu0 %v2763
    %v3846 = vpop.f32.mrf.mxu0
    %v3847 = vadd.f32 0.0, %v3846
    %v3848 = vpop.f32.mrf.mxu0
    %3849 = vdwg.mxu0
    %3850 = vmatpush.bf16.msra.mxu0 %v3421
    %3851 = vmatpush.bf16.msra.mxu0 %v3416
    %3852 = vmatpush.bf16.msra.mxu0 %v3411
    %3853 = vmatpush.bf16.msra.mxu0 %v3406
    %3854 = vmatpush.bf16.msra.mxu0 %v3401
    %3855 = vmatpush.bf16.msra.mxu0 %v3396
    %3856 = vmatpush.bf16.msra.mxu0 %v3391
    %3857 = vmatpush.bf16.msra.mxu0 %v3386
    %3858 = vmatmul.bf16.gmra.mxu0 %v2764
    %v3859 = vpop.f32.mrf.mxu0
    %v3860 = vadd.f32 %v3847, %v3859
    %v3861 = vpop.f32.mrf.mxu0
    %3862 = vdwg.mxu0
    %3863 = vmatpush.bf16.msra.mxu0 %v3461
    %3864 = vmatpush.bf16.msra.mxu0 %v3456
    %3865 = vmatpush.bf16.msra.mxu0 %v3451
    %3866 = vmatpush.bf16.msra.mxu0 %v3446
    %3867 = vmatpush.bf16.msra.mxu0 %v3441
    %3868 = vmatpush.bf16.msra.mxu0 %v3436
    %3869 = vmatpush.bf16.msra.mxu0 %v3431
    %3870 = vmatpush.bf16.msra.mxu0 %v3426
    %3871 = vmatmul.bf16.gmra.mxu0 %v2765
    %v3872 = vpop.f32.mrf.mxu0
    %v3873 = vadd.f32 %v3860, %v3872
    %v3874 = vpop.f32.mrf.mxu0
    %3875 = vdwg.mxu0
    %3876 = vmatpush.bf16.msra.mxu0 %v3501
    %3877 = vmatpush.bf16.msra.mxu0 %v3496
    %3878 = vmatpush.bf16.msra.mxu0 %v3491
    %3879 = vmatpush.bf16.msra.mxu0 %v3486
    %3880 = vmatpush.bf16.msra.mxu0 %v3481
    %3881 = vmatpush.bf16.msra.mxu0 %v3476
    %3882 = vmatpush.bf16.msra.mxu0 %v3471
    %3883 = vmatpush.bf16.msra.mxu0 %v3466
    %3884 = vmatmul.bf16.gmra.mxu0 %v2766
    %v3885 = vpop.f32.mrf.mxu0
    %v3886 = vadd.f32 %v3873, %v3885
    %v3887 = vpop.f32.mrf.mxu0
    %3888 = vdwg.mxu0
    %3889 = vmatpush.bf16.msra.mxu0 0
    %3890 = vmatpush.bf16.msra.mxu0 0
    %3891 = vmatpush.bf16.msra.mxu0 0
    %3892 = vmatpush.bf16.msra.mxu0 0
    %3893 = vmatpush.bf16.msra.mxu0 %v3521
    %3894 = vmatpush.bf16.msra.mxu0 %v3516
    %3895 = vmatpush.bf16.msra.mxu0 %v3511
    %3896 = vmatpush.bf16.msra.mxu0 %v3506
    %3897 = vmatmul.bf16.gmra.mxu0 %v3705
    %v3898 = vpop.f32.mrf.mxu0
    %v3899 = vadd.f32 %v3886, %v3898
    %v3900 = vpop.f32.mrf.mxu0
    %3901 = vdwg.mxu0
    %3902 = vmatpush.bf16.msra.mxu0 %v3382
    %3903 = vmatpush.bf16.msra.mxu0 %v3377
    %3904 = vmatpush.bf16.msra.mxu0 %v3372
    %3905 = vmatpush.bf16.msra.mxu0 %v3367
    %3906 = vmatpush.bf16.msra.mxu0 %v3362
    %3907 = vmatpush.bf16.msra.mxu0 %v3357
    %3908 = vmatpush.bf16.msra.mxu0 %v3352
    %3909 = vmatpush.bf16.msra.mxu0 %v3347
    %3910 = vmatmul.bf16.gmra.mxu0 %v2763
    %v3911 = vpop.f32.mrf.mxu0
    %v3912 = vadd.f32 0.0, %v3911
    %v3913 = vpop.f32.mrf.mxu0
    %3914 = vdwg.mxu0
    %3915 = vmatpush.bf16.msra.mxu0 %v3422
    %3916 = vmatpush.bf16.msra.mxu0 %v3417
    %3917 = vmatpush.bf16.msra.mxu0 %v3412
    %3918 = vmatpush.bf16.msra.mxu0 %v3407
    %3919 = vmatpush.bf16.msra.mxu0 %v3402
    %3920 = vmatpush.bf16.msra.mxu0 %v3397
    %3921 = vmatpush.bf16.msra.mxu0 %v3392
    %3922 = vmatpush.bf16.msra.mxu0 %v3387
    %3923 = vmatmul.bf16.gmra.mxu0 %v2764
    %v3924 = vpop.f32.mrf.mxu0
    %v3925 = vadd.f32 %v3912, %v3924
    %v3926 = vpop.f32.mrf.mxu0
    %3927 = vdwg.mxu0
    %3928 = vmatpush.bf16.msra.mxu0 %v3462
    %3929 = vmatpush.bf16.msra.mxu0 %v3457
    %3930 = vmatpush.bf16.msra.mxu0 %v3452
    %3931 = vmatpush.bf16.msra.mxu0 %v3447
    %3932 = vmatpush.bf16.msra.mxu0 %v3442
    %3933 = vmatpush.bf16.msra.mxu0 %v3437
    %3934 = vmatpush.bf16.msra.mxu0 %v3432
    %3935 = vmatpush.bf16.msra.mxu0 %v3427
    %3936 = vmatmul.bf16.gmra.mxu0 %v2765
    %v3937 = vpop.f32.mrf.mxu0
    %v3938 = vadd.f32 %v3925, %v3937
    %v3939 = vpop.f32.mrf.mxu0
    %3940 = vdwg.mxu0
    %3941 = vmatpush.bf16.msra.mxu0 %v3502
    %3942 = vmatpush.bf16.msra.mxu0 %v3497
    %3943 = vmatpush.bf16.msra.mxu0 %v3492
    %3944 = vmatpush.bf16.msra.mxu0 %v3487
    %3945 = vmatpush.bf16.msra.mxu0 %v3482
    %3946 = vmatpush.bf16.msra.mxu0 %v3477
    %3947 = vmatpush.bf16.msra.mxu0 %v3472
    %3948 = vmatpush.bf16.msra.mxu0 %v3467
    %3949 = vmatmul.bf16.gmra.mxu0 %v2766
    %v3950 = vpop.f32.mrf.mxu0
    %v3951 = vadd.f32 %v3938, %v3950
    %v3952 = vpop.f32.mrf.mxu0
    %3953 = vdwg.mxu0
    %3954 = vmatpush.bf16.msra.mxu0 0
    %3955 = vmatpush.bf16.msra.mxu0 0
    %3956 = vmatpush.bf16.msra.mxu0 0
    %3957 = vmatpush.bf16.msra.mxu0 0
    %3958 = vmatpush.bf16.msra.mxu0 %v3522
    %3959 = vmatpush.bf16.msra.mxu0 %v3517
    %3960 = vmatpush.bf16.msra.mxu0 %v3512
    %3961 = vmatpush.bf16.msra.mxu0 %v3507
    %3962 = vmatmul.bf16.gmra.mxu0 %v3705
    %v3963 = vpop.f32.mrf.mxu0
    %v3964 = vadd.f32 %v3951, %v3963
    %v3965 = vpop.f32.mrf.mxu0
    %3966 = vdwg.mxu0
    %3967 = vmatpush.bf16.msra.mxu0 %v3383
    %3968 = vmatpush.bf16.msra.mxu0 %v3378
    %3969 = vmatpush.bf16.msra.mxu0 %v3373
    %3970 = vmatpush.bf16.msra.mxu0 %v3368
    %3971 = vmatpush.bf16.msra.mxu0 %v3363
    %3972 = vmatpush.bf16.msra.mxu0 %v3358
    %3973 = vmatpush.bf16.msra.mxu0 %v3353
    %3974 = vmatpush.bf16.msra.mxu0 %v3348
    %3975 = vmatmul.bf16.gmra.mxu0 %v2763
    %v3976 = vpop.f32.mrf.mxu0
    %v3977 = vadd.f32 0.0, %v3976
    %v3978 = vpop.f32.mrf.mxu0
    %3979 = vdwg.mxu0
    %3980 = vmatpush.bf16.msra.mxu0 %v3423
    %3981 = vmatpush.bf16.msra.mxu0 %v3418
    %3982 = vmatpush.bf16.msra.mxu0 %v3413
    %3983 = vmatpush.bf16.msra.mxu0 %v3408
    %3984 = vmatpush.bf16.msra.mxu0 %v3403
    %3985 = vmatpush.bf16.msra.mxu0 %v3398
    %3986 = vmatpush.bf16.msra.mxu0 %v3393
    %3987 = vmatpush.bf16.msra.mxu0 %v3388
    %3988 = vmatmul.bf16.gmra.mxu0 %v2764
    %v3989 = vpop.f32.mrf.mxu0
    %v3990 = vadd.f32 %v3977, %v3989
    %v3991 = vpop.f32.mrf.mxu0
    %3992 = vdwg.mxu0
    %3993 = vmatpush.bf16.msra.mxu0 %v3463
    %3994 = vmatpush.bf16.msra.mxu0 %v3458
    %3995 = vmatpush.bf16.msra.mxu0 %v3453
    %3996 = vmatpush.bf16.msra.mxu0 %v3448
    %3997 = vmatpush.bf16.msra.mxu0 %v3443
    %3998 = vmatpush.bf16.msra.mxu0 %v3438
    %3999 = vmatpush.bf16.msra.mxu0 %v3433
    %4000 = vmatpush.bf16.msra.mxu0 %v3428
    %4001 = vmatmul.bf16.gmra.mxu0 %v2765
    %v4002 = vpop.f32.mrf.mxu0
    %v4003 = vadd.f32 %v3990, %v4002
    %v4004 = vpop.f32.mrf.mxu0
    %4005 = vdwg.mxu0
    %4006 = vmatpush.bf16.msra.mxu0 %v3503
    %4007 = vmatpush.bf16.msra.mxu0 %v3498
    %4008 = vmatpush.bf16.msra.mxu0 %v3493
    %4009 = vmatpush.bf16.msra.mxu0 %v3488
    %4010 = vmatpush.bf16.msra.mxu0 %v3483
    %4011 = vmatpush.bf16.msra.mxu0 %v3478
    %4012 = vmatpush.bf16.msra.mxu0 %v3473
    %4013 = vmatpush.bf16.msra.mxu0 %v3468
    %4014 = vmatmul.bf16.gmra.mxu0 %v2766
    %v4015 = vpop.f32.mrf.mxu0
    %v4016 = vadd.f32 %v4003, %v4015
    %v4017 = vpop.f32.mrf.mxu0
    %4018 = vdwg.mxu0
    %4019 = vmatpush.bf16.msra.mxu0 0
    %4020 = vmatpush.bf16.msra.mxu0 0
    %4021 = vmatpush.bf16.msra.mxu0 0
    %4022 = vmatpush.bf16.msra.mxu0 0
    %4023 = vmatpush.bf16.msra.mxu0 %v3523
    %4024 = vmatpush.bf16.msra.mxu0 %v3518
    %4025 = vmatpush.bf16.msra.mxu0 %v3513
    %4026 = vmatpush.bf16.msra.mxu0 %v3508
    %4027 = vmatmul.bf16.gmra.mxu0 %v3705
    %v4028 = vpop.f32.mrf.mxu0
    %v4029 = vadd.f32 %v4016, %v4028
    %v4030 = vpop.f32.mrf.mxu0
    %4031 = vdwg.mxu0
    %v4032 = vadd.f32 %v1478, %v3769
    %v4033 = vadd.f32 %v1479, %v3834
    %v4034 = vadd.f32 %v1480, %v3899
    %v4035 = vadd.f32 %v1481, %v3964
    %v4036 = vadd.f32 %v1482, %v4029
    %v4037 = vmul.f32 %v4032, %v28
    %v4038 = vmul.f32 %v4033, %v28
    %v4039 = vmul.f32 %v4034, %v28
    %v4040 = vmul.f32 %v4035, %v28
    %v4041 = vmul.f32 %v4036, %v28
    %v4042 = vrot.slane %v4037, 4
    %v4043 = vadd.f32 %v4037, %v4042
    %v4044 = vrot.slane %v4043, 2
    %v4045 = vadd.f32 %v4043, %v4044
    %v4046 = vrot.slane %v4045, 1
    %v4047 = vadd.f32 %v4045, %v4046
    %v4048 = vrot.slane %v4038, 4
    %v4049 = vadd.f32 %v4038, %v4048
    %v4050 = vrot.slane %v4049, 2
    %v4051 = vadd.f32 %v4049, %v4050
    %v4052 = vrot.slane %v4051, 1
    %v4053 = vadd.f32 %v4051, %v4052
    %v4054 = vrot.slane %v4039, 4
    %v4055 = vadd.f32 %v4039, %v4054
    %v4056 = vrot.slane %v4055, 2
    %v4057 = vadd.f32 %v4055, %v4056
    %v4058 = vrot.slane %v4057, 1
    %v4059 = vadd.f32 %v4057, %v4058
    %v4060 = vrot.slane %v4040, 4
    %v4061 = vadd.f32 %v4040, %v4060
    %v4062 = vrot.slane %v4061, 2
    %v4063 = vadd.f32 %v4061, %v4062
    %v4064 = vrot.slane %v4063, 1
    %v4065 = vadd.f32 %v4063, %v4064
    %v4066 = vsel %vm806, %v4041, 0.0
    %v4067 = vrot.slane %v4066, 4
    %v4068 = vadd.f32 %v4066, %v4067
    %v4069 = vrot.slane %v4068, 2
    %v4070 = vadd.f32 %v4068, %v4069
    %v4071 = vrot.slane %v4070, 1
    %v4072 = vadd.f32 %v4070, %v4071
    %4074 = vrot.lane.b32.xlu0 %v4047, 64
    %v4075 = vpop.permute.xlu0 %4074
    %v4077 = vadd.f32 %v4047, %v4075
    %v4078 = vadd.f32 %v4077, %v4053
    %4080 = vrot.lane.b32.xlu0 %v4053, 64
    %v4081 = vpop.permute.xlu0 %4080
    %v4083 = vadd.f32 %v4078, %v4081
    %v4084 = vadd.f32 %v4083, %v4059
    %4086 = vrot.lane.b32.xlu0 %v4059, 64
    %v4087 = vpop.permute.xlu0 %4086
    %v4089 = vadd.f32 %v4084, %v4087
    %v4090 = vadd.f32 %v4089, %v4065
    %4092 = vrot.lane.b32.xlu0 %v4065, 64
    %v4093 = vpop.permute.xlu0 %4092
    %v4095 = vadd.f32 %v4090, %v4093
    %v4096 = vadd.f32 %v4095, %v4072
    %v4097 = vmul.f32 %v4037, %v4032
    %v4098 = vmul.f32 %v4038, %v4033
    %v4099 = vmul.f32 %v4039, %v4034
    %v4100 = vmul.f32 %v4040, %v4035
    %v4101 = vmul.f32 %v4041, %v4036
    %v4102 = vrot.slane %v4097, 4
    %v4103 = vadd.f32 %v4097, %v4102
    %v4104 = vrot.slane %v4103, 2
    %v4105 = vadd.f32 %v4103, %v4104
    %v4106 = vrot.slane %v4105, 1
    %v4107 = vadd.f32 %v4105, %v4106
    %v4108 = vrot.slane %v4098, 4
    %v4109 = vadd.f32 %v4098, %v4108
    %v4110 = vrot.slane %v4109, 2
    %v4111 = vadd.f32 %v4109, %v4110
    %v4112 = vrot.slane %v4111, 1
    %v4113 = vadd.f32 %v4111, %v4112
    %v4114 = vrot.slane %v4099, 4
    %v4115 = vadd.f32 %v4099, %v4114
    %v4116 = vrot.slane %v4115, 2
    %v4117 = vadd.f32 %v4115, %v4116
    %v4118 = vrot.slane %v4117, 1
    %v4119 = vadd.f32 %v4117, %v4118
    %v4120 = vrot.slane %v4100, 4
    %v4121 = vadd.f32 %v4100, %v4120
    %v4122 = vrot.slane %v4121, 2
    %v4123 = vadd.f32 %v4121, %v4122
    %v4124 = vrot.slane %v4123, 1
    %v4125 = vadd.f32 %v4123, %v4124
    %v4126 = vsel %vm806, %v4101, 0.0
    %v4127 = vrot.slane %v4126, 4
    %v4128 = vadd.f32 %v4126, %v4127
    %v4129 = vrot.slane %v4128, 2
    %v4130 = vadd.f32 %v4128, %v4129
    %v4131 = vrot.slane %v4130, 1
    %v4132 = vadd.f32 %v4130, %v4131
    %4134 = vrot.lane.b32.xlu0 %v4107, 64
    %v4135 = vpop.permute.xlu0 %4134
    %v4137 = vadd.f32 %v4107, %v4135
    %v4138 = vadd.f32 %v4137, %v4113
    %4140 = vrot.lane.b32.xlu0 %v4113, 64
    %v4141 = vpop.permute.xlu0 %4140
    %v4143 = vadd.f32 %v4138, %v4141
    %v4144 = vadd.f32 %v4143, %v4119
    %4146 = vrot.lane.b32.xlu0 %v4119, 64
    %v4147 = vpop.permute.xlu0 %4146
    %v4149 = vadd.f32 %v4144, %v4147
    %v4150 = vadd.f32 %v4149, %v4125
    %4152 = vrot.lane.b32.xlu0 %v4125, 64
    %v4153 = vpop.permute.xlu0 %4152
    %v4155 = vadd.f32 %v4150, %v4153
    %v4156 = vadd.f32 %v4155, %v4132
    %v4157 = vmul.f32 %v4096, %v747
    %v4158 = vmul.f32 %v4156, %v747
    %v4159 = vmul.f32 %v4157, %v4157
    %v4160 = vsub.f32 %v4158, %v4159
    %v4161 = vmax.f32 %v4160, 0.0
    %v4162 = vadd.f32 %v4161, 1e-05
    %v4163 = vrsqrt.pop %v4162
    %v4164 = vmul.f32 %v4163, %v4162
    %v4165 = vmul.f32 %v4164, %v4163
    %v4166 = vmul.f32 0.5, %v4165
    %v4167 = vsub.f32 1.5, %v4166
    %v4168 = vmul.f32 %v4163, %v4167
    %vm4169 = vweird.f32 %v4162
    %vm4170 = vweird.f32 %v4163
    %vm4171 = vmor %vm4169, %vm4170
    %v4172 = vsel %vm4171, %v4163, %v4168
    %v4173 = vmul.f32 %v595, %v4172
    %v4174 = vmul.f32 %v4157, %v4173
    %v4175 = vsub.f32 %v596, %v4174
    %4177 = vrot.lane.b32.xlu0 %v4173, 64
    %v4178 = vpop.permute.xlu0 %4177
    %v4180 = vsel %vm806, %v4173, %v4178
    %v4181 = vperm.slane %v4180, 0
    %v4182 = vperm.slane %v4173, 0
    %v4183 = vmul.f32 %v4032, %v4181
    %v4184 = vmul.f32 %v4033, %v4181
    %v4185 = vmul.f32 %v4034, %v4181
    %v4186 = vmul.f32 %v4035, %v4181
    %v4187 = vmul.f32 %v4036, %v4182
    %4189 = vrot.lane.b32.xlu0 %v4175, 64
    %v4190 = vpop.permute.xlu0 %4189
    %v4192 = vsel %vm806, %v4175, %v4190
    %v4193 = vperm.slane %v4192, 0
    %v4194 = vperm.slane %v4175, 0
    %v4195 = vadd.f32 %v4183, %v4193
    %v4196 = vadd.f32 %v4184, %v4193
    %v4197 = vadd.f32 %v4185, %v4193
    %v4198 = vadd.f32 %v4186, %v4193
    %v4199 = vadd.f32 %v4187, %v4194
    %v4200 = vmax.f32 %v4195, 0.0
    %v4201 = vmax.f32 %v4196, 0.0
    %v4202 = vmax.f32 %v4197, 0.0
    %v4203 = vmax.f32 %v4198, 0.0
    %v4204 = vmax.f32 %v4199, 0.0
    %v4205 = vpack.c.bf16 %v4200, %v4200
    %v4206 = vpack.c.bf16 %v4201, %v4201
    %v4207 = vpack.c.bf16 %v4202, %v4202
    %v4208 = vpack.c.bf16 %v4203, %v4203
    %v4209 = vpack.c.bf16 %v4204, %v4204
    %v4282 = vunpack.c.l.b16 %v52
    %v4283 = vunpack.c.l.b16 %v53
    %v4284 = vunpack.c.l.b16 %v54
    %v4285 = vunpack.c.l.b16 %v55
    %v4286 = vunpack.c.l.b16 %v56
    %v4287 = vunpack.c.l.b16 %v57
    %v4288 = vunpack.c.l.b16 %v58
    %v4289 = vunpack.c.l.b16 %v59
    %v4290 = vunpack.c.l.b16 %v60
    %v4291 = vunpack.c.l.b16 %v61
    %v4292 = vunpack.c.l.b16 %v62
    %v4293 = vunpack.c.l.b16 %v63
    %v4294 = vunpack.c.l.b16 %v64
    %v4295 = vunpack.c.l.b16 %v65
    %v4296 = vunpack.c.l.b16 %v66
    %v4297 = vunpack.c.l.b16 %v67
    %v4298 = vunpack.c.l.b16 %v68
    %v4299 = vunpack.c.l.b16 %v69
    %v4300 = vunpack.c.l.b16 %v70
    %v4301 = vunpack.c.l.b16 %v71
    %v4302 = vunpack.c.l.b16 %v72
    %v4303 = vunpack.c.l.b16 %v73
    %v4304 = vunpack.c.l.b16 %v74
    %v4305 = vunpack.c.l.b16 %v75
    %v4306 = vunpack.c.l.b16 %v76
    %v4307 = vunpack.c.l.b16 %v77
    %v4308 = vunpack.c.l.b16 %v78
    %v4309 = vunpack.c.l.b16 %v79
    %v4310 = vunpack.c.l.b16 %v80
    %v4311 = vunpack.c.l.b16 %v81
    %v4312 = vunpack.c.l.b16 %v82
    %v4313 = vunpack.c.l.b16 %v83
    %v4314 = vunpack.c.l.b16 %v84
    %v4315 = vunpack.c.l.b16 %v85
    %v4316 = vunpack.c.l.b16 %v86
    %v4317 = vunpack.c.l.b16 %v87
    %v4318 = vunpack.c.l.b16 %v88
    %v4319 = vunpack.c.l.b16 %v89
    %v4320 = vunpack.c.l.b16 %v90
    %v4321 = vunpack.c.l.b16 %v91
    %v4322 = vunpack.c.l.b16 %v92
    %v4323 = vunpack.c.l.b16 %v93
    %v4324 = vunpack.c.l.b16 %v94
    %v4325 = vunpack.c.l.b16 %v95
    %v4326 = vunpack.c.l.b16 %v96
    %v4327 = vunpack.c.l.b16 %v97
    %v4328 = vunpack.c.l.b16 %v98
    %v4329 = vunpack.c.l.b16 %v99
    %v4330 = vunpack.c.l.b16 %v100
    %v4331 = vunpack.c.l.b16 %v101
    %v4332 = vunpack.c.l.b16 %v102
    %v4333 = vunpack.c.l.b16 %v103
    %v4334 = vunpack.c.l.b16 %v104
    %v4335 = vunpack.c.l.b16 %v105
    %v4336 = vunpack.c.l.b16 %v106
    %v4337 = vunpack.c.l.b16 %v107
    %v4338 = vunpack.c.l.b16 %v108
    %v4339 = vunpack.c.l.b16 %v109
    %v4340 = vunpack.c.l.b16 %v110
    %v4341 = vunpack.c.l.b16 %v111
    %v4342 = vunpack.c.l.b16 %v112
    %v4343 = vunpack.c.l.b16 %v113
    %v4344 = vunpack.c.l.b16 %v114
    %v4345 = vunpack.c.l.b16 %v115
    %v4346 = vunpack.c.l.b16 %v116
    %v4347 = vunpack.c.l.b16 %v117
    %v4348 = vunpack.c.l.b16 %v118
    %v4349 = vunpack.c.l.b16 %v119
    %v4350 = vunpack.c.l.b16 %v120
    %v4351 = vunpack.c.l.b16 %v121
    %v4352 = vunpack.c.l.b16 %v122
    %v4353 = vunpack.c.l.b16 %v123
    %v4354 = vpack.c.b16 %v4283, %v4282
    %v4355 = vpack.c.b16 %v4285, %v4284
    %v4356 = vpack.c.b16 %v4287, %v4286
    %v4357 = vpack.c.b16 %v4289, %v4288
    %v4358 = vpack.c.b16 %v4291, %v4290
    %v4359 = vpack.c.b16 %v4293, %v4292
    %v4360 = vpack.c.b16 %v4295, %v4294
    %v4361 = vpack.c.b16 %v4297, %v4296
    %v4362 = vpack.c.b16 %v4299, %v4298
    %v4363 = vpack.c.b16 %v4301, %v4300
    %v4364 = vpack.c.b16 %v4303, %v4302
    %v4365 = vpack.c.b16 %v4305, %v4304
    %v4366 = vpack.c.b16 %v4307, %v4306
    %v4367 = vpack.c.b16 %v4309, %v4308
    %v4368 = vpack.c.b16 %v4311, %v4310
    %v4369 = vpack.c.b16 %v4313, %v4312
    %v4370 = vpack.c.b16 %v4315, %v4314
    %v4371 = vpack.c.b16 %v4317, %v4316
    %v4372 = vpack.c.b16 %v4319, %v4318
    %v4373 = vpack.c.b16 %v4321, %v4320
    %v4374 = vpack.c.b16 %v4323, %v4322
    %v4375 = vpack.c.b16 %v4325, %v4324
    %v4376 = vpack.c.b16 %v4327, %v4326
    %v4377 = vpack.c.b16 %v4329, %v4328
    %v4378 = vpack.c.b16 %v4331, %v4330
    %v4379 = vpack.c.b16 %v4333, %v4332
    %v4380 = vpack.c.b16 %v4335, %v4334
    %v4381 = vpack.c.b16 %v4337, %v4336
    %v4382 = vpack.c.b16 %v4339, %v4338
    %v4383 = vpack.c.b16 %v4341, %v4340
    %v4384 = vpack.c.b16 %v4343, %v4342
    %v4385 = vpack.c.b16 %v4345, %v4344
    %v4386 = vpack.c.b16 %v4347, %v4346
    %v4387 = vpack.c.b16 %v4349, %v4348
    %v4388 = vpack.c.b16 %v4351, %v4350
    %v4389 = vpack.c.b16 %v4353, %v4352
    %v4427 = vsel %vm806, %v4209, 0
    %4429 = vmatpush.bf16.msra.mxu0 %v4361
    %4430 = vmatpush.bf16.msra.mxu0 %v4360
    %4431 = vmatpush.bf16.msra.mxu0 %v4359
    %4432 = vmatpush.bf16.msra.mxu0 %v4358
    %4433 = vmatpush.bf16.msra.mxu0 %v4357
    %4434 = vmatpush.bf16.msra.mxu0 %v4356
    %4435 = vmatpush.bf16.msra.mxu0 %v4355
    %4436 = vmatpush.bf16.msra.mxu0 %v4354
    %4437 = vmatmul.bf16.gmra.mxu0 %v4205
    %v4438 = vpop.f32.mrf.mxu0
    %v4439 = vadd.f32 %v606, %v4438
    %v4440 = vpop.f32.mrf.mxu0
    %4441 = vdwg.mxu0
    %4442 = vmatpush.bf16.msra.mxu0 %v4369
    %4443 = vmatpush.bf16.msra.mxu0 %v4368
    %4444 = vmatpush.bf16.msra.mxu0 %v4367
    %4445 = vmatpush.bf16.msra.mxu0 %v4366
    %4446 = vmatpush.bf16.msra.mxu0 %v4365
    %4447 = vmatpush.bf16.msra.mxu0 %v4364
    %4448 = vmatpush.bf16.msra.mxu0 %v4363
    %4449 = vmatpush.bf16.msra.mxu0 %v4362
    %4450 = vmatmul.bf16.gmra.mxu0 %v4206
    %v4451 = vpop.f32.mrf.mxu0
    %v4452 = vadd.f32 %v4439, %v4451
    %v4453 = vpop.f32.mrf.mxu0
    %4454 = vdwg.mxu0
    %4455 = vmatpush.bf16.msra.mxu0 %v4377
    %4456 = vmatpush.bf16.msra.mxu0 %v4376
    %4457 = vmatpush.bf16.msra.mxu0 %v4375
    %4458 = vmatpush.bf16.msra.mxu0 %v4374
    %4459 = vmatpush.bf16.msra.mxu0 %v4373
    %4460 = vmatpush.bf16.msra.mxu0 %v4372
    %4461 = vmatpush.bf16.msra.mxu0 %v4371
    %4462 = vmatpush.bf16.msra.mxu0 %v4370
    %4463 = vmatmul.bf16.gmra.mxu0 %v4207
    %v4464 = vpop.f32.mrf.mxu0
    %v4465 = vadd.f32 %v4452, %v4464
    %v4466 = vpop.f32.mrf.mxu0
    %4467 = vdwg.mxu0
    %4468 = vmatpush.bf16.msra.mxu0 %v4385
    %4469 = vmatpush.bf16.msra.mxu0 %v4384
    %4470 = vmatpush.bf16.msra.mxu0 %v4383
    %4471 = vmatpush.bf16.msra.mxu0 %v4382
    %4472 = vmatpush.bf16.msra.mxu0 %v4381
    %4473 = vmatpush.bf16.msra.mxu0 %v4380
    %4474 = vmatpush.bf16.msra.mxu0 %v4379
    %4475 = vmatpush.bf16.msra.mxu0 %v4378
    %4476 = vmatmul.bf16.gmra.mxu0 %v4208
    %v4477 = vpop.f32.mrf.mxu0
    %v4478 = vadd.f32 %v4465, %v4477
    %v4479 = vpop.f32.mrf.mxu0
    %4480 = vdwg.mxu0
    %4481 = vmatpush.bf16.msra.mxu0 0
    %4482 = vmatpush.bf16.msra.mxu0 0
    %4483 = vmatpush.bf16.msra.mxu0 0
    %4484 = vmatpush.bf16.msra.mxu0 0
    %4485 = vmatpush.bf16.msra.mxu0 %v4389
    %4486 = vmatpush.bf16.msra.mxu0 %v4388
    %4487 = vmatpush.bf16.msra.mxu0 %v4387
    %4488 = vmatpush.bf16.msra.mxu0 %v4386
    %4489 = vmatmul.bf16.gmra.mxu0 %v4427
    %v4490 = vpop.f32.mrf.mxu0
    %v4491 = vadd.f32 %v4478, %v4490
    %v4492 = vpop.f32.mrf.mxu0
    %4493 = vdwg.mxu0
    %v4494 = vpack.c.bf16 %v4491, %v4491
    %v4503 = vunpack.c.l.b16 %v124
    %v4504 = vunpack.c.l.b16 %v125
    %v4505 = vunpack.c.l.b16 %v126
    %v4506 = vunpack.c.l.b16 %v127
    %v4507 = vunpack.c.l.b16 %v128
    %v4508 = vunpack.c.l.b16 %v129
    %v4509 = vunpack.c.l.b16 %v130
    %v4510 = vunpack.c.l.b16 %v131
    %v4511 = vpack.c.b16 %v4504, %v4503
    %v4512 = vpack.c.b16 %v4506, %v4505
    %v4513 = vpack.c.b16 %v4508, %v4507
    %v4514 = vpack.c.b16 %v4510, %v4509
    %v4520 = vsel %vm806, %v4494, 0
    %4522 = vmatpush.bf16.msra.mxu0 0
    %4523 = vmatpush.bf16.msra.mxu0 0
    %4524 = vmatpush.bf16.msra.mxu0 0
    %4525 = vmatpush.bf16.msra.mxu0 0
    %4526 = vmatpush.bf16.msra.mxu0 %v4514
    %4527 = vmatpush.bf16.msra.mxu0 %v4513
    %4528 = vmatpush.bf16.msra.mxu0 %v4512
    %4529 = vmatpush.bf16.msra.mxu0 %v4511
    %4530 = vmatmul.bf16.gmra.mxu0 %v4520
    %v4531 = vpop.f32.mrf.mxu0
    %v4532 = vadd.f32 %v607, %v4531
    %v4533 = vpop.f32.mrf.mxu0
    %4534 = vdwg.mxu0
    %v4535 = vmax.f32 %v4532, 0.0
    %v4536 = vmul.f32 %v4535, %v28
    %v4537 = vsel %vm794, %v4536, 0.0
    %v4538 = vrot.slane %v4537, 4
    %v4539 = vadd.f32 %v4537, %v4538
    %v4540 = vrot.slane %v4539, 2
    %v4541 = vadd.f32 %v4539, %v4540
    %v4542 = vrot.slane %v4541, 1
    %v4543 = vadd.f32 %v4541, %v4542
    %v4544 = vstv %s22
    %v4545 = vrcp.pop %v4544
    %v4546 = vmul.f32 %v4544, %v4545
    %v4547 = vsub.f32 1.0, %v4546
    %v4548 = vmul.f32 %v4545, %v4547
    %v4549 = vadd.f32 %v4545, %v4548
    %vm4550 = vweird.f32 %v4544
    %vm4551 = vweird.f32 %v4545
    %vm4552 = vmor %vm4550, %vm4551
    %v4553 = vsel %vm4552, %v4545, %v4549
    %v4554 = vand.u32 2147483647, %v4544
    %vm4555 = vcmp.eq.f32.partialorder %v4554, 8.507059e+37
    %v4556 = vand.u32 %v4544, 2147483648
    %v4557 = vor.u32 1.1754944e-38, %v4556
    %v4558 = vsel %vm4555, %v4557, %v4553
    %v4559 = vmul.f32 %v4543, %v4558
    %v4560 = vsub.f32 %v4535, %v4559
    %v4561 = vmul.f32 %v4560, %v4560
    %v4562 = vmul.f32 %v4561, %v28
    %v4563 = vsel %vm794, %v4562, 0.0
    %v4564 = vrot.slane %v4563, 4
    %v4565 = vadd.f32 %v4563, %v4564
    %v4566 = vrot.slane %v4565, 2
    %v4567 = vadd.f32 %v4565, %v4566
    %v4568 = vrot.slane %v4567, 1
    %v4569 = vadd.f32 %v4567, %v4568
    %v4570 = vmul.f32 %v4569, %v4558
    %v4571 = vadd.f32 %v4570, 1e-05
    %v4572 = vrsqrt.pop %v4571
    %v4573 = vmul.f32 %v4572, %v4571
    %v4574 = vmul.f32 %v4573, %v4572
    %v4575 = vmul.f32 0.5, %v4574
    %v4576 = vsub.f32 1.5, %v4575
    %v4577 = vmul.f32 %v4572, %v4576
    %vm4578 = vweird.f32 %v4571
    %vm4579 = vweird.f32 %v4572
    %vm4580 = vmor %vm4578, %vm4579
    %v4581 = vsel %vm4580, %v4572, %v4577
    %v4582 = vmul.f32 %v4560, %v4581
    %v4583 = vmul.f32 %v4582, %v608
    %v4584 = vadd.f32 %v4583, %v609
    %v4585 = vpack.c.bf16 %v4584, %v4584
    %v4588 = vunpack.c.l.b16 %v132
    %v4589 = vunpack.c.l.b16 %v133
    %v4590 = vpack.c.b16 %v4589, %v4588
    %v4593 = vsel %vm794, %v4585, 0
    %4595 = vmatpush.bf16.msra.mxu0 0
    %4596 = vmatpush.bf16.msra.mxu0 0
    %4597 = vmatpush.bf16.msra.mxu0 0
    %4598 = vmatpush.bf16.msra.mxu0 0
    %4599 = vmatpush.bf16.msra.mxu0 0
    %4600 = vmatpush.bf16.msra.mxu0 0
    %4601 = vmatpush.bf16.msra.mxu0 0
    %4602 = vmatpush.bf16.msra.mxu0 %v4590
    %4603 = vmatmul.bf16.gmra.mxu0 %v4593
    %v4604 = vpop.f32.mrf.mxu0
    %v4605 = vadd.f32 %v610, %v4604
    %v4606 = vpop.f32.mrf.mxu0
    %4607 = vdwg.mxu0
    %v4608 = vlaneseq
    %v4609 = vand.u32 %v4608, 127
    %vm4610 = vcmp.eq.s32.totalorder %v4609, 9
    %v4611 = vmul.f32 %v4605, 0.5
    %v4612 = vsel %vm4610, %v4611, %v4605
    %v4613 = vtanh.pop %v4612
    %v4614 = vmul.f32 %v4613, 0.5
    %v4615 = vadd.f32 %v4614, 0.5
    %v4616 = vsel %vm4610, %v4615, %v4613
    %4617 = vst [vmem:[#allocation4] sm:$0xff] %v4616
    // Predicated region
    $region18: #{tpu_custom_call.1} parent=1 // pred_check
      _
    $region19: #{tpu_custom_call.1} parent=1 // pred_check_branch
      %4619 = sbr.rel (0) target = $region21
    $region20: #{tpu_custom_call.1} parent=1 // pred_region
      %4621 = vsyncadd [#allocation5], 0
      %s4623 = sshll.u32 [#allocation4], 4
      %s4624 = int_to_ptr.vmem [resolvable:$true] %s4623
      %s4625 = sshll.u32 %s5, 4
      %s4626 = int_to_ptr.hbm [resolvable:$true] %s4625
      %4628 = dma.vmem_to_hbm [thread:$0]  %s4624, 128, %s4626, [#allocation5]
    $region21: #{tpu_custom_call.1} parent=1 // pred_fallthru
      _
    // Predicated region
    $region22: #{tpu_custom_call.1} parent=1 // pred_check
      _
    $region23: #{tpu_custom_call.1} parent=1 // pred_check_branch
      %4630 = sbr.rel (0) target = $region25
    $region24: #{tpu_custom_call.1} parent=1 // pred_region
      %4632 = dma.done [#allocation5], 128
    $region25: #{tpu_custom_call.1} parent=1 // pred_fallthru
      _
    %4633 = vsyncpa [#allocation5], 1

</llo_original>
